<compile_context>
chip_gen: v5e
topology: v5e:2x2
jax: 0.10.0
libtpu: 0.0.40
codegen_flags: <defaults>
</compile_context>

<pallas_src>
import numpy as np
import jax
import jax.numpy as jnp
from jax.experimental import pallas as pl
from jax.experimental.pallas import tpu as pltpu

# ----------------------------------------------------------------------------
# covert_parameters (synthetic, deterministic choice)
# ----------------------------------------------------------------------------
N_CHANNEL = 8        # covert_parameters['n_channel']
M_OUT = 4            # covert_parameters['m']
BATCH = 512          # batch of received symbols
LANE = 128           # lane-pad target for all feature dims
LEAKY_SLOPE = 0.2    # matches original model construction

# per-layer activation after each packed matmul
_ACTS = ("tanh", "leaky", "leaky", "leaky", "leaky", "leaky", "tanh", "none")
N_LAYERS = len(_ACTS)


# ----------------------------------------------------------------------------
# LayerShape (the spec module): host-side debug identity
# ----------------------------------------------------------------------------
def layer_shape(x, terminate=False, verbose=False):
    """PyTorch LayerShape: prints x.size() and returns x unchanged.

    Shapes are static at trace time, so this is purely host-side.
    # TODO(synk): print()/sys.exit() have no device-side Pallas equivalent;
    # verbose=False keeps stdout clean so the script prints exactly KERNEL_OK.
    """
    if verbose:
        print("Layer shape:", tuple(x.shape))
    if terminate:
        raise SystemExit
    return x


# ----------------------------------------------------------------------------
# Host-side glue: fold Conv1d into dense matrices matching nn.Flatten (idx=c*L+l)
# ----------------------------------------------------------------------------
def conv1d_to_dense(w, b, l_in, stride):
    """w: (C_out, C_in, K), b: (C_out,) -> M: (C_in*L_in, C_out*L_out), bias."""
    c_out, c_in, k = w.shape
    l_out = (l_in - k) // stride + 1
    mat = np.zeros((c_in * l_in, c_out * l_out), dtype=np.float32)
    for co in range(c_out):
        for ci in range(c_in):
            for kk in range(k):
                for ll in range(l_out):
                    mat[ci * l_in + ll * stride + kk, co * l_out + ll] = w[co, ci, kk]
    bias = np.repeat(b, l_out).astype(np.float32)
    return mat, bias, l_out


def make_raw_params(n, m):
    """Deterministic PyTorch-style uniform init, returned as (in,out) matrices."""
    rng = np.random.default_rng(0)

    def lin(in_f, out_f):
        bound = 1.0 / np.sqrt(in_f)
        w = rng.uniform(-bound, bound, size=(out_f, in_f)).astype(np.float32)
        b = rng.uniform(-bound, bound, size=(out_f,)).astype(np.float32)
        return w, b

    def conv(c_in, c_out, k):
        bound = 1.0 / np.sqrt(c_in * k)
        w = rng.uniform(-bound, bound, size=(c_out, c_in, k)).astype(np.float32)
        b = rng.uniform(-bound, bound, size=(c_out,)).astype(np.float32)
        return w, b

    raw = []
    # Linear(2n, 2n) + Tanh
    w0, b0 = lin(2 * n, 2 * n)
    raw.append((w0.T.copy(), b0))

    # Conv chain on length 2n, 1 channel after Unflatten
    l = 2 * n
    for c_in, c_out, k, s in [(1, n, 1, 1), (n, n, 2, 1), (n, n, 4, 2),
                              (n, n, 2, 1), (n, n, 2, 1)]:
        w, b = conv(c_in, c_out, k)
        mat, bias, l = conv1d_to_dense(w, b, l, s)
        raw.append((mat, bias))

    flat = n * l
    assert flat == n * (n - 4), "conv chain length mismatch with Linear in_features"

    # Linear(n*(n-4), 2n) + Tanh, then Linear(2n, m)
    w6, b6 = lin(flat, 2 * n)
    raw.append((w6.T.copy(), b6))
    w7, b7 = lin(2 * n, m)
    raw.append((w7.T.copy(), b7))
    return raw


def pack_params(raw, lane=LANE):
    """Zero-pad every (in,out) matrix / bias to (lane,lane) and stack.

    Returns w_pack: (8, lane, lane) f32 and b_pack: (8, 1, lane) f32.
    Padded rows/cols AND padded bias entries are zero, so tanh(0)=0 and
    leaky(0)=0 keep the padded lanes exactly zero through the whole chain;
    results are bit-identical on the real columns (final slice removes them).
    # TODO(synk): for large n the dense conv fold is an O(n^4) Toeplitz blow-up;
    # revisit with shifted-matmul (pltpu.roll) convs before scaling n.
    """
    assert len(raw) == N_LAYERS
    w_pack = np.zeros((N_LAYERS, lane, lane), dtype=np.float32)
    b_pack = np.zeros((N_LAYERS, 1, lane), dtype=np.float32)
    for l, (w, b) in enumerate(raw):
        k_in, k_out = w.shape
        assert k_in <= lane and k_out <= lane, "layer exceeds single 128-lane tile"
        w_pack[l, :k_in, :k_out] = w
        b_pack[l, 0, :k_out] = b
    return jnp.asarray(w_pack), jnp.asarray(b_pack)


# ----------------------------------------------------------------------------
# Pallas kernel: whole forward fused (8 matmuls + activations) per batch tile
# ----------------------------------------------------------------------------
def bob_kernel(x_ref, w_ref, b_ref, out_ref):
    def leaky(v):
        return jnp.where(v > 0, v, LEAKY_SLOPE * v)

    h = x_ref[...]                                   # (tm, 128) f32
    for l, act in enumerate(_ACTS):                  # static Python unroll
        h = jnp.dot(h, w_ref[l], preferred_element_type=jnp.float32) + b_ref[l]
        if act == "tanh":
            h = jnp.tanh(h)
        elif act == "leaky":
            h = leaky(h)
    out_ref[...] = h


def _const_param_spec(shape):
    """VMEM-resident parameter spec: constant index_map, single-buffered."""
    index_map = lambda i: (0,) * len(shape)
    try:
        return pl.BlockSpec(shape, index_map, pipeline_mode=pl.Buffered(1))
    except (TypeError, AttributeError):
        # older jax: fall back to default (double-buffered) constant block
        return pl.BlockSpec(shape, index_map)


def _num_batch_tiles():
    """2 tiles (one per TensorCore) on v7x-class chips, else 1 tile."""
    try:
        kind = jax.devices()[0].device_kind.lower()
    except Exception:
        return 1
    return 2 if "7" in kind else 1


def bob_forward(x, w_pack, b_pack):
    x = layer_shape(x)                       # spec module: debug identity
    batch, f_in = x.shape
    f_pad = w_pack.shape[-1]                 # 128

    tiles = _num_batch_tiles()
    tm = -(-batch // tiles)
    tm = ((tm + 7) // 8) * 8                 # sublane-align the batch tile
    grid_steps = pl.cdiv(batch, tm)
    padded_batch = grid_steps * tm

    # lane-pad input features, pad batch up to a multiple of tm
    x_p = jnp.pad(x, ((0, padded_batch - batch), (0, f_pad - f_in)))

    in_specs = [
        pl.BlockSpec((tm, f_pad), lambda i: (i, 0)),       # x tile per step
        _const_param_spec(w_pack.shape),                    # (8,128,128) weights
        _const_param_spec(b_pack.shape),                    # (8,1,128)  biases
    ]
    out_specs = pl.BlockSpec((tm, f_pad), lambda i: (i, 0))

    out = pl.pallas_call(
        bob_kernel,
        out_shape=jax.ShapeDtypeStruct((padded_batch, f_pad), jnp.float32),
        grid_spec=pltpu.PrefetchScalarGridSpec(
            num_scalar_prefetch=0,
            grid=(grid_steps,),
            in_specs=in_specs,
            out_specs=out_specs,
        ),
        compiler_params=pltpu.CompilerParams(
            dimension_semantics=("parallel",),
        ),
    )(x_p, w_pack, b_pack)

    return layer_shape(out[:batch, :M_OUT])   # slice off lane / batch padding


# ----------------------------------------------------------------------------
# Pure-JAX reference on the UNPADDED matrices (checks padding didn't alter math)
# ----------------------------------------------------------------------------
def bob_reference(x, raw):
    leaky = lambda v: jnp.where(v > 0, v, LEAKY_SLOPE * v)
    acts = [jnp.tanh, leaky, leaky, leaky, leaky, leaky, jnp.tanh, None]
    h = x
    for (w, b), act in zip(raw, acts):
        h = jnp.dot(h, jnp.asarray(w),
                    precision=jax.lax.Precision.HIGHEST) + jnp.asarray(b.reshape(1, -1))
        if act is not None:
            h = act(h)
    return h


if __name__ == "__main__":
    raw = make_raw_params(N_CHANNEL, M_OUT)
    w_pack, b_pack = pack_params(raw)

    key = jax.random.PRNGKey(0)
    x = jax.random.normal(key, (BATCH, N_CHANNEL * 2), dtype=jnp.float32)

    out = bob_forward(x, w_pack, b_pack)
    out = jax.block_until_ready(out)

    ref = bob_reference(x, raw)
    np.testing.assert_allclose(np.asarray(out), np.asarray(ref), rtol=1e-4, atol=1e-4)

    assert out.shape == (BATCH, M_OUT)
    print("KERNEL_OK")
</pallas_src>

<mosaic_0001>
module attributes {stable_mosaic.version = 11 : i64} {
  func.func @bob_kernel(%arg0: i32, %arg1: memref<512x128xf32, #tpu.memory_space<vmem>>, %arg2: memref<8x128x128xf32, #tpu.memory_space<vmem>>, %arg3: memref<8x1x128xf32, #tpu.memory_space<vmem>>, %arg4: memref<512x128xf32, #tpu.memory_space<vmem>>) attributes {dimension_semantics = [#tpu.dimension_semantics<parallel>], iteration_bounds = array<i64: 1>, scalar_prefetch = 0 : i64, scratch_operands = 0 : i64, tpu.core_type = #tpu.core_type<tc>, window_params = [{transform_indices = @transform_0, window_bounds = array<i64: 512, 128>}, {pipeline_mode = #tpu.pipeline_mode<synchronous>, transform_indices = @transform_1, window_bounds = array<i64: 8, 128, 128>}, {pipeline_mode = #tpu.pipeline_mode<synchronous>, transform_indices = @transform_2, window_bounds = array<i64: 8, 1, 128>}, {transform_indices = @transform_3, window_bounds = array<i64: 512, 128>}]} {
    %c0 = arith.constant 0 : index
    %c0_0 = arith.constant 0 : index
    %0 = vector.load %arg1[%c0, %c0_0] : memref<512x128xf32, #tpu.memory_space<vmem>>, vector<512x128xf32>
    %c0_1 = arith.constant 0 : index
    %c0_2 = arith.constant 0 : index
    %c0_3 = arith.constant 0 : index
    %1 = vector.load %arg2[%c0_1, %c0_2, %c0_3] : memref<8x128x128xf32, #tpu.memory_space<vmem>>, vector<1x128x128xf32>
    %2 = vector.shape_cast %1 : vector<1x128x128xf32> to vector<128x128xf32>
    %cst = arith.constant dense<0.000000e+00> : vector<512x128xf32>
    %3 = tpu.matmul %0, %2, %cst {dimension_numbers = #tpu.dot_dimension_numbers<[1], [0], [0], [1], [0, 0, 1, 1], [], []>} : vector<512x128xf32>, vector<128x128xf32>, vector<512x128xf32> -> vector<512x128xf32>
    %c0_4 = arith.constant 0 : index
    %c0_5 = arith.constant 0 : index
    %c0_6 = arith.constant 0 : index
    %4 = vector.load %arg3[%c0_4, %c0_5, %c0_6] : memref<8x1x128xf32, #tpu.memory_space<vmem>>, vector<1x1x128xf32>
    %5 = vector.shape_cast %4 : vector<1x1x128xf32> to vector<1x128xf32>
    %6 = vector.broadcast %5 : vector<1x128xf32> to vector<512x128xf32>
    %7 = arith.addf %3, %6 : vector<512x128xf32>
    %8 = math.tanh %7 : vector<512x128xf32>
    %c1 = arith.constant 1 : index
    %c0_7 = arith.constant 0 : index
    %c0_8 = arith.constant 0 : index
    %9 = vector.load %arg2[%c1, %c0_7, %c0_8] : memref<8x128x128xf32, #tpu.memory_space<vmem>>, vector<1x128x128xf32>
    %10 = vector.shape_cast %9 : vector<1x128x128xf32> to vector<128x128xf32>
    %cst_9 = arith.constant dense<0.000000e+00> : vector<512x128xf32>
    %11 = tpu.matmul %8, %10, %cst_9 {dimension_numbers = #tpu.dot_dimension_numbers<[1], [0], [0], [1], [0, 0, 1, 1], [], []>} : vector<512x128xf32>, vector<128x128xf32>, vector<512x128xf32> -> vector<512x128xf32>
    %c1_10 = arith.constant 1 : index
    %c0_11 = arith.constant 0 : index
    %c0_12 = arith.constant 0 : index
    %12 = vector.load %arg3[%c1_10, %c0_11, %c0_12] : memref<8x1x128xf32, #tpu.memory_space<vmem>>, vector<1x1x128xf32>
    %13 = vector.shape_cast %12 : vector<1x1x128xf32> to vector<1x128xf32>
    %14 = vector.broadcast %13 : vector<1x128xf32> to vector<512x128xf32>
    %15 = arith.addf %11, %14 : vector<512x128xf32>
    %cst_13 = arith.constant 0.000000e+00 : f32
    %16 = vector.broadcast %cst_13 : f32 to vector<512x128xf32>
    %17 = arith.cmpf ogt, %15, %16 : vector<512x128xf32>
    %cst_14 = arith.constant 2.000000e-01 : f32
    %18 = vector.broadcast %cst_14 : f32 to vector<512x128xf32>
    %19 = arith.mulf %18, %15 : vector<512x128xf32>
    %20 = arith.select %17, %15, %19 : vector<512x128xi1>, vector<512x128xf32>
    %c2 = arith.constant 2 : index
    %c0_15 = arith.constant 0 : index
    %c0_16 = arith.constant 0 : index
    %21 = vector.load %arg2[%c2, %c0_15, %c0_16] : memref<8x128x128xf32, #tpu.memory_space<vmem>>, vector<1x128x128xf32>
    %22 = vector.shape_cast %21 : vector<1x128x128xf32> to vector<128x128xf32>
    %cst_17 = arith.constant dense<0.000000e+00> : vector<512x128xf32>
    %23 = tpu.matmul %20, %22, %cst_17 {dimension_numbers = #tpu.dot_dimension_numbers<[1], [0], [0], [1], [0, 0, 1, 1], [], []>} : vector<512x128xf32>, vector<128x128xf32>, vector<512x128xf32> -> vector<512x128xf32>
    %c2_18 = arith.constant 2 : index
    %c0_19 = arith.constant 0 : index
    %c0_20 = arith.constant 0 : index
    %24 = vector.load %arg3[%c2_18, %c0_19, %c0_20] : memref<8x1x128xf32, #tpu.memory_space<vmem>>, vector<1x1x128xf32>
    %25 = vector.shape_cast %24 : vector<1x1x128xf32> to vector<1x128xf32>
    %26 = vector.broadcast %25 : vector<1x128xf32> to vector<512x128xf32>
    %27 = arith.addf %23, %26 : vector<512x128xf32>
    %cst_21 = arith.constant 0.000000e+00 : f32
    %28 = vector.broadcast %cst_21 : f32 to vector<512x128xf32>
    %29 = arith.cmpf ogt, %27, %28 : vector<512x128xf32>
    %cst_22 = arith.constant 2.000000e-01 : f32
    %30 = vector.broadcast %cst_22 : f32 to vector<512x128xf32>
    %31 = arith.mulf %30, %27 : vector<512x128xf32>
    %32 = arith.select %29, %27, %31 : vector<512x128xi1>, vector<512x128xf32>
    %c3 = arith.constant 3 : index
    %c0_23 = arith.constant 0 : index
    %c0_24 = arith.constant 0 : index
    %33 = vector.load %arg2[%c3, %c0_23, %c0_24] : memref<8x128x128xf32, #tpu.memory_space<vmem>>, vector<1x128x128xf32>
    %34 = vector.shape_cast %33 : vector<1x128x128xf32> to vector<128x128xf32>
    %cst_25 = arith.constant dense<0.000000e+00> : vector<512x128xf32>
    %35 = tpu.matmul %32, %34, %cst_25 {dimension_numbers = #tpu.dot_dimension_numbers<[1], [0], [0], [1], [0, 0, 1, 1], [], []>} : vector<512x128xf32>, vector<128x128xf32>, vector<512x128xf32> -> vector<512x128xf32>
    %c3_26 = arith.constant 3 : index
    %c0_27 = arith.constant 0 : index
    %c0_28 = arith.constant 0 : index
    %36 = vector.load %arg3[%c3_26, %c0_27, %c0_28] : memref<8x1x128xf32, #tpu.memory_space<vmem>>, vector<1x1x128xf32>
    %37 = vector.shape_cast %36 : vector<1x1x128xf32> to vector<1x128xf32>
    %38 = vector.broadcast %37 : vector<1x128xf32> to vector<512x128xf32>
    %39 = arith.addf %35, %38 : vector<512x128xf32>
    %cst_29 = arith.constant 0.000000e+00 : f32
    %40 = vector.broadcast %cst_29 : f32 to vector<512x128xf32>
    %41 = arith.cmpf ogt, %39, %40 : vector<512x128xf32>
    %cst_30 = arith.constant 2.000000e-01 : f32
    %42 = vector.broadcast %cst_30 : f32 to vector<512x128xf32>
    %43 = arith.mulf %42, %39 : vector<512x128xf32>
    %44 = arith.select %41, %39, %43 : vector<512x128xi1>, vector<512x128xf32>
    %c4 = arith.constant 4 : index
    %c0_31 = arith.constant 0 : index
    %c0_32 = arith.constant 0 : index
    %45 = vector.load %arg2[%c4, %c0_31, %c0_32] : memref<8x128x128xf32, #tpu.memory_space<vmem>>, vector<1x128x128xf32>
    %46 = vector.shape_cast %45 : vector<1x128x128xf32> to vector<128x128xf32>
    %cst_33 = arith.constant dense<0.000000e+00> : vector<512x128xf32>
    %47 = tpu.matmul %44, %46, %cst_33 {dimension_numbers = #tpu.dot_dimension_numbers<[1], [0], [0], [1], [0, 0, 1, 1], [], []>} : vector<512x128xf32>, vector<128x128xf32>, vector<512x128xf32> -> vector<512x128xf32>
    %c4_34 = arith.constant 4 : index
    %c0_35 = arith.constant 0 : index
    %c0_36 = arith.constant 0 : index
    %48 = vector.load %arg3[%c4_34, %c0_35, %c0_36] : memref<8x1x128xf32, #tpu.memory_space<vmem>>, vector<1x1x128xf32>
    %49 = vector.shape_cast %48 : vector<1x1x128xf32> to vector<1x128xf32>
    %50 = vector.broadcast %49 : vector<1x128xf32> to vector<512x128xf32>
    %51 = arith.addf %47, %50 : vector<512x128xf32>
    %cst_37 = arith.constant 0.000000e+00 : f32
    %52 = vector.broadcast %cst_37 : f32 to vector<512x128xf32>
    %53 = arith.cmpf ogt, %51, %52 : vector<512x128xf32>
    %cst_38 = arith.constant 2.000000e-01 : f32
    %54 = vector.broadcast %cst_38 : f32 to vector<512x128xf32>
    %55 = arith.mulf %54, %51 : vector<512x128xf32>
    %56 = arith.select %53, %51, %55 : vector<512x128xi1>, vector<512x128xf32>
    %c5 = arith.constant 5 : index
    %c0_39 = arith.constant 0 : index
    %c0_40 = arith.constant 0 : index
    %57 = vector.load %arg2[%c5, %c0_39, %c0_40] : memref<8x128x128xf32, #tpu.memory_space<vmem>>, vector<1x128x128xf32>
    %58 = vector.shape_cast %57 : vector<1x128x128xf32> to vector<128x128xf32>
    %cst_41 = arith.constant dense<0.000000e+00> : vector<512x128xf32>
    %59 = tpu.matmul %56, %58, %cst_41 {dimension_numbers = #tpu.dot_dimension_numbers<[1], [0], [0], [1], [0, 0, 1, 1], [], []>} : vector<512x128xf32>, vector<128x128xf32>, vector<512x128xf32> -> vector<512x128xf32>
    %c5_42 = arith.constant 5 : index
    %c0_43 = arith.constant 0 : index
    %c0_44 = arith.constant 0 : index
    %60 = vector.load %arg3[%c5_42, %c0_43, %c0_44] : memref<8x1x128xf32, #tpu.memory_space<vmem>>, vector<1x1x128xf32>
    %61 = vector.shape_cast %60 : vector<1x1x128xf32> to vector<1x128xf32>
    %62 = vector.broadcast %61 : vector<1x128xf32> to vector<512x128xf32>
    %63 = arith.addf %59, %62 : vector<512x128xf32>
    %cst_45 = arith.constant 0.000000e+00 : f32
    %64 = vector.broadcast %cst_45 : f32 to vector<512x128xf32>
    %65 = arith.cmpf ogt, %63, %64 : vector<512x128xf32>
    %cst_46 = arith.constant 2.000000e-01 : f32
    %66 = vector.broadcast %cst_46 : f32 to vector<512x128xf32>
    %67 = arith.mulf %66, %63 : vector<512x128xf32>
    %68 = arith.select %65, %63, %67 : vector<512x128xi1>, vector<512x128xf32>
    %c6 = arith.constant 6 : index
    %c0_47 = arith.constant 0 : index
    %c0_48 = arith.constant 0 : index
    %69 = vector.load %arg2[%c6, %c0_47, %c0_48] : memref<8x128x128xf32, #tpu.memory_space<vmem>>, vector<1x128x128xf32>
    %70 = vector.shape_cast %69 : vector<1x128x128xf32> to vector<128x128xf32>
    %cst_49 = arith.constant dense<0.000000e+00> : vector<512x128xf32>
    %71 = tpu.matmul %68, %70, %cst_49 {dimension_numbers = #tpu.dot_dimension_numbers<[1], [0], [0], [1], [0, 0, 1, 1], [], []>} : vector<512x128xf32>, vector<128x128xf32>, vector<512x128xf32> -> vector<512x128xf32>
    %c6_50 = arith.constant 6 : index
    %c0_51 = arith.constant 0 : index
    %c0_52 = arith.constant 0 : index
    %72 = vector.load %arg3[%c6_50, %c0_51, %c0_52] : memref<8x1x128xf32, #tpu.memory_space<vmem>>, vector<1x1x128xf32>
    %73 = vector.shape_cast %72 : vector<1x1x128xf32> to vector<1x128xf32>
    %74 = vector.broadcast %73 : vector<1x128xf32> to vector<512x128xf32>
    %75 = arith.addf %71, %74 : vector<512x128xf32>
    %76 = math.tanh %75 : vector<512x128xf32>
    %c7 = arith.constant 7 : index
    %c0_53 = arith.constant 0 : index
    %c0_54 = arith.constant 0 : index
    %77 = vector.load %arg2[%c7, %c0_53, %c0_54] : memref<8x128x128xf32, #tpu.memory_space<vmem>>, vector<1x128x128xf32>
    %78 = vector.shape_cast %77 : vector<1x128x128xf32> to vector<128x128xf32>
    %cst_55 = arith.constant dense<0.000000e+00> : vector<512x128xf32>
    %79 = tpu.matmul %76, %78, %cst_55 {dimension_numbers = #tpu.dot_dimension_numbers<[1], [0], [0], [1], [0, 0, 1, 1], [], []>} : vector<512x128xf32>, vector<128x128xf32>, vector<512x128xf32> -> vector<512x128xf32>
    %c7_56 = arith.constant 7 : index
    %c0_57 = arith.constant 0 : index
    %c0_58 = arith.constant 0 : index
    %80 = vector.load %arg3[%c7_56, %c0_57, %c0_58] : memref<8x1x128xf32, #tpu.memory_space<vmem>>, vector<1x1x128xf32>
    %81 = vector.shape_cast %80 : vector<1x1x128xf32> to vector<1x128xf32>
    %82 = vector.broadcast %81 : vector<1x128xf32> to vector<512x128xf32>
    %83 = arith.addf %79, %82 : vector<512x128xf32>
    %c0_59 = arith.constant 0 : index
    %c0_60 = arith.constant 0 : index
    %84 = vector.load %arg4[%c0_59, %c0_60] : memref<512x128xf32, #tpu.memory_space<vmem>>, vector<512x128xf32>
    tpu.vector_store %arg4[%c0_59, %c0_60], %83 {strides = array<i32>} : memref<512x128xf32, #tpu.memory_space<vmem>>, vector<512x128xf32>,
    return
  }
  func.func @transform_0(%arg0: i32) -> (i32, i32) {
    %c0_i32 = arith.constant 0 : i32
    %c0_i32_0 = arith.constant 0 : i32
    return %arg0, %c0_i32 : i32, i32
  }
  func.func @transform_1(%arg0: i32) -> (i32, i32, i32) {
    %c0_i32 = arith.constant 0 : i32
    %c0_i32_0 = arith.constant 0 : i32
    %c0_i32_1 = arith.constant 0 : i32
    %c0_i32_2 = arith.constant 0 : i32
    return %c0_i32, %c0_i32_0, %c0_i32_1 : i32, i32, i32
  }
  func.func @transform_2(%arg0: i32) -> (i32, i32, i32) {
    %c0_i32 = arith.constant 0 : i32
    %c0_i32_0 = arith.constant 0 : i32
    %c0_i32_1 = arith.constant 0 : i32
    %c0_i32_2 = arith.constant 0 : i32
    return %c0_i32, %c0_i32_0, %c0_i32_1 : i32, i32, i32
  }
  func.func @transform_3(%arg0: i32) -> (i32, i32) {
    %c0_i32 = arith.constant 0 : i32
    %c0_i32_0 = arith.constant 0 : i32
    return %arg0, %c0_i32 : i32, i32
  }
}

</mosaic_0001>

<llo_original>
// kernel: tpu_custom_call.1
$region0: #{tpu_custom_call.1}
  #allocation0 [shape = 'u32[]', space=smem, size = 0x4, offset = 0x4, fixed_abs, tag = 'smem constant byte address 0x4 - core index']
  #allocation1 [shape = 'u32[72,128]{1,0:T(1,128)}', space=vmem, size = 0x9000, scoped, tag = 'internal scratch']
  %s0 = inlined_call_operand.hbm [shape: f32[512,128], index: 0, kind: input, shape index: {}]
  %s1 = inlined_call_operand.hbm [shape: f32[8,128,128], index: 1, kind: input, shape index: {}]
  %s2 = inlined_call_operand.hbm [shape: f32[8,1,128], index: 2, kind: input, shape index: {}]
  %s3 = inlined_call_operand.hbm [shape: f32[512,128], index: 3, kind: output, shape index: {}]
  %s4 = sld [smem:[#allocation0]]
  $region34: #{tpu_custom_call.1} parent=0
    _
  %s6 = ssub.s32 1, %s4
  %s7 = scalar_select 0, %s6, %s4
  $region1: #{tpu_custom_call.1} parent=0
    #allocation2 [shape = 'u8[262144]{0}', space=vmem, size = 0x40000, scoped, tag = 'input window, operand 0, single buffered']
    #allocation3 [shape = 's32[1]{0}', space=sflag, size = 0x4, scoped, tag = 'scoped memory for tpu_custom_call.1']
    #allocation4 [shape = 's32[1]{0}', space=sflag, size = 0x4, scoped, tag = 'scoped memory for tpu_custom_call.1']
    #allocation5 [shape = 'u8[524288]{0}', space=vmem, size = 0x80000, scoped, tag = 'input window, operand 1, single buffered']
    #allocation6 [shape = 's32[1]{0}', space=sflag, size = 0x4, scoped, tag = 'scoped memory for tpu_custom_call.1']
    #allocation7 [shape = 'u8[4096]{0}', space=vmem, size = 0x1000, scoped, tag = 'input window, operand 2, single buffered']
    #allocation8 [shape = 'u8[262144]{0}', space=vmem, size = 0x40000, scoped, tag = 'output window, operand 0, single buffered']
    %8 = vsyncpa [#allocation3], 0
    %9 = vsyncpa [#allocation6], 0
    %10 = vsyncpa [#allocation4], 0
    // Predicated region
    $region2: #{tpu_custom_call.1} parent=1 // pred_check
      _
    $region3: #{tpu_custom_call.1} parent=1 // pred_check_branch
      %12 = sbr.rel (0) target = $region5
    $region4: #{tpu_custom_call.1} parent=1 // pred_region
      %14 = vsyncadd [#allocation3], 0
      %s15 = sshll.u32 %s0, 4
      %s16 = int_to_ptr.hbm [resolvable:$true] %s15
      %s17 = sshll.u32 [#allocation2], 4
      %s18 = int_to_ptr.vmem [resolvable:$true] %s17
      %23 = dma.hbm_to_vmem [thread:$0]  %s16, 8192, %s18, [#allocation3], 128, 128, 8
    $region5: #{tpu_custom_call.1} parent=1 // pred_fallthru
      _
    // Predicated region
    $region6: #{tpu_custom_call.1} parent=1 // pred_check
      _
    $region7: #{tpu_custom_call.1} parent=1 // pred_check_branch
      %25 = sbr.rel (0) target = $region9
    $region8: #{tpu_custom_call.1} parent=1 // pred_region
      %27 = vsyncadd [#allocation6], 0
      %s28 = sshll.u32 %s1, 4
      %s29 = int_to_ptr.hbm [resolvable:$true] %s28
      %s30 = sshll.u32 [#allocation5], 4
      %s31 = int_to_ptr.vmem [resolvable:$true] %s30
      %36 = dma.hbm_to_vmem [thread:$0]  %s29, 16384, %s31, [#allocation6], 128, 128, 8
    $region9: #{tpu_custom_call.1} parent=1 // pred_fallthru
      _
    // Predicated region
    $region10: #{tpu_custom_call.1} parent=1 // pred_check
      _
    $region11: #{tpu_custom_call.1} parent=1 // pred_check_branch
      %38 = sbr.rel (0) target = $region13
    $region12: #{tpu_custom_call.1} parent=1 // pred_region
      %40 = vsyncadd [#allocation6], 0
      %s41 = sshll.u32 %s2, 4
      %s42 = int_to_ptr.hbm [resolvable:$true] %s41
      %s43 = sshll.u32 [#allocation7], 4
      %s44 = int_to_ptr.vmem [resolvable:$true] %s43
      %49 = dma.hbm_to_vmem [thread:$0]  %s42, 128, %s44, [#allocation6], 16, 16, 1
    $region13: #{tpu_custom_call.1} parent=1 // pred_fallthru
      _
    // Predicated region
    $region14: #{tpu_custom_call.1} parent=1 // pred_check
      _
    $region15: #{tpu_custom_call.1} parent=1 // pred_check_branch
      %51 = sbr.rel (0) target = $region17
    $region16: #{tpu_custom_call.1} parent=1 // pred_region
      %53 = dma.done [#allocation3], 8192
    $region17: #{tpu_custom_call.1} parent=1 // pred_fallthru
      _
    // Predicated region
    $region18: #{tpu_custom_call.1} parent=1 // pred_check
      _
    $region19: #{tpu_custom_call.1} parent=1 // pred_check_branch
      %55 = sbr.rel (0) target = $region21
    $region20: #{tpu_custom_call.1} parent=1 // pred_region
      %57 = dma.done [#allocation6], 16384
    $region21: #{tpu_custom_call.1} parent=1 // pred_fallthru
      _
    // Predicated region
    $region22: #{tpu_custom_call.1} parent=1 // pred_check
      _
    $region23: #{tpu_custom_call.1} parent=1 // pred_check_branch
      %59 = sbr.rel (0) target = $region25
    $region24: #{tpu_custom_call.1} parent=1 // pred_region
      %61 = dma.done [#allocation6], 128
    $region25: #{tpu_custom_call.1} parent=1 // pred_fallthru
      _
    %v62 = vld [vmem:[#allocation2] sm:$0xff]
    %v63 = vld [vmem:[#allocation2 + $0x8] sm:$0xff]
    %v64 = vld [vmem:[#allocation2 + $0x10] sm:$0xff]
    %v65 = vld [vmem:[#allocation2 + $0x18] sm:$0xff]
    %v66 = vld [vmem:[#allocation2 + $0x20] sm:$0xff]
    %v67 = vld [vmem:[#allocation2 + $0x28] sm:$0xff]
    %v68 = vld [vmem:[#allocation2 + $0x30] sm:$0xff]
    %v69 = vld [vmem:[#allocation2 + $0x38] sm:$0xff]
    %v70 = vld [vmem:[#allocation2 + $0x40] sm:$0xff]
    %v71 = vld [vmem:[#allocation2 + $0x48] sm:$0xff]
    %v72 = vld [vmem:[#allocation2 + $0x50] sm:$0xff]
    %v73 = vld [vmem:[#allocation2 + $0x58] sm:$0xff]
    %v74 = vld [vmem:[#allocation2 + $0x60] sm:$0xff]
    %v75 = vld [vmem:[#allocation2 + $0x68] sm:$0xff]
    %v76 = vld [vmem:[#allocation2 + $0x70] sm:$0xff]
    %v77 = vld [vmem:[#allocation2 + $0x78] sm:$0xff]
    %v78 = vld [vmem:[#allocation2 + $0x80] sm:$0xff]
    %v79 = vld [vmem:[#allocation2 + $0x88] sm:$0xff]
    %v80 = vld [vmem:[#allocation2 + $0x90] sm:$0xff]
    %v81 = vld [vmem:[#allocation2 + $0x98] sm:$0xff]
    %v82 = vld [vmem:[#allocation2 + $0xa0] sm:$0xff]
    %v83 = vld [vmem:[#allocation2 + $0xa8] sm:$0xff]
    %v84 = vld [vmem:[#allocation2 + $0xb0] sm:$0xff]
    %v85 = vld [vmem:[#allocation2 + $0xb8] sm:$0xff]
    %v86 = vld [vmem:[#allocation2 + $0xc0] sm:$0xff]
    %v87 = vld [vmem:[#allocation2 + $0xc8] sm:$0xff]
    %v88 = vld [vmem:[#allocation2 + $0xd0] sm:$0xff]
    %v89 = vld [vmem:[#allocation2 + $0xd8] sm:$0xff]
    %v90 = vld [vmem:[#allocation2 + $0xe0] sm:$0xff]
    %v91 = vld [vmem:[#allocation2 + $0xe8] sm:$0xff]
    %v92 = vld [vmem:[#allocation2 + $0xf0] sm:$0xff]
    %v93 = vld [vmem:[#allocation2 + $0xf8] sm:$0xff]
    %v94 = vld [vmem:[#allocation2 + $0x100] sm:$0xff]
    %v95 = vld [vmem:[#allocation2 + $0x108] sm:$0xff]
    %v96 = vld [vmem:[#allocation2 + $0x110] sm:$0xff]
    %v97 = vld [vmem:[#allocation2 + $0x118] sm:$0xff]
    %v98 = vld [vmem:[#allocation2 + $0x120] sm:$0xff]
    %v99 = vld [vmem:[#allocation2 + $0x128] sm:$0xff]
    %v100 = vld [vmem:[#allocation2 + $0x130] sm:$0xff]
    %v101 = vld [vmem:[#allocation2 + $0x138] sm:$0xff]
    %v102 = vld [vmem:[#allocation2 + $0x140] sm:$0xff]
    %v103 = vld [vmem:[#allocation2 + $0x148] sm:$0xff]
    %v104 = vld [vmem:[#allocation2 + $0x150] sm:$0xff]
    %v105 = vld [vmem:[#allocation2 + $0x158] sm:$0xff]
    %v106 = vld [vmem:[#allocation2 + $0x160] sm:$0xff]
    %v107 = vld [vmem:[#allocation2 + $0x168] sm:$0xff]
    %v108 = vld [vmem:[#allocation2 + $0x170] sm:$0xff]
    %v109 = vld [vmem:[#allocation2 + $0x178] sm:$0xff]
    %v110 = vld [vmem:[#allocation2 + $0x180] sm:$0xff]
    %v111 = vld [vmem:[#allocation2 + $0x188] sm:$0xff]
    %v112 = vld [vmem:[#allocation2 + $0x190] sm:$0xff]
    %v113 = vld [vmem:[#allocation2 + $0x198] sm:$0xff]
    %v114 = vld [vmem:[#allocation2 + $0x1a0] sm:$0xff]
    %v115 = vld [vmem:[#allocation2 + $0x1a8] sm:$0xff]
    %v116 = vld [vmem:[#allocation2 + $0x1b0] sm:$0xff]
    %v117 = vld [vmem:[#allocation2 + $0x1b8] sm:$0xff]
    %v118 = vld [vmem:[#allocation2 + $0x1c0] sm:$0xff]
    %v119 = vld [vmem:[#allocation2 + $0x1c8] sm:$0xff]
    %v120 = vld [vmem:[#allocation2 + $0x1d0] sm:$0xff]
    %v121 = vld [vmem:[#allocation2 + $0x1d8] sm:$0xff]
    %v122 = vld [vmem:[#allocation2 + $0x1e0] sm:$0xff]
    %v123 = vld [vmem:[#allocation2 + $0x1e8] sm:$0xff]
    %v124 = vld [vmem:[#allocation2 + $0x1f0] sm:$0xff]
    %v125 = vld [vmem:[#allocation2 + $0x1f8] sm:$0xff]
    %v126 = vld [vmem:[#allocation5] sm:$0xff]
    %v127 = vld [vmem:[#allocation5 + $0x8] sm:$0xff]
    %v128 = vld [vmem:[#allocation5 + $0x10] sm:$0xff]
    %v129 = vld [vmem:[#allocation5 + $0x18] sm:$0xff]
    %v130 = vld [vmem:[#allocation5 + $0x20] sm:$0xff]
    %v131 = vld [vmem:[#allocation5 + $0x28] sm:$0xff]
    %v132 = vld [vmem:[#allocation5 + $0x30] sm:$0xff]
    %v133 = vld [vmem:[#allocation5 + $0x38] sm:$0xff]
    %v134 = vld [vmem:[#allocation5 + $0x40] sm:$0xff]
    %v135 = vld [vmem:[#allocation5 + $0x48] sm:$0xff]
    %v136 = vld [vmem:[#allocation5 + $0x50] sm:$0xff]
    %v137 = vld [vmem:[#allocation5 + $0x58] sm:$0xff]
    %v138 = vld [vmem:[#allocation5 + $0x60] sm:$0xff]
    %v139 = vld [vmem:[#allocation5 + $0x68] sm:$0xff]
    %v140 = vld [vmem:[#allocation5 + $0x70] sm:$0xff]
    %v141 = vld [vmem:[#allocation5 + $0x78] sm:$0xff]
    %v142 = vld [vmem:[#allocation7] sm:$0x1]
    %v144 = vperm.slane %v142, 0
    %146 = vmatpush.msra.mxu0 %v141
    %147 = vmatpush.msra.mxu0 %v140
    %148 = vmatpush.msra.mxu0 %v139
    %149 = vmatpush.msra.mxu0 %v138
    %150 = vmatpush.msra.mxu0 %v137
    %151 = vmatpush.msra.mxu0 %v136
    %152 = vmatpush.msra.mxu0 %v135
    %153 = vmatpush.msra.mxu0 %v134
    %154 = vmatpush.msra.mxu0 %v133
    %155 = vmatpush.msra.mxu0 %v132
    %156 = vmatpush.msra.mxu0 %v131
    %157 = vmatpush.msra.mxu0 %v130
    %158 = vmatpush.msra.mxu0 %v129
    %159 = vmatpush.msra.mxu0 %v128
    %160 = vmatpush.msra.mxu0 %v127
    %161 = vmatpush.msra.mxu0 %v126
    %162 = vmatmul.f32.gmra.mxu0 %v62
    %v163 = vpop.f32.mrf.mxu0
    %v164 = vadd.f32 %v144, %v163
    %165 = vmatmul.f32.gmra.mxu0 %v63
    %v166 = vpop.f32.mrf.mxu0
    %v167 = vadd.f32 %v144, %v166
    %168 = vmatmul.f32.gmra.mxu0 %v64
    %v169 = vpop.f32.mrf.mxu0
    %v170 = vadd.f32 %v144, %v169
    %171 = vmatmul.f32.gmra.mxu0 %v65
    %v172 = vpop.f32.mrf.mxu0
    %v173 = vadd.f32 %v144, %v172
    %174 = vmatmul.f32.gmra.mxu0 %v66
    %v175 = vpop.f32.mrf.mxu0
    %v176 = vadd.f32 %v144, %v175
    %177 = vmatmul.f32.gmra.mxu0 %v67
    %v178 = vpop.f32.mrf.mxu0
    %v179 = vadd.f32 %v144, %v178
    %180 = vmatmul.f32.gmra.mxu0 %v68
    %v181 = vpop.f32.mrf.mxu0
    %v182 = vadd.f32 %v144, %v181
    %183 = vmatmul.f32.gmra.mxu0 %v69
    %v184 = vpop.f32.mrf.mxu0
    %v185 = vadd.f32 %v144, %v184
    %186 = vmatmul.f32.gmra.mxu0 %v70
    %v187 = vpop.f32.mrf.mxu0
    %v188 = vadd.f32 %v144, %v187
    %189 = vmatmul.f32.gmra.mxu0 %v71
    %v190 = vpop.f32.mrf.mxu0
    %v191 = vadd.f32 %v144, %v190
    %192 = vmatmul.f32.gmra.mxu0 %v72
    %v193 = vpop.f32.mrf.mxu0
    %v194 = vadd.f32 %v144, %v193
    %195 = vmatmul.f32.gmra.mxu0 %v73
    %v196 = vpop.f32.mrf.mxu0
    %v197 = vadd.f32 %v144, %v196
    %198 = vmatmul.f32.gmra.mxu0 %v74
    %v199 = vpop.f32.mrf.mxu0
    %v200 = vadd.f32 %v144, %v199
    %201 = vmatmul.f32.gmra.mxu0 %v75
    %v202 = vpop.f32.mrf.mxu0
    %v203 = vadd.f32 %v144, %v202
    %204 = vmatmul.f32.gmra.mxu0 %v76
    %v205 = vpop.f32.mrf.mxu0
    %v206 = vadd.f32 %v144, %v205
    %207 = vmatmul.f32.gmra.mxu0 %v77
    %v208 = vpop.f32.mrf.mxu0
    %v209 = vadd.f32 %v144, %v208
    %210 = vmatmul.f32.gmra.mxu0 %v78
    %v211 = vpop.f32.mrf.mxu0
    %v212 = vadd.f32 %v144, %v211
    %213 = vmatmul.f32.gmra.mxu0 %v79
    %v214 = vpop.f32.mrf.mxu0
    %v215 = vadd.f32 %v144, %v214
    %216 = vmatmul.f32.gmra.mxu0 %v80
    %v217 = vpop.f32.mrf.mxu0
    %v218 = vadd.f32 %v144, %v217
    %219 = vmatmul.f32.gmra.mxu0 %v81
    %v220 = vpop.f32.mrf.mxu0
    %v221 = vadd.f32 %v144, %v220
    %222 = vmatmul.f32.gmra.mxu0 %v82
    %v223 = vpop.f32.mrf.mxu0
    %v224 = vadd.f32 %v144, %v223
    %225 = vmatmul.f32.gmra.mxu0 %v83
    %v226 = vpop.f32.mrf.mxu0
    %v227 = vadd.f32 %v144, %v226
    %228 = vmatmul.f32.gmra.mxu0 %v84
    %v229 = vpop.f32.mrf.mxu0
    %v230 = vadd.f32 %v144, %v229
    %231 = vmatmul.f32.gmra.mxu0 %v85
    %v232 = vpop.f32.mrf.mxu0
    %v233 = vadd.f32 %v144, %v232
    %234 = vmatmul.f32.gmra.mxu0 %v86
    %v235 = vpop.f32.mrf.mxu0
    %v236 = vadd.f32 %v144, %v235
    %237 = vmatmul.f32.gmra.mxu0 %v87
    %v238 = vpop.f32.mrf.mxu0
    %v239 = vadd.f32 %v144, %v238
    %240 = vmatmul.f32.gmra.mxu0 %v88
    %v241 = vpop.f32.mrf.mxu0
    %v242 = vadd.f32 %v144, %v241
    %243 = vmatmul.f32.gmra.mxu0 %v89
    %v244 = vpop.f32.mrf.mxu0
    %v245 = vadd.f32 %v144, %v244
    %246 = vmatmul.f32.gmra.mxu0 %v90
    %v247 = vpop.f32.mrf.mxu0
    %v248 = vadd.f32 %v144, %v247
    %249 = vmatmul.f32.gmra.mxu0 %v91
    %v250 = vpop.f32.mrf.mxu0
    %v251 = vadd.f32 %v144, %v250
    %252 = vmatmul.f32.gmra.mxu0 %v92
    %v253 = vpop.f32.mrf.mxu0
    %v254 = vadd.f32 %v144, %v253
    %255 = vmatmul.f32.gmra.mxu0 %v93
    %v256 = vpop.f32.mrf.mxu0
    %v257 = vadd.f32 %v144, %v256
    %258 = vmatmul.f32.gmra.mxu0 %v94
    %v259 = vpop.f32.mrf.mxu0
    %v260 = vadd.f32 %v144, %v259
    %261 = vmatmul.f32.gmra.mxu0 %v95
    %v262 = vpop.f32.mrf.mxu0
    %v263 = vadd.f32 %v144, %v262
    %264 = vmatmul.f32.gmra.mxu0 %v96
    %v265 = vpop.f32.mrf.mxu0
    %v266 = vadd.f32 %v144, %v265
    %267 = vmatmul.f32.gmra.mxu0 %v97
    %v268 = vpop.f32.mrf.mxu0
    %v269 = vadd.f32 %v144, %v268
    %270 = vmatmul.f32.gmra.mxu0 %v98
    %v271 = vpop.f32.mrf.mxu0
    %v272 = vadd.f32 %v144, %v271
    %273 = vmatmul.f32.gmra.mxu0 %v99
    %v274 = vpop.f32.mrf.mxu0
    %v275 = vadd.f32 %v144, %v274
    %276 = vmatmul.f32.gmra.mxu0 %v100
    %v277 = vpop.f32.mrf.mxu0
    %v278 = vadd.f32 %v144, %v277
    %279 = vmatmul.f32.gmra.mxu0 %v101
    %v280 = vpop.f32.mrf.mxu0
    %v281 = vadd.f32 %v144, %v280
    %282 = vmatmul.f32.gmra.mxu0 %v102
    %v283 = vpop.f32.mrf.mxu0
    %v284 = vadd.f32 %v144, %v283
    %285 = vmatmul.f32.gmra.mxu0 %v103
    %v286 = vpop.f32.mrf.mxu0
    %v287 = vadd.f32 %v144, %v286
    %288 = vmatmul.f32.gmra.mxu0 %v104
    %v289 = vpop.f32.mrf.mxu0
    %v290 = vadd.f32 %v144, %v289
    %291 = vmatmul.f32.gmra.mxu0 %v105
    %v292 = vpop.f32.mrf.mxu0
    %v293 = vadd.f32 %v144, %v292
    %294 = vmatmul.f32.gmra.mxu0 %v106
    %v295 = vpop.f32.mrf.mxu0
    %v296 = vadd.f32 %v144, %v295
    %297 = vmatmul.f32.gmra.mxu0 %v107
    %v298 = vpop.f32.mrf.mxu0
    %v299 = vadd.f32 %v144, %v298
    %300 = vmatmul.f32.gmra.mxu0 %v108
    %v301 = vpop.f32.mrf.mxu0
    %v302 = vadd.f32 %v144, %v301
    %303 = vmatmul.f32.gmra.mxu0 %v109
    %v304 = vpop.f32.mrf.mxu0
    %v305 = vadd.f32 %v144, %v304
    %306 = vmatmul.f32.gmra.mxu0 %v110
    %v307 = vpop.f32.mrf.mxu0
    %v308 = vadd.f32 %v144, %v307
    %309 = vmatmul.f32.gmra.mxu0 %v111
    %v310 = vpop.f32.mrf.mxu0
    %v311 = vadd.f32 %v144, %v310
    %312 = vmatmul.f32.gmra.mxu0 %v112
    %v313 = vpop.f32.mrf.mxu0
    %v314 = vadd.f32 %v144, %v313
    %315 = vmatmul.f32.gmra.mxu0 %v113
    %v316 = vpop.f32.mrf.mxu0
    %v317 = vadd.f32 %v144, %v316
    %318 = vmatmul.f32.gmra.mxu0 %v114
    %v319 = vpop.f32.mrf.mxu0
    %v320 = vadd.f32 %v144, %v319
    %321 = vmatmul.f32.gmra.mxu0 %v115
    %v322 = vpop.f32.mrf.mxu0
    %v323 = vadd.f32 %v144, %v322
    %324 = vmatmul.f32.gmra.mxu0 %v116
    %v325 = vpop.f32.mrf.mxu0
    %v326 = vadd.f32 %v144, %v325
    %327 = vmatmul.f32.gmra.mxu0 %v117
    %v328 = vpop.f32.mrf.mxu0
    %v329 = vadd.f32 %v144, %v328
    %330 = vmatmul.f32.gmra.mxu0 %v118
    %v331 = vpop.f32.mrf.mxu0
    %v332 = vadd.f32 %v144, %v331
    %333 = vmatmul.f32.gmra.mxu0 %v119
    %v334 = vpop.f32.mrf.mxu0
    %v335 = vadd.f32 %v144, %v334
    %336 = vmatmul.f32.gmra.mxu0 %v120
    %v337 = vpop.f32.mrf.mxu0
    %v338 = vadd.f32 %v144, %v337
    %339 = vmatmul.f32.gmra.mxu0 %v121
    %v340 = vpop.f32.mrf.mxu0
    %v341 = vadd.f32 %v144, %v340
    %342 = vmatmul.f32.gmra.mxu0 %v122
    %v343 = vpop.f32.mrf.mxu0
    %v344 = vadd.f32 %v144, %v343
    %345 = vmatmul.f32.gmra.mxu0 %v123
    %v346 = vpop.f32.mrf.mxu0
    %v347 = vadd.f32 %v144, %v346
    %348 = vmatmul.f32.gmra.mxu0 %v124
    %v349 = vpop.f32.mrf.mxu0
    %v350 = vadd.f32 %v144, %v349
    %351 = vmatmul.f32.gmra.mxu0 %v125
    %v352 = vpop.f32.mrf.mxu0
    %v353 = vadd.f32 %v144, %v352
    %354 = vdwg.mxu0
    %v355 = vtanh.pop %v164
    %v356 = vtanh.pop %v167
    %v357 = vtanh.pop %v170
    %v358 = vtanh.pop %v173
    %v359 = vtanh.pop %v176
    %v360 = vtanh.pop %v179
    %v361 = vtanh.pop %v182
    %v362 = vtanh.pop %v185
    %v363 = vtanh.pop %v188
    %v364 = vtanh.pop %v191
    %v365 = vtanh.pop %v194
    %v366 = vtanh.pop %v197
    %v367 = vtanh.pop %v200
    %v368 = vtanh.pop %v203
    %v369 = vtanh.pop %v206
    %v370 = vtanh.pop %v209
    %v371 = vtanh.pop %v212
    %v372 = vtanh.pop %v215
    %v373 = vtanh.pop %v218
    %v374 = vtanh.pop %v221
    %v375 = vtanh.pop %v224
    %v376 = vtanh.pop %v227
    %v377 = vtanh.pop %v230
    %v378 = vtanh.pop %v233
    %v379 = vtanh.pop %v236
    %v380 = vtanh.pop %v239
    %v381 = vtanh.pop %v242
    %v382 = vtanh.pop %v245
    %v383 = vtanh.pop %v248
    %v384 = vtanh.pop %v251
    %v385 = vtanh.pop %v254
    %v386 = vtanh.pop %v257
    %v387 = vtanh.pop %v260
    %v388 = vtanh.pop %v263
    %v389 = vtanh.pop %v266
    %v390 = vtanh.pop %v269
    %v391 = vtanh.pop %v272
    %v392 = vtanh.pop %v275
    %v393 = vtanh.pop %v278
    %v394 = vtanh.pop %v281
    %v395 = vtanh.pop %v284
    %v396 = vtanh.pop %v287
    %v397 = vtanh.pop %v290
    %v398 = vtanh.pop %v293
    %v399 = vtanh.pop %v296
    %v400 = vtanh.pop %v299
    %v401 = vtanh.pop %v302
    %v402 = vtanh.pop %v305
    %v403 = vtanh.pop %v308
    %v404 = vtanh.pop %v311
    %v405 = vtanh.pop %v314
    %v406 = vtanh.pop %v317
    %v407 = vtanh.pop %v320
    %v408 = vtanh.pop %v323
    %v409 = vtanh.pop %v326
    %v410 = vtanh.pop %v329
    %v411 = vtanh.pop %v332
    %v412 = vtanh.pop %v335
    %v413 = vtanh.pop %v338
    %v414 = vtanh.pop %v341
    %v415 = vtanh.pop %v344
    %v416 = vtanh.pop %v347
    %v417 = vtanh.pop %v350
    %v418 = vtanh.pop %v353
    %s419 = scalar_lea.vmem [#allocation5], 128
    %v420 = vld [vmem:[%s419] sm:$0xff]
    %v421 = vld [vmem:[%s419 + $0x8] sm:$0xff]
    %v422 = vld [vmem:[%s419 + $0x10] sm:$0xff]
    %v423 = vld [vmem:[%s419 + $0x18] sm:$0xff]
    %v424 = vld [vmem:[%s419 + $0x20] sm:$0xff]
    %v425 = vld [vmem:[%s419 + $0x28] sm:$0xff]
    %v426 = vld [vmem:[%s419 + $0x30] sm:$0xff]
    %v427 = vld [vmem:[%s419 + $0x38] sm:$0xff]
    %v428 = vld [vmem:[%s419 + $0x40] sm:$0xff]
    %v429 = vld [vmem:[%s419 + $0x48] sm:$0xff]
    %v430 = vld [vmem:[%s419 + $0x50] sm:$0xff]
    %v431 = vld [vmem:[%s419 + $0x58] sm:$0xff]
    %v432 = vld [vmem:[%s419 + $0x60] sm:$0xff]
    %v433 = vld [vmem:[%s419 + $0x68] sm:$0xff]
    %v434 = vld [vmem:[%s419 + $0x70] sm:$0xff]
    %v435 = vld [vmem:[%s419 + $0x78] sm:$0xff]
    %s436 = scalar_lea.vmem [#allocation7], 1
    %v437 = vld [vmem:[%s436] sm:$0x1]
    %v439 = vperm.slane %v437, 0
    %441 = vmatpush.msra.mxu0 %v435
    %442 = vmatpush.msra.mxu0 %v434
    %443 = vmatpush.msra.mxu0 %v433
    %444 = vmatpush.msra.mxu0 %v432
    %445 = vmatpush.msra.mxu0 %v431
    %446 = vmatpush.msra.mxu0 %v430
    %447 = vmatpush.msra.mxu0 %v429
    %448 = vmatpush.msra.mxu0 %v428
    %449 = vmatpush.msra.mxu0 %v427
    %450 = vmatpush.msra.mxu0 %v426
    %451 = vmatpush.msra.mxu0 %v425
    %452 = vmatpush.msra.mxu0 %v424
    %453 = vmatpush.msra.mxu0 %v423
    %454 = vmatpush.msra.mxu0 %v422
    %455 = vmatpush.msra.mxu0 %v421
    %456 = vmatpush.msra.mxu0 %v420
    %457 = vmatmul.f32.gmra.mxu0 %v355
    %v458 = vpop.f32.mrf.mxu0
    %v459 = vadd.f32 %v439, %v458
    %460 = vmatmul.f32.gmra.mxu0 %v356
    %v461 = vpop.f32.mrf.mxu0
    %v462 = vadd.f32 %v439, %v461
    %463 = vmatmul.f32.gmra.mxu0 %v357
    %v464 = vpop.f32.mrf.mxu0
    %v465 = vadd.f32 %v439, %v464
    %466 = vmatmul.f32.gmra.mxu0 %v358
    %v467 = vpop.f32.mrf.mxu0
    %v468 = vadd.f32 %v439, %v467
    %469 = vmatmul.f32.gmra.mxu0 %v359
    %v470 = vpop.f32.mrf.mxu0
    %v471 = vadd.f32 %v439, %v470
    %472 = vmatmul.f32.gmra.mxu0 %v360
    %v473 = vpop.f32.mrf.mxu0
    %v474 = vadd.f32 %v439, %v473
    %475 = vmatmul.f32.gmra.mxu0 %v361
    %v476 = vpop.f32.mrf.mxu0
    %v477 = vadd.f32 %v439, %v476
    %478 = vmatmul.f32.gmra.mxu0 %v362
    %v479 = vpop.f32.mrf.mxu0
    %v480 = vadd.f32 %v439, %v479
    %481 = vmatmul.f32.gmra.mxu0 %v363
    %v482 = vpop.f32.mrf.mxu0
    %v483 = vadd.f32 %v439, %v482
    %484 = vmatmul.f32.gmra.mxu0 %v364
    %v485 = vpop.f32.mrf.mxu0
    %v486 = vadd.f32 %v439, %v485
    %487 = vmatmul.f32.gmra.mxu0 %v365
    %v488 = vpop.f32.mrf.mxu0
    %v489 = vadd.f32 %v439, %v488
    %490 = vmatmul.f32.gmra.mxu0 %v366
    %v491 = vpop.f32.mrf.mxu0
    %v492 = vadd.f32 %v439, %v491
    %493 = vmatmul.f32.gmra.mxu0 %v367
    %v494 = vpop.f32.mrf.mxu0
    %v495 = vadd.f32 %v439, %v494
    %496 = vmatmul.f32.gmra.mxu0 %v368
    %v497 = vpop.f32.mrf.mxu0
    %v498 = vadd.f32 %v439, %v497
    %499 = vmatmul.f32.gmra.mxu0 %v369
    %v500 = vpop.f32.mrf.mxu0
    %v501 = vadd.f32 %v439, %v500
    %502 = vmatmul.f32.gmra.mxu0 %v370
    %v503 = vpop.f32.mrf.mxu0
    %v504 = vadd.f32 %v439, %v503
    %505 = vmatmul.f32.gmra.mxu0 %v371
    %v506 = vpop.f32.mrf.mxu0
    %v507 = vadd.f32 %v439, %v506
    %508 = vmatmul.f32.gmra.mxu0 %v372
    %v509 = vpop.f32.mrf.mxu0
    %v510 = vadd.f32 %v439, %v509
    %511 = vmatmul.f32.gmra.mxu0 %v373
    %v512 = vpop.f32.mrf.mxu0
    %v513 = vadd.f32 %v439, %v512
    %514 = vmatmul.f32.gmra.mxu0 %v374
    %v515 = vpop.f32.mrf.mxu0
    %v516 = vadd.f32 %v439, %v515
    %517 = vmatmul.f32.gmra.mxu0 %v375
    %v518 = vpop.f32.mrf.mxu0
    %v519 = vadd.f32 %v439, %v518
    %520 = vmatmul.f32.gmra.mxu0 %v376
    %v521 = vpop.f32.mrf.mxu0
    %v522 = vadd.f32 %v439, %v521
    %523 = vmatmul.f32.gmra.mxu0 %v377
    %v524 = vpop.f32.mrf.mxu0
    %v525 = vadd.f32 %v439, %v524
    %526 = vmatmul.f32.gmra.mxu0 %v378
    %v527 = vpop.f32.mrf.mxu0
    %v528 = vadd.f32 %v439, %v527
    %529 = vmatmul.f32.gmra.mxu0 %v379
    %v530 = vpop.f32.mrf.mxu0
    %v531 = vadd.f32 %v439, %v530
    %532 = vmatmul.f32.gmra.mxu0 %v380
    %v533 = vpop.f32.mrf.mxu0
    %v534 = vadd.f32 %v439, %v533
    %535 = vmatmul.f32.gmra.mxu0 %v381
    %v536 = vpop.f32.mrf.mxu0
    %v537 = vadd.f32 %v439, %v536
    %538 = vmatmul.f32.gmra.mxu0 %v382
    %v539 = vpop.f32.mrf.mxu0
    %v540 = vadd.f32 %v439, %v539
    %541 = vmatmul.f32.gmra.mxu0 %v383
    %v542 = vpop.f32.mrf.mxu0
    %v543 = vadd.f32 %v439, %v542
    %544 = vmatmul.f32.gmra.mxu0 %v384
    %v545 = vpop.f32.mrf.mxu0
    %v546 = vadd.f32 %v439, %v545
    %547 = vmatmul.f32.gmra.mxu0 %v385
    %v548 = vpop.f32.mrf.mxu0
    %v549 = vadd.f32 %v439, %v548
    %550 = vmatmul.f32.gmra.mxu0 %v386
    %v551 = vpop.f32.mrf.mxu0
    %v552 = vadd.f32 %v439, %v551
    %553 = vmatmul.f32.gmra.mxu0 %v387
    %v554 = vpop.f32.mrf.mxu0
    %v555 = vadd.f32 %v439, %v554
    %556 = vmatmul.f32.gmra.mxu0 %v388
    %v557 = vpop.f32.mrf.mxu0
    %v558 = vadd.f32 %v439, %v557
    %559 = vmatmul.f32.gmra.mxu0 %v389
    %v560 = vpop.f32.mrf.mxu0
    %v561 = vadd.f32 %v439, %v560
    %562 = vmatmul.f32.gmra.mxu0 %v390
    %v563 = vpop.f32.mrf.mxu0
    %v564 = vadd.f32 %v439, %v563
    %565 = vmatmul.f32.gmra.mxu0 %v391
    %v566 = vpop.f32.mrf.mxu0
    %v567 = vadd.f32 %v439, %v566
    %568 = vmatmul.f32.gmra.mxu0 %v392
    %v569 = vpop.f32.mrf.mxu0
    %v570 = vadd.f32 %v439, %v569
    %571 = vmatmul.f32.gmra.mxu0 %v393
    %v572 = vpop.f32.mrf.mxu0
    %v573 = vadd.f32 %v439, %v572
    %574 = vmatmul.f32.gmra.mxu0 %v394
    %v575 = vpop.f32.mrf.mxu0
    %v576 = vadd.f32 %v439, %v575
    %577 = vmatmul.f32.gmra.mxu0 %v395
    %v578 = vpop.f32.mrf.mxu0
    %v579 = vadd.f32 %v439, %v578
    %580 = vmatmul.f32.gmra.mxu0 %v396
    %v581 = vpop.f32.mrf.mxu0
    %v582 = vadd.f32 %v439, %v581
    %583 = vmatmul.f32.gmra.mxu0 %v397
    %v584 = vpop.f32.mrf.mxu0
    %v585 = vadd.f32 %v439, %v584
    %586 = vmatmul.f32.gmra.mxu0 %v398
    %v587 = vpop.f32.mrf.mxu0
    %v588 = vadd.f32 %v439, %v587
    %589 = vmatmul.f32.gmra.mxu0 %v399
    %v590 = vpop.f32.mrf.mxu0
    %v591 = vadd.f32 %v439, %v590
    %592 = vmatmul.f32.gmra.mxu0 %v400
    %v593 = vpop.f32.mrf.mxu0
    %v594 = vadd.f32 %v439, %v593
    %595 = vmatmul.f32.gmra.mxu0 %v401
    %v596 = vpop.f32.mrf.mxu0
    %v597 = vadd.f32 %v439, %v596
    %598 = vmatmul.f32.gmra.mxu0 %v402
    %v599 = vpop.f32.mrf.mxu0
    %v600 = vadd.f32 %v439, %v599
    %601 = vmatmul.f32.gmra.mxu0 %v403
    %v602 = vpop.f32.mrf.mxu0
    %v603 = vadd.f32 %v439, %v602
    %604 = vmatmul.f32.gmra.mxu0 %v404
    %v605 = vpop.f32.mrf.mxu0
    %v606 = vadd.f32 %v439, %v605
    %607 = vmatmul.f32.gmra.mxu0 %v405
    %v608 = vpop.f32.mrf.mxu0
    %v609 = vadd.f32 %v439, %v608
    %610 = vmatmul.f32.gmra.mxu0 %v406
    %v611 = vpop.f32.mrf.mxu0
    %v612 = vadd.f32 %v439, %v611
    %613 = vmatmul.f32.gmra.mxu0 %v407
    %v614 = vpop.f32.mrf.mxu0
    %v615 = vadd.f32 %v439, %v614
    %616 = vmatmul.f32.gmra.mxu0 %v408
    %v617 = vpop.f32.mrf.mxu0
    %v618 = vadd.f32 %v439, %v617
    %619 = vmatmul.f32.gmra.mxu0 %v409
    %v620 = vpop.f32.mrf.mxu0
    %v621 = vadd.f32 %v439, %v620
    %622 = vmatmul.f32.gmra.mxu0 %v410
    %v623 = vpop.f32.mrf.mxu0
    %v624 = vadd.f32 %v439, %v623
    %625 = vmatmul.f32.gmra.mxu0 %v411
    %v626 = vpop.f32.mrf.mxu0
    %v627 = vadd.f32 %v439, %v626
    %628 = vmatmul.f32.gmra.mxu0 %v412
    %v629 = vpop.f32.mrf.mxu0
    %v630 = vadd.f32 %v439, %v629
    %631 = vmatmul.f32.gmra.mxu0 %v413
    %v632 = vpop.f32.mrf.mxu0
    %v633 = vadd.f32 %v439, %v632
    %634 = vmatmul.f32.gmra.mxu0 %v414
    %v635 = vpop.f32.mrf.mxu0
    %v636 = vadd.f32 %v439, %v635
    %637 = vmatmul.f32.gmra.mxu0 %v415
    %v638 = vpop.f32.mrf.mxu0
    %v639 = vadd.f32 %v439, %v638
    %640 = vmatmul.f32.gmra.mxu0 %v416
    %v641 = vpop.f32.mrf.mxu0
    %v642 = vadd.f32 %v439, %v641
    %643 = vmatmul.f32.gmra.mxu0 %v417
    %v644 = vpop.f32.mrf.mxu0
    %v645 = vadd.f32 %v439, %v644
    %646 = vmatmul.f32.gmra.mxu0 %v418
    %v647 = vpop.f32.mrf.mxu0
    %v648 = vadd.f32 %v439, %v647
    %649 = vdwg.mxu0
    %vm650 = vcmp.gt.f32.partialorder %v459, 0.0
    %vm651 = vcmp.gt.f32.partialorder %v462, 0.0
    %vm652 = vcmp.gt.f32.partialorder %v465, 0.0
    %vm653 = vcmp.gt.f32.partialorder %v468, 0.0
    %vm654 = vcmp.gt.f32.partialorder %v471, 0.0
    %vm655 = vcmp.gt.f32.partialorder %v474, 0.0
    %vm656 = vcmp.gt.f32.partialorder %v477, 0.0
    %vm657 = vcmp.gt.f32.partialorder %v480, 0.0
    %vm658 = vcmp.gt.f32.partialorder %v483, 0.0
    %vm659 = vcmp.gt.f32.partialorder %v486, 0.0
    %vm660 = vcmp.gt.f32.partialorder %v489, 0.0
    %vm661 = vcmp.gt.f32.partialorder %v492, 0.0
    %vm662 = vcmp.gt.f32.partialorder %v495, 0.0
    %vm663 = vcmp.gt.f32.partialorder %v498, 0.0
    %vm664 = vcmp.gt.f32.partialorder %v501, 0.0
    %vm665 = vcmp.gt.f32.partialorder %v504, 0.0
    %vm666 = vcmp.gt.f32.partialorder %v507, 0.0
    %vm667 = vcmp.gt.f32.partialorder %v510, 0.0
    %vm668 = vcmp.gt.f32.partialorder %v513, 0.0
    %vm669 = vcmp.gt.f32.partialorder %v516, 0.0
    %vm670 = vcmp.gt.f32.partialorder %v519, 0.0
    %vm671 = vcmp.gt.f32.partialorder %v522, 0.0
    %vm672 = vcmp.gt.f32.partialorder %v525, 0.0
    %vm673 = vcmp.gt.f32.partialorder %v528, 0.0
    %vm674 = vcmp.gt.f32.partialorder %v531, 0.0
    %vm675 = vcmp.gt.f32.partialorder %v534, 0.0
    %vm676 = vcmp.gt.f32.partialorder %v537, 0.0
    %vm677 = vcmp.gt.f32.partialorder %v540, 0.0
    %vm678 = vcmp.gt.f32.partialorder %v543, 0.0
    %vm679 = vcmp.gt.f32.partialorder %v546, 0.0
    %vm680 = vcmp.gt.f32.partialorder %v549, 0.0
    %vm681 = vcmp.gt.f32.partialorder %v552, 0.0
    %vm682 = vcmp.gt.f32.partialorder %v555, 0.0
    %vm683 = vcmp.gt.f32.partialorder %v558, 0.0
    %vm684 = vcmp.gt.f32.partialorder %v561, 0.0
    %vm685 = vcmp.gt.f32.partialorder %v564, 0.0
    %vm686 = vcmp.gt.f32.partialorder %v567, 0.0
    %vm687 = vcmp.gt.f32.partialorder %v570, 0.0
    %vm688 = vcmp.gt.f32.partialorder %v573, 0.0
    %vm689 = vcmp.gt.f32.partialorder %v576, 0.0
    %vm690 = vcmp.gt.f32.partialorder %v579, 0.0
    %vm691 = vcmp.gt.f32.partialorder %v582, 0.0
    %vm692 = vcmp.gt.f32.partialorder %v585, 0.0
    %vm693 = vcmp.gt.f32.partialorder %v588, 0.0
    %vm694 = vcmp.gt.f32.partialorder %v591, 0.0
    %vm695 = vcmp.gt.f32.partialorder %v594, 0.0
    %vm696 = vcmp.gt.f32.partialorder %v597, 0.0
    %vm697 = vcmp.gt.f32.partialorder %v600, 0.0
    %vm698 = vcmp.gt.f32.partialorder %v603, 0.0
    %vm699 = vcmp.gt.f32.partialorder %v606, 0.0
    %vm700 = vcmp.gt.f32.partialorder %v609, 0.0
    %vm701 = vcmp.gt.f32.partialorder %v612, 0.0
    %vm702 = vcmp.gt.f32.partialorder %v615, 0.0
    %vm703 = vcmp.gt.f32.partialorder %v618, 0.0
    %vm704 = vcmp.gt.f32.partialorder %v621, 0.0
    %vm705 = vcmp.gt.f32.partialorder %v624, 0.0
    %vm706 = vcmp.gt.f32.partialorder %v627, 0.0
    %vm707 = vcmp.gt.f32.partialorder %v630, 0.0
    %vm708 = vcmp.gt.f32.partialorder %v633, 0.0
    %vm709 = vcmp.gt.f32.partialorder %v636, 0.0
    %vm710 = vcmp.gt.f32.partialorder %v639, 0.0
    %vm711 = vcmp.gt.f32.partialorder %v642, 0.0
    %vm712 = vcmp.gt.f32.partialorder %v645, 0.0
    %vm713 = vcmp.gt.f32.partialorder %v648, 0.0
    %v714 = vmul.f32 %v459, 0.2
    %v715 = vmul.f32 %v462, 0.2
    %v716 = vmul.f32 %v465, 0.2
    %v717 = vmul.f32 %v468, 0.2
    %v718 = vmul.f32 %v471, 0.2
    %v719 = vmul.f32 %v474, 0.2
    %v720 = vmul.f32 %v477, 0.2
    %v721 = vmul.f32 %v480, 0.2
    %v722 = vmul.f32 %v483, 0.2
    %v723 = vmul.f32 %v486, 0.2
    %v724 = vmul.f32 %v489, 0.2
    %v725 = vmul.f32 %v492, 0.2
    %v726 = vmul.f32 %v495, 0.2
    %v727 = vmul.f32 %v498, 0.2
    %v728 = vmul.f32 %v501, 0.2
    %v729 = vmul.f32 %v504, 0.2
    %v730 = vmul.f32 %v507, 0.2
    %v731 = vmul.f32 %v510, 0.2
    %v732 = vmul.f32 %v513, 0.2
    %v733 = vmul.f32 %v516, 0.2
    %v734 = vmul.f32 %v519, 0.2
    %v735 = vmul.f32 %v522, 0.2
    %v736 = vmul.f32 %v525, 0.2
    %v737 = vmul.f32 %v528, 0.2
    %v738 = vmul.f32 %v531, 0.2
    %v739 = vmul.f32 %v534, 0.2
    %v740 = vmul.f32 %v537, 0.2
    %v741 = vmul.f32 %v540, 0.2
    %v742 = vmul.f32 %v543, 0.2
    %v743 = vmul.f32 %v546, 0.2
    %v744 = vmul.f32 %v549, 0.2
    %v745 = vmul.f32 %v552, 0.2
    %v746 = vmul.f32 %v555, 0.2
    %v747 = vmul.f32 %v558, 0.2
    %v748 = vmul.f32 %v561, 0.2
    %v749 = vmul.f32 %v564, 0.2
    %v750 = vmul.f32 %v567, 0.2
    %v751 = vmul.f32 %v570, 0.2
    %v752 = vmul.f32 %v573, 0.2
    %v753 = vmul.f32 %v576, 0.2
    %v754 = vmul.f32 %v579, 0.2
    %v755 = vmul.f32 %v582, 0.2
    %v756 = vmul.f32 %v585, 0.2
    %v757 = vmul.f32 %v588, 0.2
    %v758 = vmul.f32 %v591, 0.2
    %v759 = vmul.f32 %v594, 0.2
    %v760 = vmul.f32 %v597, 0.2
    %v761 = vmul.f32 %v600, 0.2
    %v762 = vmul.f32 %v603, 0.2
    %v763 = vmul.f32 %v606, 0.2
    %v764 = vmul.f32 %v609, 0.2
    %v765 = vmul.f32 %v612, 0.2
    %v766 = vmul.f32 %v615, 0.2
    %v767 = vmul.f32 %v618, 0.2
    %v768 = vmul.f32 %v621, 0.2
    %v769 = vmul.f32 %v624, 0.2
    %v770 = vmul.f32 %v627, 0.2
    %v771 = vmul.f32 %v630, 0.2
    %v772 = vmul.f32 %v633, 0.2
    %v773 = vmul.f32 %v636, 0.2
    %v774 = vmul.f32 %v639, 0.2
    %v775 = vmul.f32 %v642, 0.2
    %v776 = vmul.f32 %v645, 0.2
    %v777 = vmul.f32 %v648, 0.2
    %v778 = vsel %vm650, %v459, %v714
    %v779 = vsel %vm651, %v462, %v715
    %v780 = vsel %vm652, %v465, %v716
    %v781 = vsel %vm653, %v468, %v717
    %v782 = vsel %vm654, %v471, %v718
    %v783 = vsel %vm655, %v474, %v719
    %v784 = vsel %vm656, %v477, %v720
    %v785 = vsel %vm657, %v480, %v721
    %v786 = vsel %vm658, %v483, %v722
    %v787 = vsel %vm659, %v486, %v723
    %v788 = vsel %vm660, %v489, %v724
    %v789 = vsel %vm661, %v492, %v725
    %v790 = vsel %vm662, %v495, %v726
    %v791 = vsel %vm663, %v498, %v727
    %v792 = vsel %vm664, %v501, %v728
    %v793 = vsel %vm665, %v504, %v729
    %v794 = vsel %vm666, %v507, %v730
    %v795 = vsel %vm667, %v510, %v731
    %v796 = vsel %vm668, %v513, %v732
    %v797 = vsel %vm669, %v516, %v733
    %v798 = vsel %vm670, %v519, %v734
    %v799 = vsel %vm671, %v522, %v735
    %v800 = vsel %vm672, %v525, %v736
    %v801 = vsel %vm673, %v528, %v737
    %v802 = vsel %vm674, %v531, %v738
    %v803 = vsel %vm675, %v534, %v739
    %v804 = vsel %vm676, %v537, %v740
    %v805 = vsel %vm677, %v540, %v741
    %v806 = vsel %vm678, %v543, %v742
    %v807 = vsel %vm679, %v546, %v743
    %v808 = vsel %vm680, %v549, %v744
    %v809 = vsel %vm681, %v552, %v745
    %v810 = vsel %vm682, %v555, %v746
    %v811 = vsel %vm683, %v558, %v747
    %v812 = vsel %vm684, %v561, %v748
    %v813 = vsel %vm685, %v564, %v749
    %v814 = vsel %vm686, %v567, %v750
    %v815 = vsel %vm687, %v570, %v751
    %v816 = vsel %vm688, %v573, %v752
    %v817 = vsel %vm689, %v576, %v753
    %v818 = vsel %vm690, %v579, %v754
    %v819 = vsel %vm691, %v582, %v755
    %v820 = vsel %vm692, %v585, %v756
    %v821 = vsel %vm693, %v588, %v757
    %v822 = vsel %vm694, %v591, %v758
    %v823 = vsel %vm695, %v594, %v759
    %v824 = vsel %vm696, %v597, %v760
    %v825 = vsel %vm697, %v600, %v761
    %v826 = vsel %vm698, %v603, %v762
    %v827 = vsel %vm699, %v606, %v763
    %v828 = vsel %vm700, %v609, %v764
    %v829 = vsel %vm701, %v612, %v765
    %v830 = vsel %vm702, %v615, %v766
    %v831 = vsel %vm703, %v618, %v767
    %v832 = vsel %vm704, %v621, %v768
    %v833 = vsel %vm705, %v624, %v769
    %v834 = vsel %vm706, %v627, %v770
    %v835 = vsel %vm707, %v630, %v771
    %v836 = vsel %vm708, %v633, %v772
    %v837 = vsel %vm709, %v636, %v773
    %v838 = vsel %vm710, %v639, %v774
    %v839 = vsel %vm711, %v642, %v775
    %v840 = vsel %vm712, %v645, %v776
    %v841 = vsel %vm713, %v648, %v777
    %s842 = scalar_lea.vmem [#allocation5], 256
    %v843 = vld [vmem:[%s842] sm:$0xff]
    %v844 = vld [vmem:[%s842 + $0x8] sm:$0xff]
    %v845 = vld [vmem:[%s842 + $0x10] sm:$0xff]
    %v846 = vld [vmem:[%s842 + $0x18] sm:$0xff]
    %v847 = vld [vmem:[%s842 + $0x20] sm:$0xff]
    %v848 = vld [vmem:[%s842 + $0x28] sm:$0xff]
    %v849 = vld [vmem:[%s842 + $0x30] sm:$0xff]
    %v850 = vld [vmem:[%s842 + $0x38] sm:$0xff]
    %v851 = vld [vmem:[%s842 + $0x40] sm:$0xff]
    %v852 = vld [vmem:[%s842 + $0x48] sm:$0xff]
    %v853 = vld [vmem:[%s842 + $0x50] sm:$0xff]
    %v854 = vld [vmem:[%s842 + $0x58] sm:$0xff]
    %v855 = vld [vmem:[%s842 + $0x60] sm:$0xff]
    %v856 = vld [vmem:[%s842 + $0x68] sm:$0xff]
    %v857 = vld [vmem:[%s842 + $0x70] sm:$0xff]
    %v858 = vld [vmem:[%s842 + $0x78] sm:$0xff]
    %s859 = scalar_lea.vmem [#allocation7], 2
    %v860 = vld [vmem:[%s859] sm:$0x1]
    %v862 = vperm.slane %v860, 0
    %864 = vmatpush.msra.mxu0 %v858
    %865 = vmatpush.msra.mxu0 %v857
    %866 = vmatpush.msra.mxu0 %v856
    %867 = vmatpush.msra.mxu0 %v855
    %868 = vmatpush.msra.mxu0 %v854
    %869 = vmatpush.msra.mxu0 %v853
    %870 = vmatpush.msra.mxu0 %v852
    %871 = vmatpush.msra.mxu0 %v851
    %872 = vmatpush.msra.mxu0 %v850
    %873 = vmatpush.msra.mxu0 %v849
    %874 = vmatpush.msra.mxu0 %v848
    %875 = vmatpush.msra.mxu0 %v847
    %876 = vmatpush.msra.mxu0 %v846
    %877 = vmatpush.msra.mxu0 %v845
    %878 = vmatpush.msra.mxu0 %v844
    %879 = vmatpush.msra.mxu0 %v843
    %880 = vmatmul.f32.gmra.mxu0 %v778
    %v881 = vpop.f32.mrf.mxu0
    %v882 = vadd.f32 %v862, %v881
    %883 = vmatmul.f32.gmra.mxu0 %v779
    %v884 = vpop.f32.mrf.mxu0
    %v885 = vadd.f32 %v862, %v884
    %886 = vmatmul.f32.gmra.mxu0 %v780
    %v887 = vpop.f32.mrf.mxu0
    %v888 = vadd.f32 %v862, %v887
    %889 = vmatmul.f32.gmra.mxu0 %v781
    %v890 = vpop.f32.mrf.mxu0
    %v891 = vadd.f32 %v862, %v890
    %892 = vmatmul.f32.gmra.mxu0 %v782
    %v893 = vpop.f32.mrf.mxu0
    %v894 = vadd.f32 %v862, %v893
    %895 = vmatmul.f32.gmra.mxu0 %v783
    %v896 = vpop.f32.mrf.mxu0
    %v897 = vadd.f32 %v862, %v896
    %898 = vmatmul.f32.gmra.mxu0 %v784
    %v899 = vpop.f32.mrf.mxu0
    %v900 = vadd.f32 %v862, %v899
    %901 = vmatmul.f32.gmra.mxu0 %v785
    %v902 = vpop.f32.mrf.mxu0
    %v903 = vadd.f32 %v862, %v902
    %904 = vmatmul.f32.gmra.mxu0 %v786
    %v905 = vpop.f32.mrf.mxu0
    %v906 = vadd.f32 %v862, %v905
    %907 = vmatmul.f32.gmra.mxu0 %v787
    %v908 = vpop.f32.mrf.mxu0
    %v909 = vadd.f32 %v862, %v908
    %910 = vmatmul.f32.gmra.mxu0 %v788
    %v911 = vpop.f32.mrf.mxu0
    %v912 = vadd.f32 %v862, %v911
    %913 = vmatmul.f32.gmra.mxu0 %v789
    %v914 = vpop.f32.mrf.mxu0
    %v915 = vadd.f32 %v862, %v914
    %916 = vmatmul.f32.gmra.mxu0 %v790
    %v917 = vpop.f32.mrf.mxu0
    %v918 = vadd.f32 %v862, %v917
    %919 = vmatmul.f32.gmra.mxu0 %v791
    %v920 = vpop.f32.mrf.mxu0
    %v921 = vadd.f32 %v862, %v920
    %922 = vmatmul.f32.gmra.mxu0 %v792
    %v923 = vpop.f32.mrf.mxu0
    %v924 = vadd.f32 %v862, %v923
    %925 = vmatmul.f32.gmra.mxu0 %v793
    %v926 = vpop.f32.mrf.mxu0
    %v927 = vadd.f32 %v862, %v926
    %928 = vmatmul.f32.gmra.mxu0 %v794
    %v929 = vpop.f32.mrf.mxu0
    %v930 = vadd.f32 %v862, %v929
    %931 = vmatmul.f32.gmra.mxu0 %v795
    %v932 = vpop.f32.mrf.mxu0
    %v933 = vadd.f32 %v862, %v932
    %934 = vmatmul.f32.gmra.mxu0 %v796
    %v935 = vpop.f32.mrf.mxu0
    %v936 = vadd.f32 %v862, %v935
    %937 = vmatmul.f32.gmra.mxu0 %v797
    %v938 = vpop.f32.mrf.mxu0
    %v939 = vadd.f32 %v862, %v938
    %940 = vmatmul.f32.gmra.mxu0 %v798
    %v941 = vpop.f32.mrf.mxu0
    %v942 = vadd.f32 %v862, %v941
    %943 = vmatmul.f32.gmra.mxu0 %v799
    %v944 = vpop.f32.mrf.mxu0
    %v945 = vadd.f32 %v862, %v944
    %946 = vmatmul.f32.gmra.mxu0 %v800
    %v947 = vpop.f32.mrf.mxu0
    %v948 = vadd.f32 %v862, %v947
    %949 = vmatmul.f32.gmra.mxu0 %v801
    %v950 = vpop.f32.mrf.mxu0
    %v951 = vadd.f32 %v862, %v950
    %952 = vmatmul.f32.gmra.mxu0 %v802
    %v953 = vpop.f32.mrf.mxu0
    %v954 = vadd.f32 %v862, %v953
    %955 = vmatmul.f32.gmra.mxu0 %v803
    %v956 = vpop.f32.mrf.mxu0
    %v957 = vadd.f32 %v862, %v956
    %958 = vmatmul.f32.gmra.mxu0 %v804
    %v959 = vpop.f32.mrf.mxu0
    %v960 = vadd.f32 %v862, %v959
    %961 = vmatmul.f32.gmra.mxu0 %v805
    %v962 = vpop.f32.mrf.mxu0
    %v963 = vadd.f32 %v862, %v962
    %964 = vmatmul.f32.gmra.mxu0 %v806
    %v965 = vpop.f32.mrf.mxu0
    %v966 = vadd.f32 %v862, %v965
    %967 = vmatmul.f32.gmra.mxu0 %v807
    %v968 = vpop.f32.mrf.mxu0
    %v969 = vadd.f32 %v862, %v968
    %970 = vmatmul.f32.gmra.mxu0 %v808
    %v971 = vpop.f32.mrf.mxu0
    %v972 = vadd.f32 %v862, %v971
    %973 = vmatmul.f32.gmra.mxu0 %v809
    %v974 = vpop.f32.mrf.mxu0
    %v975 = vadd.f32 %v862, %v974
    %976 = vmatmul.f32.gmra.mxu0 %v810
    %v977 = vpop.f32.mrf.mxu0
    %v978 = vadd.f32 %v862, %v977
    %979 = vmatmul.f32.gmra.mxu0 %v811
    %v980 = vpop.f32.mrf.mxu0
    %v981 = vadd.f32 %v862, %v980
    %982 = vmatmul.f32.gmra.mxu0 %v812
    %v983 = vpop.f32.mrf.mxu0
    %v984 = vadd.f32 %v862, %v983
    %985 = vmatmul.f32.gmra.mxu0 %v813
    %v986 = vpop.f32.mrf.mxu0
    %v987 = vadd.f32 %v862, %v986
    %988 = vmatmul.f32.gmra.mxu0 %v814
    %v989 = vpop.f32.mrf.mxu0
    %v990 = vadd.f32 %v862, %v989
    %991 = vmatmul.f32.gmra.mxu0 %v815
    %v992 = vpop.f32.mrf.mxu0
    %v993 = vadd.f32 %v862, %v992
    %994 = vmatmul.f32.gmra.mxu0 %v816
    %v995 = vpop.f32.mrf.mxu0
    %v996 = vadd.f32 %v862, %v995
    %997 = vmatmul.f32.gmra.mxu0 %v817
    %v998 = vpop.f32.mrf.mxu0
    %v999 = vadd.f32 %v862, %v998
    %1000 = vmatmul.f32.gmra.mxu0 %v818
    %v1001 = vpop.f32.mrf.mxu0
    %v1002 = vadd.f32 %v862, %v1001
    %1003 = vmatmul.f32.gmra.mxu0 %v819
    %v1004 = vpop.f32.mrf.mxu0
    %v1005 = vadd.f32 %v862, %v1004
    %1006 = vmatmul.f32.gmra.mxu0 %v820
    %v1007 = vpop.f32.mrf.mxu0
    %v1008 = vadd.f32 %v862, %v1007
    %1009 = vmatmul.f32.gmra.mxu0 %v821
    %v1010 = vpop.f32.mrf.mxu0
    %v1011 = vadd.f32 %v862, %v1010
    %1012 = vmatmul.f32.gmra.mxu0 %v822
    %v1013 = vpop.f32.mrf.mxu0
    %v1014 = vadd.f32 %v862, %v1013
    %1015 = vmatmul.f32.gmra.mxu0 %v823
    %v1016 = vpop.f32.mrf.mxu0
    %v1017 = vadd.f32 %v862, %v1016
    %1018 = vmatmul.f32.gmra.mxu0 %v824
    %v1019 = vpop.f32.mrf.mxu0
    %v1020 = vadd.f32 %v862, %v1019
    %1021 = vmatmul.f32.gmra.mxu0 %v825
    %v1022 = vpop.f32.mrf.mxu0
    %v1023 = vadd.f32 %v862, %v1022
    %1024 = vmatmul.f32.gmra.mxu0 %v826
    %v1025 = vpop.f32.mrf.mxu0
    %v1026 = vadd.f32 %v862, %v1025
    %1027 = vmatmul.f32.gmra.mxu0 %v827
    %v1028 = vpop.f32.mrf.mxu0
    %v1029 = vadd.f32 %v862, %v1028
    %1030 = vmatmul.f32.gmra.mxu0 %v828
    %v1031 = vpop.f32.mrf.mxu0
    %v1032 = vadd.f32 %v862, %v1031
    %1033 = vmatmul.f32.gmra.mxu0 %v829
    %v1034 = vpop.f32.mrf.mxu0
    %v1035 = vadd.f32 %v862, %v1034
    %1036 = vmatmul.f32.gmra.mxu0 %v830
    %v1037 = vpop.f32.mrf.mxu0
    %v1038 = vadd.f32 %v862, %v1037
    %1039 = vmatmul.f32.gmra.mxu0 %v831
    %v1040 = vpop.f32.mrf.mxu0
    %v1041 = vadd.f32 %v862, %v1040
    %1042 = vmatmul.f32.gmra.mxu0 %v832
    %v1043 = vpop.f32.mrf.mxu0
    %v1044 = vadd.f32 %v862, %v1043
    %1045 = vmatmul.f32.gmra.mxu0 %v833
    %v1046 = vpop.f32.mrf.mxu0
    %v1047 = vadd.f32 %v862, %v1046
    %1048 = vmatmul.f32.gmra.mxu0 %v834
    %v1049 = vpop.f32.mrf.mxu0
    %v1050 = vadd.f32 %v862, %v1049
    %1051 = vmatmul.f32.gmra.mxu0 %v835
    %v1052 = vpop.f32.mrf.mxu0
    %v1053 = vadd.f32 %v862, %v1052
    %1054 = vmatmul.f32.gmra.mxu0 %v836
    %v1055 = vpop.f32.mrf.mxu0
    %v1056 = vadd.f32 %v862, %v1055
    %1057 = vmatmul.f32.gmra.mxu0 %v837
    %v1058 = vpop.f32.mrf.mxu0
    %v1059 = vadd.f32 %v862, %v1058
    %1060 = vmatmul.f32.gmra.mxu0 %v838
    %v1061 = vpop.f32.mrf.mxu0
    %v1062 = vadd.f32 %v862, %v1061
    %1063 = vmatmul.f32.gmra.mxu0 %v839
    %v1064 = vpop.f32.mrf.mxu0
    %v1065 = vadd.f32 %v862, %v1064
    %1066 = vmatmul.f32.gmra.mxu0 %v840
    %v1067 = vpop.f32.mrf.mxu0
    %v1068 = vadd.f32 %v862, %v1067
    %1069 = vmatmul.f32.gmra.mxu0 %v841
    %v1070 = vpop.f32.mrf.mxu0
    %v1071 = vadd.f32 %v862, %v1070
    %1072 = vdwg.mxu0
    %vm1073 = vcmp.gt.f32.partialorder %v882, 0.0
    %vm1074 = vcmp.gt.f32.partialorder %v885, 0.0
    %vm1075 = vcmp.gt.f32.partialorder %v888, 0.0
    %vm1076 = vcmp.gt.f32.partialorder %v891, 0.0
    %vm1077 = vcmp.gt.f32.partialorder %v894, 0.0
    %vm1078 = vcmp.gt.f32.partialorder %v897, 0.0
    %vm1079 = vcmp.gt.f32.partialorder %v900, 0.0
    %vm1080 = vcmp.gt.f32.partialorder %v903, 0.0
    %vm1081 = vcmp.gt.f32.partialorder %v906, 0.0
    %vm1082 = vcmp.gt.f32.partialorder %v909, 0.0
    %vm1083 = vcmp.gt.f32.partialorder %v912, 0.0
    %vm1084 = vcmp.gt.f32.partialorder %v915, 0.0
    %vm1085 = vcmp.gt.f32.partialorder %v918, 0.0
    %vm1086 = vcmp.gt.f32.partialorder %v921, 0.0
    %vm1087 = vcmp.gt.f32.partialorder %v924, 0.0
    %vm1088 = vcmp.gt.f32.partialorder %v927, 0.0
    %vm1089 = vcmp.gt.f32.partialorder %v930, 0.0
    %vm1090 = vcmp.gt.f32.partialorder %v933, 0.0
    %vm1091 = vcmp.gt.f32.partialorder %v936, 0.0
    %vm1092 = vcmp.gt.f32.partialorder %v939, 0.0
    %vm1093 = vcmp.gt.f32.partialorder %v942, 0.0
    %vm1094 = vcmp.gt.f32.partialorder %v945, 0.0
    %vm1095 = vcmp.gt.f32.partialorder %v948, 0.0
    %vm1096 = vcmp.gt.f32.partialorder %v951, 0.0
    %vm1097 = vcmp.gt.f32.partialorder %v954, 0.0
    %vm1098 = vcmp.gt.f32.partialorder %v957, 0.0
    %vm1099 = vcmp.gt.f32.partialorder %v960, 0.0
    %vm1100 = vcmp.gt.f32.partialorder %v963, 0.0
    %vm1101 = vcmp.gt.f32.partialorder %v966, 0.0
    %vm1102 = vcmp.gt.f32.partialorder %v969, 0.0
    %vm1103 = vcmp.gt.f32.partialorder %v972, 0.0
    %vm1104 = vcmp.gt.f32.partialorder %v975, 0.0
    %vm1105 = vcmp.gt.f32.partialorder %v978, 0.0
    %vm1106 = vcmp.gt.f32.partialorder %v981, 0.0
    %vm1107 = vcmp.gt.f32.partialorder %v984, 0.0
    %vm1108 = vcmp.gt.f32.partialorder %v987, 0.0
    %vm1109 = vcmp.gt.f32.partialorder %v990, 0.0
    %vm1110 = vcmp.gt.f32.partialorder %v993, 0.0
    %vm1111 = vcmp.gt.f32.partialorder %v996, 0.0
    %vm1112 = vcmp.gt.f32.partialorder %v999, 0.0
    %vm1113 = vcmp.gt.f32.partialorder %v1002, 0.0
    %vm1114 = vcmp.gt.f32.partialorder %v1005, 0.0
    %vm1115 = vcmp.gt.f32.partialorder %v1008, 0.0
    %vm1116 = vcmp.gt.f32.partialorder %v1011, 0.0
    %vm1117 = vcmp.gt.f32.partialorder %v1014, 0.0
    %vm1118 = vcmp.gt.f32.partialorder %v1017, 0.0
    %vm1119 = vcmp.gt.f32.partialorder %v1020, 0.0
    %vm1120 = vcmp.gt.f32.partialorder %v1023, 0.0
    %vm1121 = vcmp.gt.f32.partialorder %v1026, 0.0
    %vm1122 = vcmp.gt.f32.partialorder %v1029, 0.0
    %vm1123 = vcmp.gt.f32.partialorder %v1032, 0.0
    %vm1124 = vcmp.gt.f32.partialorder %v1035, 0.0
    %vm1125 = vcmp.gt.f32.partialorder %v1038, 0.0
    %vm1126 = vcmp.gt.f32.partialorder %v1041, 0.0
    %vm1127 = vcmp.gt.f32.partialorder %v1044, 0.0
    %vm1128 = vcmp.gt.f32.partialorder %v1047, 0.0
    %vm1129 = vcmp.gt.f32.partialorder %v1050, 0.0
    %vm1130 = vcmp.gt.f32.partialorder %v1053, 0.0
    %vm1131 = vcmp.gt.f32.partialorder %v1056, 0.0
    %vm1132 = vcmp.gt.f32.partialorder %v1059, 0.0
    %vm1133 = vcmp.gt.f32.partialorder %v1062, 0.0
    %vm1134 = vcmp.gt.f32.partialorder %v1065, 0.0
    %vm1135 = vcmp.gt.f32.partialorder %v1068, 0.0
    %vm1136 = vcmp.gt.f32.partialorder %v1071, 0.0
    %v1137 = vmul.f32 %v882, 0.2
    %v1138 = vmul.f32 %v885, 0.2
    %v1139 = vmul.f32 %v888, 0.2
    %v1140 = vmul.f32 %v891, 0.2
    %v1141 = vmul.f32 %v894, 0.2
    %v1142 = vmul.f32 %v897, 0.2
    %v1143 = vmul.f32 %v900, 0.2
    %v1144 = vmul.f32 %v903, 0.2
    %v1145 = vmul.f32 %v906, 0.2
    %v1146 = vmul.f32 %v909, 0.2
    %v1147 = vmul.f32 %v912, 0.2
    %v1148 = vmul.f32 %v915, 0.2
    %v1149 = vmul.f32 %v918, 0.2
    %v1150 = vmul.f32 %v921, 0.2
    %v1151 = vmul.f32 %v924, 0.2
    %v1152 = vmul.f32 %v927, 0.2
    %v1153 = vmul.f32 %v930, 0.2
    %v1154 = vmul.f32 %v933, 0.2
    %v1155 = vmul.f32 %v936, 0.2
    %v1156 = vmul.f32 %v939, 0.2
    %v1157 = vmul.f32 %v942, 0.2
    %v1158 = vmul.f32 %v945, 0.2
    %v1159 = vmul.f32 %v948, 0.2
    %v1160 = vmul.f32 %v951, 0.2
    %v1161 = vmul.f32 %v954, 0.2
    %v1162 = vmul.f32 %v957, 0.2
    %v1163 = vmul.f32 %v960, 0.2
    %v1164 = vmul.f32 %v963, 0.2
    %v1165 = vmul.f32 %v966, 0.2
    %v1166 = vmul.f32 %v969, 0.2
    %v1167 = vmul.f32 %v972, 0.2
    %v1168 = vmul.f32 %v975, 0.2
    %v1169 = vmul.f32 %v978, 0.2
    %v1170 = vmul.f32 %v981, 0.2
    %v1171 = vmul.f32 %v984, 0.2
    %v1172 = vmul.f32 %v987, 0.2
    %v1173 = vmul.f32 %v990, 0.2
    %v1174 = vmul.f32 %v993, 0.2
    %v1175 = vmul.f32 %v996, 0.2
    %v1176 = vmul.f32 %v999, 0.2
    %v1177 = vmul.f32 %v1002, 0.2
    %v1178 = vmul.f32 %v1005, 0.2
    %v1179 = vmul.f32 %v1008, 0.2
    %v1180 = vmul.f32 %v1011, 0.2
    %v1181 = vmul.f32 %v1014, 0.2
    %v1182 = vmul.f32 %v1017, 0.2
    %v1183 = vmul.f32 %v1020, 0.2
    %v1184 = vmul.f32 %v1023, 0.2
    %v1185 = vmul.f32 %v1026, 0.2
    %v1186 = vmul.f32 %v1029, 0.2
    %v1187 = vmul.f32 %v1032, 0.2
    %v1188 = vmul.f32 %v1035, 0.2
    %v1189 = vmul.f32 %v1038, 0.2
    %v1190 = vmul.f32 %v1041, 0.2
    %v1191 = vmul.f32 %v1044, 0.2
    %v1192 = vmul.f32 %v1047, 0.2
    %v1193 = vmul.f32 %v1050, 0.2
    %v1194 = vmul.f32 %v1053, 0.2
    %v1195 = vmul.f32 %v1056, 0.2
    %v1196 = vmul.f32 %v1059, 0.2
    %v1197 = vmul.f32 %v1062, 0.2
    %v1198 = vmul.f32 %v1065, 0.2
    %v1199 = vmul.f32 %v1068, 0.2
    %v1200 = vmul.f32 %v1071, 0.2
    %v1201 = vsel %vm1073, %v882, %v1137
    %v1202 = vsel %vm1074, %v885, %v1138
    %v1203 = vsel %vm1075, %v888, %v1139
    %v1204 = vsel %vm1076, %v891, %v1140
    %v1205 = vsel %vm1077, %v894, %v1141
    %v1206 = vsel %vm1078, %v897, %v1142
    %v1207 = vsel %vm1079, %v900, %v1143
    %v1208 = vsel %vm1080, %v903, %v1144
    %v1209 = vsel %vm1081, %v906, %v1145
    %v1210 = vsel %vm1082, %v909, %v1146
    %v1211 = vsel %vm1083, %v912, %v1147
    %v1212 = vsel %vm1084, %v915, %v1148
    %v1213 = vsel %vm1085, %v918, %v1149
    %v1214 = vsel %vm1086, %v921, %v1150
    %v1215 = vsel %vm1087, %v924, %v1151
    %v1216 = vsel %vm1088, %v927, %v1152
    %v1217 = vsel %vm1089, %v930, %v1153
    %v1218 = vsel %vm1090, %v933, %v1154
    %v1219 = vsel %vm1091, %v936, %v1155
    %v1220 = vsel %vm1092, %v939, %v1156
    %v1221 = vsel %vm1093, %v942, %v1157
    %v1222 = vsel %vm1094, %v945, %v1158
    %v1223 = vsel %vm1095, %v948, %v1159
    %v1224 = vsel %vm1096, %v951, %v1160
    %v1225 = vsel %vm1097, %v954, %v1161
    %v1226 = vsel %vm1098, %v957, %v1162
    %v1227 = vsel %vm1099, %v960, %v1163
    %v1228 = vsel %vm1100, %v963, %v1164
    %v1229 = vsel %vm1101, %v966, %v1165
    %v1230 = vsel %vm1102, %v969, %v1166
    %v1231 = vsel %vm1103, %v972, %v1167
    %v1232 = vsel %vm1104, %v975, %v1168
    %v1233 = vsel %vm1105, %v978, %v1169
    %v1234 = vsel %vm1106, %v981, %v1170
    %v1235 = vsel %vm1107, %v984, %v1171
    %v1236 = vsel %vm1108, %v987, %v1172
    %v1237 = vsel %vm1109, %v990, %v1173
    %v1238 = vsel %vm1110, %v993, %v1174
    %v1239 = vsel %vm1111, %v996, %v1175
    %v1240 = vsel %vm1112, %v999, %v1176
    %v1241 = vsel %vm1113, %v1002, %v1177
    %v1242 = vsel %vm1114, %v1005, %v1178
    %v1243 = vsel %vm1115, %v1008, %v1179
    %v1244 = vsel %vm1116, %v1011, %v1180
    %v1245 = vsel %vm1117, %v1014, %v1181
    %v1246 = vsel %vm1118, %v1017, %v1182
    %v1247 = vsel %vm1119, %v1020, %v1183
    %v1248 = vsel %vm1120, %v1023, %v1184
    %v1249 = vsel %vm1121, %v1026, %v1185
    %v1250 = vsel %vm1122, %v1029, %v1186
    %v1251 = vsel %vm1123, %v1032, %v1187
    %v1252 = vsel %vm1124, %v1035, %v1188
    %v1253 = vsel %vm1125, %v1038, %v1189
    %v1254 = vsel %vm1126, %v1041, %v1190
    %v1255 = vsel %vm1127, %v1044, %v1191
    %v1256 = vsel %vm1128, %v1047, %v1192
    %v1257 = vsel %vm1129, %v1050, %v1193
    %v1258 = vsel %vm1130, %v1053, %v1194
    %v1259 = vsel %vm1131, %v1056, %v1195
    %v1260 = vsel %vm1132, %v1059, %v1196
    %v1261 = vsel %vm1133, %v1062, %v1197
    %v1262 = vsel %vm1134, %v1065, %v1198
    %v1263 = vsel %vm1135, %v1068, %v1199
    %v1264 = vsel %vm1136, %v1071, %v1200
    %s1265 = scalar_lea.vmem [#allocation5], 384
    %v1266 = vld [vmem:[%s1265] sm:$0xff]
    %v1267 = vld [vmem:[%s1265 + $0x8] sm:$0xff]
    %v1268 = vld [vmem:[%s1265 + $0x10] sm:$0xff]
    %v1269 = vld [vmem:[%s1265 + $0x18] sm:$0xff]
    %v1270 = vld [vmem:[%s1265 + $0x20] sm:$0xff]
    %v1271 = vld [vmem:[%s1265 + $0x28] sm:$0xff]
    %v1272 = vld [vmem:[%s1265 + $0x30] sm:$0xff]
    %v1273 = vld [vmem:[%s1265 + $0x38] sm:$0xff]
    %v1274 = vld [vmem:[%s1265 + $0x40] sm:$0xff]
    %v1275 = vld [vmem:[%s1265 + $0x48] sm:$0xff]
    %v1276 = vld [vmem:[%s1265 + $0x50] sm:$0xff]
    %v1277 = vld [vmem:[%s1265 + $0x58] sm:$0xff]
    %v1278 = vld [vmem:[%s1265 + $0x60] sm:$0xff]
    %v1279 = vld [vmem:[%s1265 + $0x68] sm:$0xff]
    %v1280 = vld [vmem:[%s1265 + $0x70] sm:$0xff]
    %v1281 = vld [vmem:[%s1265 + $0x78] sm:$0xff]
    %s1282 = scalar_lea.vmem [#allocation7], 3
    %v1283 = vld [vmem:[%s1282] sm:$0x1]
    %v1285 = vperm.slane %v1283, 0
    %1287 = vmatpush.msra.mxu0 %v1281
    %1288 = vmatpush.msra.mxu0 %v1280
    %1289 = vmatpush.msra.mxu0 %v1279
    %1290 = vmatpush.msra.mxu0 %v1278
    %1291 = vmatpush.msra.mxu0 %v1277
    %1292 = vmatpush.msra.mxu0 %v1276
    %1293 = vmatpush.msra.mxu0 %v1275
    %1294 = vmatpush.msra.mxu0 %v1274
    %1295 = vmatpush.msra.mxu0 %v1273
    %1296 = vmatpush.msra.mxu0 %v1272
    %1297 = vmatpush.msra.mxu0 %v1271
    %1298 = vmatpush.msra.mxu0 %v1270
    %1299 = vmatpush.msra.mxu0 %v1269
    %1300 = vmatpush.msra.mxu0 %v1268
    %1301 = vmatpush.msra.mxu0 %v1267
    %1302 = vmatpush.msra.mxu0 %v1266
    %1303 = vmatmul.f32.gmra.mxu0 %v1201
    %v1304 = vpop.f32.mrf.mxu0
    %v1305 = vadd.f32 %v1285, %v1304
    %1306 = vmatmul.f32.gmra.mxu0 %v1202
    %v1307 = vpop.f32.mrf.mxu0
    %v1308 = vadd.f32 %v1285, %v1307
    %1309 = vmatmul.f32.gmra.mxu0 %v1203
    %v1310 = vpop.f32.mrf.mxu0
    %v1311 = vadd.f32 %v1285, %v1310
    %1312 = vmatmul.f32.gmra.mxu0 %v1204
    %v1313 = vpop.f32.mrf.mxu0
    %v1314 = vadd.f32 %v1285, %v1313
    %1315 = vmatmul.f32.gmra.mxu0 %v1205
    %v1316 = vpop.f32.mrf.mxu0
    %v1317 = vadd.f32 %v1285, %v1316
    %1318 = vmatmul.f32.gmra.mxu0 %v1206
    %v1319 = vpop.f32.mrf.mxu0
    %v1320 = vadd.f32 %v1285, %v1319
    %1321 = vmatmul.f32.gmra.mxu0 %v1207
    %v1322 = vpop.f32.mrf.mxu0
    %v1323 = vadd.f32 %v1285, %v1322
    %1324 = vmatmul.f32.gmra.mxu0 %v1208
    %v1325 = vpop.f32.mrf.mxu0
    %v1326 = vadd.f32 %v1285, %v1325
    %1327 = vmatmul.f32.gmra.mxu0 %v1209
    %v1328 = vpop.f32.mrf.mxu0
    %v1329 = vadd.f32 %v1285, %v1328
    %1330 = vmatmul.f32.gmra.mxu0 %v1210
    %v1331 = vpop.f32.mrf.mxu0
    %v1332 = vadd.f32 %v1285, %v1331
    %1333 = vmatmul.f32.gmra.mxu0 %v1211
    %v1334 = vpop.f32.mrf.mxu0
    %v1335 = vadd.f32 %v1285, %v1334
    %1336 = vmatmul.f32.gmra.mxu0 %v1212
    %v1337 = vpop.f32.mrf.mxu0
    %v1338 = vadd.f32 %v1285, %v1337
    %1339 = vmatmul.f32.gmra.mxu0 %v1213
    %v1340 = vpop.f32.mrf.mxu0
    %v1341 = vadd.f32 %v1285, %v1340
    %1342 = vmatmul.f32.gmra.mxu0 %v1214
    %v1343 = vpop.f32.mrf.mxu0
    %v1344 = vadd.f32 %v1285, %v1343
    %1345 = vmatmul.f32.gmra.mxu0 %v1215
    %v1346 = vpop.f32.mrf.mxu0
    %v1347 = vadd.f32 %v1285, %v1346
    %1348 = vmatmul.f32.gmra.mxu0 %v1216
    %v1349 = vpop.f32.mrf.mxu0
    %v1350 = vadd.f32 %v1285, %v1349
    %1351 = vmatmul.f32.gmra.mxu0 %v1217
    %v1352 = vpop.f32.mrf.mxu0
    %v1353 = vadd.f32 %v1285, %v1352
    %1354 = vmatmul.f32.gmra.mxu0 %v1218
    %v1355 = vpop.f32.mrf.mxu0
    %v1356 = vadd.f32 %v1285, %v1355
    %1357 = vmatmul.f32.gmra.mxu0 %v1219
    %v1358 = vpop.f32.mrf.mxu0
    %v1359 = vadd.f32 %v1285, %v1358
    %1360 = vmatmul.f32.gmra.mxu0 %v1220
    %v1361 = vpop.f32.mrf.mxu0
    %v1362 = vadd.f32 %v1285, %v1361
    %1363 = vmatmul.f32.gmra.mxu0 %v1221
    %v1364 = vpop.f32.mrf.mxu0
    %v1365 = vadd.f32 %v1285, %v1364
    %1366 = vmatmul.f32.gmra.mxu0 %v1222
    %v1367 = vpop.f32.mrf.mxu0
    %v1368 = vadd.f32 %v1285, %v1367
    %1369 = vmatmul.f32.gmra.mxu0 %v1223
    %v1370 = vpop.f32.mrf.mxu0
    %v1371 = vadd.f32 %v1285, %v1370
    %1372 = vmatmul.f32.gmra.mxu0 %v1224
    %v1373 = vpop.f32.mrf.mxu0
    %v1374 = vadd.f32 %v1285, %v1373
    %1375 = vmatmul.f32.gmra.mxu0 %v1225
    %v1376 = vpop.f32.mrf.mxu0
    %v1377 = vadd.f32 %v1285, %v1376
    %1378 = vmatmul.f32.gmra.mxu0 %v1226
    %v1379 = vpop.f32.mrf.mxu0
    %v1380 = vadd.f32 %v1285, %v1379
    %1381 = vmatmul.f32.gmra.mxu0 %v1227
    %v1382 = vpop.f32.mrf.mxu0
    %v1383 = vadd.f32 %v1285, %v1382
    %1384 = vmatmul.f32.gmra.mxu0 %v1228
    %v1385 = vpop.f32.mrf.mxu0
    %v1386 = vadd.f32 %v1285, %v1385
    %1387 = vmatmul.f32.gmra.mxu0 %v1229
    %v1388 = vpop.f32.mrf.mxu0
    %v1389 = vadd.f32 %v1285, %v1388
    %1390 = vmatmul.f32.gmra.mxu0 %v1230
    %v1391 = vpop.f32.mrf.mxu0
    %v1392 = vadd.f32 %v1285, %v1391
    %1393 = vmatmul.f32.gmra.mxu0 %v1231
    %v1394 = vpop.f32.mrf.mxu0
    %v1395 = vadd.f32 %v1285, %v1394
    %1396 = vmatmul.f32.gmra.mxu0 %v1232
    %v1397 = vpop.f32.mrf.mxu0
    %v1398 = vadd.f32 %v1285, %v1397
    %1399 = vmatmul.f32.gmra.mxu0 %v1233
    %v1400 = vpop.f32.mrf.mxu0
    %v1401 = vadd.f32 %v1285, %v1400
    %1402 = vmatmul.f32.gmra.mxu0 %v1234
    %v1403 = vpop.f32.mrf.mxu0
    %v1404 = vadd.f32 %v1285, %v1403
    %1405 = vmatmul.f32.gmra.mxu0 %v1235
    %v1406 = vpop.f32.mrf.mxu0
    %v1407 = vadd.f32 %v1285, %v1406
    %1408 = vmatmul.f32.gmra.mxu0 %v1236
    %v1409 = vpop.f32.mrf.mxu0
    %v1410 = vadd.f32 %v1285, %v1409
    %1411 = vmatmul.f32.gmra.mxu0 %v1237
    %v1412 = vpop.f32.mrf.mxu0
    %v1413 = vadd.f32 %v1285, %v1412
    %1414 = vmatmul.f32.gmra.mxu0 %v1238
    %v1415 = vpop.f32.mrf.mxu0
    %v1416 = vadd.f32 %v1285, %v1415
    %1417 = vmatmul.f32.gmra.mxu0 %v1239
    %v1418 = vpop.f32.mrf.mxu0
    %v1419 = vadd.f32 %v1285, %v1418
    %1420 = vmatmul.f32.gmra.mxu0 %v1240
    %v1421 = vpop.f32.mrf.mxu0
    %v1422 = vadd.f32 %v1285, %v1421
    %1423 = vmatmul.f32.gmra.mxu0 %v1241
    %v1424 = vpop.f32.mrf.mxu0
    %v1425 = vadd.f32 %v1285, %v1424
    %1426 = vmatmul.f32.gmra.mxu0 %v1242
    %v1427 = vpop.f32.mrf.mxu0
    %v1428 = vadd.f32 %v1285, %v1427
    %1429 = vmatmul.f32.gmra.mxu0 %v1243
    %v1430 = vpop.f32.mrf.mxu0
    %v1431 = vadd.f32 %v1285, %v1430
    %1432 = vmatmul.f32.gmra.mxu0 %v1244
    %v1433 = vpop.f32.mrf.mxu0
    %v1434 = vadd.f32 %v1285, %v1433
    %1435 = vmatmul.f32.gmra.mxu0 %v1245
    %v1436 = vpop.f32.mrf.mxu0
    %v1437 = vadd.f32 %v1285, %v1436
    %1438 = vmatmul.f32.gmra.mxu0 %v1246
    %v1439 = vpop.f32.mrf.mxu0
    %v1440 = vadd.f32 %v1285, %v1439
    %1441 = vmatmul.f32.gmra.mxu0 %v1247
    %v1442 = vpop.f32.mrf.mxu0
    %v1443 = vadd.f32 %v1285, %v1442
    %1444 = vmatmul.f32.gmra.mxu0 %v1248
    %v1445 = vpop.f32.mrf.mxu0
    %v1446 = vadd.f32 %v1285, %v1445
    %1447 = vmatmul.f32.gmra.mxu0 %v1249
    %v1448 = vpop.f32.mrf.mxu0
    %v1449 = vadd.f32 %v1285, %v1448
    %1450 = vmatmul.f32.gmra.mxu0 %v1250
    %v1451 = vpop.f32.mrf.mxu0
    %v1452 = vadd.f32 %v1285, %v1451
    %1453 = vmatmul.f32.gmra.mxu0 %v1251
    %v1454 = vpop.f32.mrf.mxu0
    %v1455 = vadd.f32 %v1285, %v1454
    %1456 = vmatmul.f32.gmra.mxu0 %v1252
    %v1457 = vpop.f32.mrf.mxu0
    %v1458 = vadd.f32 %v1285, %v1457
    %1459 = vmatmul.f32.gmra.mxu0 %v1253
    %v1460 = vpop.f32.mrf.mxu0
    %v1461 = vadd.f32 %v1285, %v1460
    %1462 = vmatmul.f32.gmra.mxu0 %v1254
    %v1463 = vpop.f32.mrf.mxu0
    %v1464 = vadd.f32 %v1285, %v1463
    %1465 = vmatmul.f32.gmra.mxu0 %v1255
    %v1466 = vpop.f32.mrf.mxu0
    %v1467 = vadd.f32 %v1285, %v1466
    %1468 = vmatmul.f32.gmra.mxu0 %v1256
    %v1469 = vpop.f32.mrf.mxu0
    %v1470 = vadd.f32 %v1285, %v1469
    %1471 = vmatmul.f32.gmra.mxu0 %v1257
    %v1472 = vpop.f32.mrf.mxu0
    %v1473 = vadd.f32 %v1285, %v1472
    %1474 = vmatmul.f32.gmra.mxu0 %v1258
    %v1475 = vpop.f32.mrf.mxu0
    %v1476 = vadd.f32 %v1285, %v1475
    %1477 = vmatmul.f32.gmra.mxu0 %v1259
    %v1478 = vpop.f32.mrf.mxu0
    %v1479 = vadd.f32 %v1285, %v1478
    %1480 = vmatmul.f32.gmra.mxu0 %v1260
    %v1481 = vpop.f32.mrf.mxu0
    %v1482 = vadd.f32 %v1285, %v1481
    %1483 = vmatmul.f32.gmra.mxu0 %v1261
    %v1484 = vpop.f32.mrf.mxu0
    %v1485 = vadd.f32 %v1285, %v1484
    %1486 = vmatmul.f32.gmra.mxu0 %v1262
    %v1487 = vpop.f32.mrf.mxu0
    %v1488 = vadd.f32 %v1285, %v1487
    %1489 = vmatmul.f32.gmra.mxu0 %v1263
    %v1490 = vpop.f32.mrf.mxu0
    %v1491 = vadd.f32 %v1285, %v1490
    %1492 = vmatmul.f32.gmra.mxu0 %v1264
    %v1493 = vpop.f32.mrf.mxu0
    %v1494 = vadd.f32 %v1285, %v1493
    %1495 = vdwg.mxu0
    %vm1496 = vcmp.gt.f32.partialorder %v1305, 0.0
    %vm1497 = vcmp.gt.f32.partialorder %v1308, 0.0
    %vm1498 = vcmp.gt.f32.partialorder %v1311, 0.0
    %vm1499 = vcmp.gt.f32.partialorder %v1314, 0.0
    %vm1500 = vcmp.gt.f32.partialorder %v1317, 0.0
    %vm1501 = vcmp.gt.f32.partialorder %v1320, 0.0
    %vm1502 = vcmp.gt.f32.partialorder %v1323, 0.0
    %vm1503 = vcmp.gt.f32.partialorder %v1326, 0.0
    %vm1504 = vcmp.gt.f32.partialorder %v1329, 0.0
    %vm1505 = vcmp.gt.f32.partialorder %v1332, 0.0
    %vm1506 = vcmp.gt.f32.partialorder %v1335, 0.0
    %vm1507 = vcmp.gt.f32.partialorder %v1338, 0.0
    %vm1508 = vcmp.gt.f32.partialorder %v1341, 0.0
    %vm1509 = vcmp.gt.f32.partialorder %v1344, 0.0
    %vm1510 = vcmp.gt.f32.partialorder %v1347, 0.0
    %vm1511 = vcmp.gt.f32.partialorder %v1350, 0.0
    %vm1512 = vcmp.gt.f32.partialorder %v1353, 0.0
    %vm1513 = vcmp.gt.f32.partialorder %v1356, 0.0
    %vm1514 = vcmp.gt.f32.partialorder %v1359, 0.0
    %vm1515 = vcmp.gt.f32.partialorder %v1362, 0.0
    %vm1516 = vcmp.gt.f32.partialorder %v1365, 0.0
    %vm1517 = vcmp.gt.f32.partialorder %v1368, 0.0
    %vm1518 = vcmp.gt.f32.partialorder %v1371, 0.0
    %vm1519 = vcmp.gt.f32.partialorder %v1374, 0.0
    %vm1520 = vcmp.gt.f32.partialorder %v1377, 0.0
    %vm1521 = vcmp.gt.f32.partialorder %v1380, 0.0
    %vm1522 = vcmp.gt.f32.partialorder %v1383, 0.0
    %vm1523 = vcmp.gt.f32.partialorder %v1386, 0.0
    %vm1524 = vcmp.gt.f32.partialorder %v1389, 0.0
    %vm1525 = vcmp.gt.f32.partialorder %v1392, 0.0
    %vm1526 = vcmp.gt.f32.partialorder %v1395, 0.0
    %vm1527 = vcmp.gt.f32.partialorder %v1398, 0.0
    %vm1528 = vcmp.gt.f32.partialorder %v1401, 0.0
    %vm1529 = vcmp.gt.f32.partialorder %v1404, 0.0
    %vm1530 = vcmp.gt.f32.partialorder %v1407, 0.0
    %vm1531 = vcmp.gt.f32.partialorder %v1410, 0.0
    %vm1532 = vcmp.gt.f32.partialorder %v1413, 0.0
    %vm1533 = vcmp.gt.f32.partialorder %v1416, 0.0
    %vm1534 = vcmp.gt.f32.partialorder %v1419, 0.0
    %vm1535 = vcmp.gt.f32.partialorder %v1422, 0.0
    %vm1536 = vcmp.gt.f32.partialorder %v1425, 0.0
    %vm1537 = vcmp.gt.f32.partialorder %v1428, 0.0
    %vm1538 = vcmp.gt.f32.partialorder %v1431, 0.0
    %vm1539 = vcmp.gt.f32.partialorder %v1434, 0.0
    %vm1540 = vcmp.gt.f32.partialorder %v1437, 0.0
    %vm1541 = vcmp.gt.f32.partialorder %v1440, 0.0
    %vm1542 = vcmp.gt.f32.partialorder %v1443, 0.0
    %vm1543 = vcmp.gt.f32.partialorder %v1446, 0.0
    %vm1544 = vcmp.gt.f32.partialorder %v1449, 0.0
    %vm1545 = vcmp.gt.f32.partialorder %v1452, 0.0
    %vm1546 = vcmp.gt.f32.partialorder %v1455, 0.0
    %vm1547 = vcmp.gt.f32.partialorder %v1458, 0.0
    %vm1548 = vcmp.gt.f32.partialorder %v1461, 0.0
    %vm1549 = vcmp.gt.f32.partialorder %v1464, 0.0
    %vm1550 = vcmp.gt.f32.partialorder %v1467, 0.0
    %vm1551 = vcmp.gt.f32.partialorder %v1470, 0.0
    %vm1552 = vcmp.gt.f32.partialorder %v1473, 0.0
    %vm1553 = vcmp.gt.f32.partialorder %v1476, 0.0
    %vm1554 = vcmp.gt.f32.partialorder %v1479, 0.0
    %vm1555 = vcmp.gt.f32.partialorder %v1482, 0.0
    %vm1556 = vcmp.gt.f32.partialorder %v1485, 0.0
    %vm1557 = vcmp.gt.f32.partialorder %v1488, 0.0
    %vm1558 = vcmp.gt.f32.partialorder %v1491, 0.0
    %vm1559 = vcmp.gt.f32.partialorder %v1494, 0.0
    %v1560 = vmul.f32 %v1305, 0.2
    %v1561 = vmul.f32 %v1308, 0.2
    %v1562 = vmul.f32 %v1311, 0.2
    %v1563 = vmul.f32 %v1314, 0.2
    %v1564 = vmul.f32 %v1317, 0.2
    %v1565 = vmul.f32 %v1320, 0.2
    %v1566 = vmul.f32 %v1323, 0.2
    %v1567 = vmul.f32 %v1326, 0.2
    %v1568 = vmul.f32 %v1329, 0.2
    %v1569 = vmul.f32 %v1332, 0.2
    %v1570 = vmul.f32 %v1335, 0.2
    %v1571 = vmul.f32 %v1338, 0.2
    %v1572 = vmul.f32 %v1341, 0.2
    %v1573 = vmul.f32 %v1344, 0.2
    %v1574 = vmul.f32 %v1347, 0.2
    %v1575 = vmul.f32 %v1350, 0.2
    %v1576 = vmul.f32 %v1353, 0.2
    %v1577 = vmul.f32 %v1356, 0.2
    %v1578 = vmul.f32 %v1359, 0.2
    %v1579 = vmul.f32 %v1362, 0.2
    %v1580 = vmul.f32 %v1365, 0.2
    %v1581 = vmul.f32 %v1368, 0.2
    %v1582 = vmul.f32 %v1371, 0.2
    %v1583 = vmul.f32 %v1374, 0.2
    %v1584 = vmul.f32 %v1377, 0.2
    %v1585 = vmul.f32 %v1380, 0.2
    %v1586 = vmul.f32 %v1383, 0.2
    %v1587 = vmul.f32 %v1386, 0.2
    %v1588 = vmul.f32 %v1389, 0.2
    %v1589 = vmul.f32 %v1392, 0.2
    %v1590 = vmul.f32 %v1395, 0.2
    %v1591 = vmul.f32 %v1398, 0.2
    %v1592 = vmul.f32 %v1401, 0.2
    %v1593 = vmul.f32 %v1404, 0.2
    %v1594 = vmul.f32 %v1407, 0.2
    %v1595 = vmul.f32 %v1410, 0.2
    %v1596 = vmul.f32 %v1413, 0.2
    %v1597 = vmul.f32 %v1416, 0.2
    %v1598 = vmul.f32 %v1419, 0.2
    %v1599 = vmul.f32 %v1422, 0.2
    %v1600 = vmul.f32 %v1425, 0.2
    %v1601 = vmul.f32 %v1428, 0.2
    %v1602 = vmul.f32 %v1431, 0.2
    %v1603 = vmul.f32 %v1434, 0.2
    %v1604 = vmul.f32 %v1437, 0.2
    %v1605 = vmul.f32 %v1440, 0.2
    %v1606 = vmul.f32 %v1443, 0.2
    %v1607 = vmul.f32 %v1446, 0.2
    %v1608 = vmul.f32 %v1449, 0.2
    %v1609 = vmul.f32 %v1452, 0.2
    %v1610 = vmul.f32 %v1455, 0.2
    %v1611 = vmul.f32 %v1458, 0.2
    %v1612 = vmul.f32 %v1461, 0.2
    %v1613 = vmul.f32 %v1464, 0.2
    %v1614 = vmul.f32 %v1467, 0.2
    %v1615 = vmul.f32 %v1470, 0.2
    %v1616 = vmul.f32 %v1473, 0.2
    %v1617 = vmul.f32 %v1476, 0.2
    %v1618 = vmul.f32 %v1479, 0.2
    %v1619 = vmul.f32 %v1482, 0.2
    %v1620 = vmul.f32 %v1485, 0.2
    %v1621 = vmul.f32 %v1488, 0.2
    %v1622 = vmul.f32 %v1491, 0.2
    %v1623 = vmul.f32 %v1494, 0.2
    %v1624 = vsel %vm1496, %v1305, %v1560
    %v1625 = vsel %vm1497, %v1308, %v1561
    %v1626 = vsel %vm1498, %v1311, %v1562
    %v1627 = vsel %vm1499, %v1314, %v1563
    %v1628 = vsel %vm1500, %v1317, %v1564
    %v1629 = vsel %vm1501, %v1320, %v1565
    %v1630 = vsel %vm1502, %v1323, %v1566
    %v1631 = vsel %vm1503, %v1326, %v1567
    %v1632 = vsel %vm1504, %v1329, %v1568
    %v1633 = vsel %vm1505, %v1332, %v1569
    %v1634 = vsel %vm1506, %v1335, %v1570
    %v1635 = vsel %vm1507, %v1338, %v1571
    %v1636 = vsel %vm1508, %v1341, %v1572
    %v1637 = vsel %vm1509, %v1344, %v1573
    %v1638 = vsel %vm1510, %v1347, %v1574
    %v1639 = vsel %vm1511, %v1350, %v1575
    %v1640 = vsel %vm1512, %v1353, %v1576
    %v1641 = vsel %vm1513, %v1356, %v1577
    %v1642 = vsel %vm1514, %v1359, %v1578
    %v1643 = vsel %vm1515, %v1362, %v1579
    %v1644 = vsel %vm1516, %v1365, %v1580
    %v1645 = vsel %vm1517, %v1368, %v1581
    %v1646 = vsel %vm1518, %v1371, %v1582
    %v1647 = vsel %vm1519, %v1374, %v1583
    %v1648 = vsel %vm1520, %v1377, %v1584
    %v1649 = vsel %vm1521, %v1380, %v1585
    %v1650 = vsel %vm1522, %v1383, %v1586
    %v1651 = vsel %vm1523, %v1386, %v1587
    %v1652 = vsel %vm1524, %v1389, %v1588
    %v1653 = vsel %vm1525, %v1392, %v1589
    %v1654 = vsel %vm1526, %v1395, %v1590
    %v1655 = vsel %vm1527, %v1398, %v1591
    %v1656 = vsel %vm1528, %v1401, %v1592
    %v1657 = vsel %vm1529, %v1404, %v1593
    %v1658 = vsel %vm1530, %v1407, %v1594
    %v1659 = vsel %vm1531, %v1410, %v1595
    %v1660 = vsel %vm1532, %v1413, %v1596
    %v1661 = vsel %vm1533, %v1416, %v1597
    %v1662 = vsel %vm1534, %v1419, %v1598
    %v1663 = vsel %vm1535, %v1422, %v1599
    %v1664 = vsel %vm1536, %v1425, %v1600
    %v1665 = vsel %vm1537, %v1428, %v1601
    %v1666 = vsel %vm1538, %v1431, %v1602
    %v1667 = vsel %vm1539, %v1434, %v1603
    %v1668 = vsel %vm1540, %v1437, %v1604
    %v1669 = vsel %vm1541, %v1440, %v1605
    %v1670 = vsel %vm1542, %v1443, %v1606
    %v1671 = vsel %vm1543, %v1446, %v1607
    %v1672 = vsel %vm1544, %v1449, %v1608
    %v1673 = vsel %vm1545, %v1452, %v1609
    %v1674 = vsel %vm1546, %v1455, %v1610
    %v1675 = vsel %vm1547, %v1458, %v1611
    %v1676 = vsel %vm1548, %v1461, %v1612
    %v1677 = vsel %vm1549, %v1464, %v1613
    %v1678 = vsel %vm1550, %v1467, %v1614
    %v1679 = vsel %vm1551, %v1470, %v1615
    %v1680 = vsel %vm1552, %v1473, %v1616
    %v1681 = vsel %vm1553, %v1476, %v1617
    %v1682 = vsel %vm1554, %v1479, %v1618
    %v1683 = vsel %vm1555, %v1482, %v1619
    %v1684 = vsel %vm1556, %v1485, %v1620
    %v1685 = vsel %vm1557, %v1488, %v1621
    %v1686 = vsel %vm1558, %v1491, %v1622
    %v1687 = vsel %vm1559, %v1494, %v1623
    %s1688 = scalar_lea.vmem [#allocation5], 512
    %v1689 = vld [vmem:[%s1688] sm:$0xff]
    %v1690 = vld [vmem:[%s1688 + $0x8] sm:$0xff]
    %v1691 = vld [vmem:[%s1688 + $0x10] sm:$0xff]
    %v1692 = vld [vmem:[%s1688 + $0x18] sm:$0xff]
    %v1693 = vld [vmem:[%s1688 + $0x20] sm:$0xff]
    %v1694 = vld [vmem:[%s1688 + $0x28] sm:$0xff]
    %v1695 = vld [vmem:[%s1688 + $0x30] sm:$0xff]
    %v1696 = vld [vmem:[%s1688 + $0x38] sm:$0xff]
    %v1697 = vld [vmem:[%s1688 + $0x40] sm:$0xff]
    %v1698 = vld [vmem:[%s1688 + $0x48] sm:$0xff]
    %v1699 = vld [vmem:[%s1688 + $0x50] sm:$0xff]
    %v1700 = vld [vmem:[%s1688 + $0x58] sm:$0xff]
    %v1701 = vld [vmem:[%s1688 + $0x60] sm:$0xff]
    %v1702 = vld [vmem:[%s1688 + $0x68] sm:$0xff]
    %v1703 = vld [vmem:[%s1688 + $0x70] sm:$0xff]
    %v1704 = vld [vmem:[%s1688 + $0x78] sm:$0xff]
    %s1705 = scalar_lea.vmem [#allocation7], 4
    %v1706 = vld [vmem:[%s1705] sm:$0x1]
    %v1708 = vperm.slane %v1706, 0
    %1710 = vmatpush.msra.mxu0 %v1704
    %1711 = vmatpush.msra.mxu0 %v1703
    %1712 = vmatpush.msra.mxu0 %v1702
    %1713 = vmatpush.msra.mxu0 %v1701
    %1714 = vmatpush.msra.mxu0 %v1700
    %1715 = vmatpush.msra.mxu0 %v1699
    %1716 = vmatpush.msra.mxu0 %v1698
    %1717 = vmatpush.msra.mxu0 %v1697
    %1718 = vmatpush.msra.mxu0 %v1696
    %1719 = vmatpush.msra.mxu0 %v1695
    %1720 = vmatpush.msra.mxu0 %v1694
    %1721 = vmatpush.msra.mxu0 %v1693
    %1722 = vmatpush.msra.mxu0 %v1692
    %1723 = vmatpush.msra.mxu0 %v1691
    %1724 = vmatpush.msra.mxu0 %v1690
    %1725 = vmatpush.msra.mxu0 %v1689
    %1726 = vmatmul.f32.gmra.mxu0 %v1624
    %v1727 = vpop.f32.mrf.mxu0
    %v1728 = vadd.f32 %v1708, %v1727
    %1729 = vmatmul.f32.gmra.mxu0 %v1625
    %v1730 = vpop.f32.mrf.mxu0
    %v1731 = vadd.f32 %v1708, %v1730
    %1732 = vmatmul.f32.gmra.mxu0 %v1626
    %v1733 = vpop.f32.mrf.mxu0
    %v1734 = vadd.f32 %v1708, %v1733
    %1735 = vmatmul.f32.gmra.mxu0 %v1627
    %v1736 = vpop.f32.mrf.mxu0
    %v1737 = vadd.f32 %v1708, %v1736
    %1738 = vmatmul.f32.gmra.mxu0 %v1628
    %v1739 = vpop.f32.mrf.mxu0
    %v1740 = vadd.f32 %v1708, %v1739
    %1741 = vmatmul.f32.gmra.mxu0 %v1629
    %v1742 = vpop.f32.mrf.mxu0
    %v1743 = vadd.f32 %v1708, %v1742
    %1744 = vmatmul.f32.gmra.mxu0 %v1630
    %v1745 = vpop.f32.mrf.mxu0
    %v1746 = vadd.f32 %v1708, %v1745
    %1747 = vmatmul.f32.gmra.mxu0 %v1631
    %v1748 = vpop.f32.mrf.mxu0
    %v1749 = vadd.f32 %v1708, %v1748
    %1750 = vmatmul.f32.gmra.mxu0 %v1632
    %v1751 = vpop.f32.mrf.mxu0
    %v1752 = vadd.f32 %v1708, %v1751
    %1753 = vmatmul.f32.gmra.mxu0 %v1633
    %v1754 = vpop.f32.mrf.mxu0
    %v1755 = vadd.f32 %v1708, %v1754
    %1756 = vmatmul.f32.gmra.mxu0 %v1634
    %v1757 = vpop.f32.mrf.mxu0
    %v1758 = vadd.f32 %v1708, %v1757
    %1759 = vmatmul.f32.gmra.mxu0 %v1635
    %v1760 = vpop.f32.mrf.mxu0
    %v1761 = vadd.f32 %v1708, %v1760
    %1762 = vmatmul.f32.gmra.mxu0 %v1636
    %v1763 = vpop.f32.mrf.mxu0
    %v1764 = vadd.f32 %v1708, %v1763
    %1765 = vmatmul.f32.gmra.mxu0 %v1637
    %v1766 = vpop.f32.mrf.mxu0
    %v1767 = vadd.f32 %v1708, %v1766
    %1768 = vmatmul.f32.gmra.mxu0 %v1638
    %v1769 = vpop.f32.mrf.mxu0
    %v1770 = vadd.f32 %v1708, %v1769
    %1771 = vmatmul.f32.gmra.mxu0 %v1639
    %v1772 = vpop.f32.mrf.mxu0
    %v1773 = vadd.f32 %v1708, %v1772
    %1774 = vmatmul.f32.gmra.mxu0 %v1640
    %v1775 = vpop.f32.mrf.mxu0
    %v1776 = vadd.f32 %v1708, %v1775
    %1777 = vmatmul.f32.gmra.mxu0 %v1641
    %v1778 = vpop.f32.mrf.mxu0
    %v1779 = vadd.f32 %v1708, %v1778
    %1780 = vmatmul.f32.gmra.mxu0 %v1642
    %v1781 = vpop.f32.mrf.mxu0
    %v1782 = vadd.f32 %v1708, %v1781
    %1783 = vmatmul.f32.gmra.mxu0 %v1643
    %v1784 = vpop.f32.mrf.mxu0
    %v1785 = vadd.f32 %v1708, %v1784
    %1786 = vmatmul.f32.gmra.mxu0 %v1644
    %v1787 = vpop.f32.mrf.mxu0
    %v1788 = vadd.f32 %v1708, %v1787
    %1789 = vmatmul.f32.gmra.mxu0 %v1645
    %v1790 = vpop.f32.mrf.mxu0
    %v1791 = vadd.f32 %v1708, %v1790
    %1792 = vmatmul.f32.gmra.mxu0 %v1646
    %v1793 = vpop.f32.mrf.mxu0
    %v1794 = vadd.f32 %v1708, %v1793
    %1795 = vmatmul.f32.gmra.mxu0 %v1647
    %v1796 = vpop.f32.mrf.mxu0
    %v1797 = vadd.f32 %v1708, %v1796
    %1798 = vmatmul.f32.gmra.mxu0 %v1648
    %v1799 = vpop.f32.mrf.mxu0
    %v1800 = vadd.f32 %v1708, %v1799
    %1801 = vmatmul.f32.gmra.mxu0 %v1649
    %v1802 = vpop.f32.mrf.mxu0
    %v1803 = vadd.f32 %v1708, %v1802
    %1804 = vmatmul.f32.gmra.mxu0 %v1650
    %v1805 = vpop.f32.mrf.mxu0
    %v1806 = vadd.f32 %v1708, %v1805
    %1807 = vmatmul.f32.gmra.mxu0 %v1651
    %v1808 = vpop.f32.mrf.mxu0
    %v1809 = vadd.f32 %v1708, %v1808
    %1810 = vmatmul.f32.gmra.mxu0 %v1652
    %v1811 = vpop.f32.mrf.mxu0
    %v1812 = vadd.f32 %v1708, %v1811
    %1813 = vmatmul.f32.gmra.mxu0 %v1653
    %v1814 = vpop.f32.mrf.mxu0
    %v1815 = vadd.f32 %v1708, %v1814
    %1816 = vmatmul.f32.gmra.mxu0 %v1654
    %v1817 = vpop.f32.mrf.mxu0
    %v1818 = vadd.f32 %v1708, %v1817
    %1819 = vmatmul.f32.gmra.mxu0 %v1655
    %v1820 = vpop.f32.mrf.mxu0
    %v1821 = vadd.f32 %v1708, %v1820
    %1822 = vmatmul.f32.gmra.mxu0 %v1656
    %v1823 = vpop.f32.mrf.mxu0
    %v1824 = vadd.f32 %v1708, %v1823
    %1825 = vmatmul.f32.gmra.mxu0 %v1657
    %v1826 = vpop.f32.mrf.mxu0
    %v1827 = vadd.f32 %v1708, %v1826
    %1828 = vmatmul.f32.gmra.mxu0 %v1658
    %v1829 = vpop.f32.mrf.mxu0
    %v1830 = vadd.f32 %v1708, %v1829
    %1831 = vmatmul.f32.gmra.mxu0 %v1659
    %v1832 = vpop.f32.mrf.mxu0
    %v1833 = vadd.f32 %v1708, %v1832
    %1834 = vmatmul.f32.gmra.mxu0 %v1660
    %v1835 = vpop.f32.mrf.mxu0
    %v1836 = vadd.f32 %v1708, %v1835
    %1837 = vmatmul.f32.gmra.mxu0 %v1661
    %v1838 = vpop.f32.mrf.mxu0
    %v1839 = vadd.f32 %v1708, %v1838
    %1840 = vmatmul.f32.gmra.mxu0 %v1662
    %v1841 = vpop.f32.mrf.mxu0
    %v1842 = vadd.f32 %v1708, %v1841
    %1843 = vmatmul.f32.gmra.mxu0 %v1663
    %v1844 = vpop.f32.mrf.mxu0
    %v1845 = vadd.f32 %v1708, %v1844
    %1846 = vmatmul.f32.gmra.mxu0 %v1664
    %v1847 = vpop.f32.mrf.mxu0
    %v1848 = vadd.f32 %v1708, %v1847
    %1849 = vmatmul.f32.gmra.mxu0 %v1665
    %v1850 = vpop.f32.mrf.mxu0
    %v1851 = vadd.f32 %v1708, %v1850
    %1852 = vmatmul.f32.gmra.mxu0 %v1666
    %v1853 = vpop.f32.mrf.mxu0
    %v1854 = vadd.f32 %v1708, %v1853
    %1855 = vmatmul.f32.gmra.mxu0 %v1667
    %v1856 = vpop.f32.mrf.mxu0
    %v1857 = vadd.f32 %v1708, %v1856
    %1858 = vmatmul.f32.gmra.mxu0 %v1668
    %v1859 = vpop.f32.mrf.mxu0
    %v1860 = vadd.f32 %v1708, %v1859
    %1861 = vmatmul.f32.gmra.mxu0 %v1669
    %v1862 = vpop.f32.mrf.mxu0
    %v1863 = vadd.f32 %v1708, %v1862
    %1864 = vmatmul.f32.gmra.mxu0 %v1670
    %v1865 = vpop.f32.mrf.mxu0
    %v1866 = vadd.f32 %v1708, %v1865
    %1867 = vmatmul.f32.gmra.mxu0 %v1671
    %v1868 = vpop.f32.mrf.mxu0
    %v1869 = vadd.f32 %v1708, %v1868
    %1870 = vmatmul.f32.gmra.mxu0 %v1672
    %v1871 = vpop.f32.mrf.mxu0
    %v1872 = vadd.f32 %v1708, %v1871
    %1873 = vmatmul.f32.gmra.mxu0 %v1673
    %v1874 = vpop.f32.mrf.mxu0
    %v1875 = vadd.f32 %v1708, %v1874
    %1876 = vmatmul.f32.gmra.mxu0 %v1674
    %v1877 = vpop.f32.mrf.mxu0
    %v1878 = vadd.f32 %v1708, %v1877
    %1879 = vmatmul.f32.gmra.mxu0 %v1675
    %v1880 = vpop.f32.mrf.mxu0
    %v1881 = vadd.f32 %v1708, %v1880
    %1882 = vmatmul.f32.gmra.mxu0 %v1676
    %v1883 = vpop.f32.mrf.mxu0
    %v1884 = vadd.f32 %v1708, %v1883
    %1885 = vmatmul.f32.gmra.mxu0 %v1677
    %v1886 = vpop.f32.mrf.mxu0
    %v1887 = vadd.f32 %v1708, %v1886
    %1888 = vmatmul.f32.gmra.mxu0 %v1678
    %v1889 = vpop.f32.mrf.mxu0
    %v1890 = vadd.f32 %v1708, %v1889
    %1891 = vmatmul.f32.gmra.mxu0 %v1679
    %v1892 = vpop.f32.mrf.mxu0
    %v1893 = vadd.f32 %v1708, %v1892
    %1894 = vmatmul.f32.gmra.mxu0 %v1680
    %v1895 = vpop.f32.mrf.mxu0
    %v1896 = vadd.f32 %v1708, %v1895
    %1897 = vmatmul.f32.gmra.mxu0 %v1681
    %v1898 = vpop.f32.mrf.mxu0
    %v1899 = vadd.f32 %v1708, %v1898
    %1900 = vmatmul.f32.gmra.mxu0 %v1682
    %v1901 = vpop.f32.mrf.mxu0
    %v1902 = vadd.f32 %v1708, %v1901
    %1903 = vmatmul.f32.gmra.mxu0 %v1683
    %v1904 = vpop.f32.mrf.mxu0
    %v1905 = vadd.f32 %v1708, %v1904
    %1906 = vmatmul.f32.gmra.mxu0 %v1684
    %v1907 = vpop.f32.mrf.mxu0
    %v1908 = vadd.f32 %v1708, %v1907
    %1909 = vmatmul.f32.gmra.mxu0 %v1685
    %v1910 = vpop.f32.mrf.mxu0
    %v1911 = vadd.f32 %v1708, %v1910
    %1912 = vmatmul.f32.gmra.mxu0 %v1686
    %v1913 = vpop.f32.mrf.mxu0
    %v1914 = vadd.f32 %v1708, %v1913
    %1915 = vmatmul.f32.gmra.mxu0 %v1687
    %v1916 = vpop.f32.mrf.mxu0
    %v1917 = vadd.f32 %v1708, %v1916
    %1918 = vdwg.mxu0
    %vm1919 = vcmp.gt.f32.partialorder %v1728, 0.0
    %vm1920 = vcmp.gt.f32.partialorder %v1731, 0.0
    %vm1921 = vcmp.gt.f32.partialorder %v1734, 0.0
    %vm1922 = vcmp.gt.f32.partialorder %v1737, 0.0
    %vm1923 = vcmp.gt.f32.partialorder %v1740, 0.0
    %vm1924 = vcmp.gt.f32.partialorder %v1743, 0.0
    %vm1925 = vcmp.gt.f32.partialorder %v1746, 0.0
    %vm1926 = vcmp.gt.f32.partialorder %v1749, 0.0
    %vm1927 = vcmp.gt.f32.partialorder %v1752, 0.0
    %vm1928 = vcmp.gt.f32.partialorder %v1755, 0.0
    %vm1929 = vcmp.gt.f32.partialorder %v1758, 0.0
    %vm1930 = vcmp.gt.f32.partialorder %v1761, 0.0
    %vm1931 = vcmp.gt.f32.partialorder %v1764, 0.0
    %vm1932 = vcmp.gt.f32.partialorder %v1767, 0.0
    %vm1933 = vcmp.gt.f32.partialorder %v1770, 0.0
    %vm1934 = vcmp.gt.f32.partialorder %v1773, 0.0
    %vm1935 = vcmp.gt.f32.partialorder %v1776, 0.0
    %vm1936 = vcmp.gt.f32.partialorder %v1779, 0.0
    %vm1937 = vcmp.gt.f32.partialorder %v1782, 0.0
    %vm1938 = vcmp.gt.f32.partialorder %v1785, 0.0
    %vm1939 = vcmp.gt.f32.partialorder %v1788, 0.0
    %vm1940 = vcmp.gt.f32.partialorder %v1791, 0.0
    %vm1941 = vcmp.gt.f32.partialorder %v1794, 0.0
    %vm1942 = vcmp.gt.f32.partialorder %v1797, 0.0
    %vm1943 = vcmp.gt.f32.partialorder %v1800, 0.0
    %vm1944 = vcmp.gt.f32.partialorder %v1803, 0.0
    %vm1945 = vcmp.gt.f32.partialorder %v1806, 0.0
    %vm1946 = vcmp.gt.f32.partialorder %v1809, 0.0
    %vm1947 = vcmp.gt.f32.partialorder %v1812, 0.0
    %vm1948 = vcmp.gt.f32.partialorder %v1815, 0.0
    %vm1949 = vcmp.gt.f32.partialorder %v1818, 0.0
    %vm1950 = vcmp.gt.f32.partialorder %v1821, 0.0
    %vm1951 = vcmp.gt.f32.partialorder %v1824, 0.0
    %vm1952 = vcmp.gt.f32.partialorder %v1827, 0.0
    %vm1953 = vcmp.gt.f32.partialorder %v1830, 0.0
    %vm1954 = vcmp.gt.f32.partialorder %v1833, 0.0
    %vm1955 = vcmp.gt.f32.partialorder %v1836, 0.0
    %vm1956 = vcmp.gt.f32.partialorder %v1839, 0.0
    %vm1957 = vcmp.gt.f32.partialorder %v1842, 0.0
    %vm1958 = vcmp.gt.f32.partialorder %v1845, 0.0
    %vm1959 = vcmp.gt.f32.partialorder %v1848, 0.0
    %vm1960 = vcmp.gt.f32.partialorder %v1851, 0.0
    %vm1961 = vcmp.gt.f32.partialorder %v1854, 0.0
    %vm1962 = vcmp.gt.f32.partialorder %v1857, 0.0
    %vm1963 = vcmp.gt.f32.partialorder %v1860, 0.0
    %vm1964 = vcmp.gt.f32.partialorder %v1863, 0.0
    %vm1965 = vcmp.gt.f32.partialorder %v1866, 0.0
    %vm1966 = vcmp.gt.f32.partialorder %v1869, 0.0
    %vm1967 = vcmp.gt.f32.partialorder %v1872, 0.0
    %vm1968 = vcmp.gt.f32.partialorder %v1875, 0.0
    %vm1969 = vcmp.gt.f32.partialorder %v1878, 0.0
    %vm1970 = vcmp.gt.f32.partialorder %v1881, 0.0
    %vm1971 = vcmp.gt.f32.partialorder %v1884, 0.0
    %vm1972 = vcmp.gt.f32.partialorder %v1887, 0.0
    %vm1973 = vcmp.gt.f32.partialorder %v1890, 0.0
    %vm1974 = vcmp.gt.f32.partialorder %v1893, 0.0
    %vm1975 = vcmp.gt.f32.partialorder %v1896, 0.0
    %vm1976 = vcmp.gt.f32.partialorder %v1899, 0.0
    %vm1977 = vcmp.gt.f32.partialorder %v1902, 0.0
    %vm1978 = vcmp.gt.f32.partialorder %v1905, 0.0
    %vm1979 = vcmp.gt.f32.partialorder %v1908, 0.0
    %vm1980 = vcmp.gt.f32.partialorder %v1911, 0.0
    %vm1981 = vcmp.gt.f32.partialorder %v1914, 0.0
    %vm1982 = vcmp.gt.f32.partialorder %v1917, 0.0
    %v1983 = vmul.f32 %v1728, 0.2
    %v1984 = vmul.f32 %v1731, 0.2
    %v1985 = vmul.f32 %v1734, 0.2
    %v1986 = vmul.f32 %v1737, 0.2
    %v1987 = vmul.f32 %v1740, 0.2
    %v1988 = vmul.f32 %v1743, 0.2
    %v1989 = vmul.f32 %v1746, 0.2
    %v1990 = vmul.f32 %v1749, 0.2
    %v1991 = vmul.f32 %v1752, 0.2
    %v1992 = vmul.f32 %v1755, 0.2
    %v1993 = vmul.f32 %v1758, 0.2
    %v1994 = vmul.f32 %v1761, 0.2
    %v1995 = vmul.f32 %v1764, 0.2
    %v1996 = vmul.f32 %v1767, 0.2
    %v1997 = vmul.f32 %v1770, 0.2
    %v1998 = vmul.f32 %v1773, 0.2
    %v1999 = vmul.f32 %v1776, 0.2
    %v2000 = vmul.f32 %v1779, 0.2
    %v2001 = vmul.f32 %v1782, 0.2
    %v2002 = vmul.f32 %v1785, 0.2
    %v2003 = vmul.f32 %v1788, 0.2
    %v2004 = vmul.f32 %v1791, 0.2
    %v2005 = vmul.f32 %v1794, 0.2
    %v2006 = vmul.f32 %v1797, 0.2
    %v2007 = vmul.f32 %v1800, 0.2
    %v2008 = vmul.f32 %v1803, 0.2
    %v2009 = vmul.f32 %v1806, 0.2
    %v2010 = vmul.f32 %v1809, 0.2
    %v2011 = vmul.f32 %v1812, 0.2
    %v2012 = vmul.f32 %v1815, 0.2
    %v2013 = vmul.f32 %v1818, 0.2
    %v2014 = vmul.f32 %v1821, 0.2
    %v2015 = vmul.f32 %v1824, 0.2
    %v2016 = vmul.f32 %v1827, 0.2
    %v2017 = vmul.f32 %v1830, 0.2
    %v2018 = vmul.f32 %v1833, 0.2
    %v2019 = vmul.f32 %v1836, 0.2
    %v2020 = vmul.f32 %v1839, 0.2
    %v2021 = vmul.f32 %v1842, 0.2
    %v2022 = vmul.f32 %v1845, 0.2
    %v2023 = vmul.f32 %v1848, 0.2
    %v2024 = vmul.f32 %v1851, 0.2
    %v2025 = vmul.f32 %v1854, 0.2
    %v2026 = vmul.f32 %v1857, 0.2
    %v2027 = vmul.f32 %v1860, 0.2
    %v2028 = vmul.f32 %v1863, 0.2
    %v2029 = vmul.f32 %v1866, 0.2
    %v2030 = vmul.f32 %v1869, 0.2
    %v2031 = vmul.f32 %v1872, 0.2
    %v2032 = vmul.f32 %v1875, 0.2
    %v2033 = vmul.f32 %v1878, 0.2
    %v2034 = vmul.f32 %v1881, 0.2
    %v2035 = vmul.f32 %v1884, 0.2
    %v2036 = vmul.f32 %v1887, 0.2
    %v2037 = vmul.f32 %v1890, 0.2
    %v2038 = vmul.f32 %v1893, 0.2
    %v2039 = vmul.f32 %v1896, 0.2
    %v2040 = vmul.f32 %v1899, 0.2
    %v2041 = vmul.f32 %v1902, 0.2
    %v2042 = vmul.f32 %v1905, 0.2
    %v2043 = vmul.f32 %v1908, 0.2
    %v2044 = vmul.f32 %v1911, 0.2
    %v2045 = vmul.f32 %v1914, 0.2
    %v2046 = vmul.f32 %v1917, 0.2
    %v2047 = vsel %vm1919, %v1728, %v1983
    %v2048 = vsel %vm1920, %v1731, %v1984
    %v2049 = vsel %vm1921, %v1734, %v1985
    %v2050 = vsel %vm1922, %v1737, %v1986
    %v2051 = vsel %vm1923, %v1740, %v1987
    %v2052 = vsel %vm1924, %v1743, %v1988
    %v2053 = vsel %vm1925, %v1746, %v1989
    %v2054 = vsel %vm1926, %v1749, %v1990
    %v2055 = vsel %vm1927, %v1752, %v1991
    %v2056 = vsel %vm1928, %v1755, %v1992
    %v2057 = vsel %vm1929, %v1758, %v1993
    %v2058 = vsel %vm1930, %v1761, %v1994
    %v2059 = vsel %vm1931, %v1764, %v1995
    %v2060 = vsel %vm1932, %v1767, %v1996
    %v2061 = vsel %vm1933, %v1770, %v1997
    %v2062 = vsel %vm1934, %v1773, %v1998
    %v2063 = vsel %vm1935, %v1776, %v1999
    %v2064 = vsel %vm1936, %v1779, %v2000
    %v2065 = vsel %vm1937, %v1782, %v2001
    %v2066 = vsel %vm1938, %v1785, %v2002
    %v2067 = vsel %vm1939, %v1788, %v2003
    %v2068 = vsel %vm1940, %v1791, %v2004
    %v2069 = vsel %vm1941, %v1794, %v2005
    %v2070 = vsel %vm1942, %v1797, %v2006
    %v2071 = vsel %vm1943, %v1800, %v2007
    %v2072 = vsel %vm1944, %v1803, %v2008
    %v2073 = vsel %vm1945, %v1806, %v2009
    %v2074 = vsel %vm1946, %v1809, %v2010
    %v2075 = vsel %vm1947, %v1812, %v2011
    %v2076 = vsel %vm1948, %v1815, %v2012
    %v2077 = vsel %vm1949, %v1818, %v2013
    %v2078 = vsel %vm1950, %v1821, %v2014
    %v2079 = vsel %vm1951, %v1824, %v2015
    %v2080 = vsel %vm1952, %v1827, %v2016
    %v2081 = vsel %vm1953, %v1830, %v2017
    %v2082 = vsel %vm1954, %v1833, %v2018
    %v2083 = vsel %vm1955, %v1836, %v2019
    %v2084 = vsel %vm1956, %v1839, %v2020
    %v2085 = vsel %vm1957, %v1842, %v2021
    %v2086 = vsel %vm1958, %v1845, %v2022
    %v2087 = vsel %vm1959, %v1848, %v2023
    %v2088 = vsel %vm1960, %v1851, %v2024
    %v2089 = vsel %vm1961, %v1854, %v2025
    %v2090 = vsel %vm1962, %v1857, %v2026
    %v2091 = vsel %vm1963, %v1860, %v2027
    %v2092 = vsel %vm1964, %v1863, %v2028
    %v2093 = vsel %vm1965, %v1866, %v2029
    %v2094 = vsel %vm1966, %v1869, %v2030
    %v2095 = vsel %vm1967, %v1872, %v2031
    %v2096 = vsel %vm1968, %v1875, %v2032
    %v2097 = vsel %vm1969, %v1878, %v2033
    %v2098 = vsel %vm1970, %v1881, %v2034
    %v2099 = vsel %vm1971, %v1884, %v2035
    %v2100 = vsel %vm1972, %v1887, %v2036
    %v2101 = vsel %vm1973, %v1890, %v2037
    %v2102 = vsel %vm1974, %v1893, %v2038
    %v2103 = vsel %vm1975, %v1896, %v2039
    %v2104 = vsel %vm1976, %v1899, %v2040
    %v2105 = vsel %vm1977, %v1902, %v2041
    %v2106 = vsel %vm1978, %v1905, %v2042
    %v2107 = vsel %vm1979, %v1908, %v2043
    %v2108 = vsel %vm1980, %v1911, %v2044
    %v2109 = vsel %vm1981, %v1914, %v2045
    %v2110 = vsel %vm1982, %v1917, %v2046
    %s2111 = scalar_lea.vmem [#allocation5], 640
    %v2112 = vld [vmem:[%s2111] sm:$0xff]
    %v2113 = vld [vmem:[%s2111 + $0x8] sm:$0xff]
    %v2114 = vld [vmem:[%s2111 + $0x10] sm:$0xff]
    %v2115 = vld [vmem:[%s2111 + $0x18] sm:$0xff]
    %v2116 = vld [vmem:[%s2111 + $0x20] sm:$0xff]
    %v2117 = vld [vmem:[%s2111 + $0x28] sm:$0xff]
    %v2118 = vld [vmem:[%s2111 + $0x30] sm:$0xff]
    %v2119 = vld [vmem:[%s2111 + $0x38] sm:$0xff]
    %v2120 = vld [vmem:[%s2111 + $0x40] sm:$0xff]
    %v2121 = vld [vmem:[%s2111 + $0x48] sm:$0xff]
    %v2122 = vld [vmem:[%s2111 + $0x50] sm:$0xff]
    %v2123 = vld [vmem:[%s2111 + $0x58] sm:$0xff]
    %v2124 = vld [vmem:[%s2111 + $0x60] sm:$0xff]
    %v2125 = vld [vmem:[%s2111 + $0x68] sm:$0xff]
    %v2126 = vld [vmem:[%s2111 + $0x70] sm:$0xff]
    %v2127 = vld [vmem:[%s2111 + $0x78] sm:$0xff]
    %s2128 = scalar_lea.vmem [#allocation7], 5
    %v2129 = vld [vmem:[%s2128] sm:$0x1]
    %v2131 = vperm.slane %v2129, 0
    %2133 = vmatpush.msra.mxu0 %v2127
    %2134 = vmatpush.msra.mxu0 %v2126
    %2135 = vmatpush.msra.mxu0 %v2125
    %2136 = vmatpush.msra.mxu0 %v2124
    %2137 = vmatpush.msra.mxu0 %v2123
    %2138 = vmatpush.msra.mxu0 %v2122
    %2139 = vmatpush.msra.mxu0 %v2121
    %2140 = vmatpush.msra.mxu0 %v2120
    %2141 = vmatpush.msra.mxu0 %v2119
    %2142 = vmatpush.msra.mxu0 %v2118
    %2143 = vmatpush.msra.mxu0 %v2117
    %2144 = vmatpush.msra.mxu0 %v2116
    %2145 = vmatpush.msra.mxu0 %v2115
    %2146 = vmatpush.msra.mxu0 %v2114
    %2147 = vmatpush.msra.mxu0 %v2113
    %2148 = vmatpush.msra.mxu0 %v2112
    %2149 = vmatmul.f32.gmra.mxu0 %v2047
    %v2150 = vpop.f32.mrf.mxu0
    %v2151 = vadd.f32 %v2131, %v2150
    %2152 = vmatmul.f32.gmra.mxu0 %v2048
    %v2153 = vpop.f32.mrf.mxu0
    %v2154 = vadd.f32 %v2131, %v2153
    %2155 = vmatmul.f32.gmra.mxu0 %v2049
    %v2156 = vpop.f32.mrf.mxu0
    %v2157 = vadd.f32 %v2131, %v2156
    %2158 = vmatmul.f32.gmra.mxu0 %v2050
    %v2159 = vpop.f32.mrf.mxu0
    %v2160 = vadd.f32 %v2131, %v2159
    %2161 = vmatmul.f32.gmra.mxu0 %v2051
    %v2162 = vpop.f32.mrf.mxu0
    %v2163 = vadd.f32 %v2131, %v2162
    %2164 = vmatmul.f32.gmra.mxu0 %v2052
    %v2165 = vpop.f32.mrf.mxu0
    %v2166 = vadd.f32 %v2131, %v2165
    %2167 = vmatmul.f32.gmra.mxu0 %v2053
    %v2168 = vpop.f32.mrf.mxu0
    %v2169 = vadd.f32 %v2131, %v2168
    %2170 = vmatmul.f32.gmra.mxu0 %v2054
    %v2171 = vpop.f32.mrf.mxu0
    %v2172 = vadd.f32 %v2131, %v2171
    %2173 = vmatmul.f32.gmra.mxu0 %v2055
    %v2174 = vpop.f32.mrf.mxu0
    %v2175 = vadd.f32 %v2131, %v2174
    %2176 = vmatmul.f32.gmra.mxu0 %v2056
    %v2177 = vpop.f32.mrf.mxu0
    %v2178 = vadd.f32 %v2131, %v2177
    %2179 = vmatmul.f32.gmra.mxu0 %v2057
    %v2180 = vpop.f32.mrf.mxu0
    %v2181 = vadd.f32 %v2131, %v2180
    %2182 = vmatmul.f32.gmra.mxu0 %v2058
    %v2183 = vpop.f32.mrf.mxu0
    %v2184 = vadd.f32 %v2131, %v2183
    %2185 = vmatmul.f32.gmra.mxu0 %v2059
    %v2186 = vpop.f32.mrf.mxu0
    %v2187 = vadd.f32 %v2131, %v2186
    %2188 = vmatmul.f32.gmra.mxu0 %v2060
    %v2189 = vpop.f32.mrf.mxu0
    %v2190 = vadd.f32 %v2131, %v2189
    %2191 = vmatmul.f32.gmra.mxu0 %v2061
    %v2192 = vpop.f32.mrf.mxu0
    %v2193 = vadd.f32 %v2131, %v2192
    %2194 = vmatmul.f32.gmra.mxu0 %v2062
    %v2195 = vpop.f32.mrf.mxu0
    %v2196 = vadd.f32 %v2131, %v2195
    %2197 = vmatmul.f32.gmra.mxu0 %v2063
    %v2198 = vpop.f32.mrf.mxu0
    %v2199 = vadd.f32 %v2131, %v2198
    %2200 = vmatmul.f32.gmra.mxu0 %v2064
    %v2201 = vpop.f32.mrf.mxu0
    %v2202 = vadd.f32 %v2131, %v2201
    %2203 = vmatmul.f32.gmra.mxu0 %v2065
    %v2204 = vpop.f32.mrf.mxu0
    %v2205 = vadd.f32 %v2131, %v2204
    %2206 = vmatmul.f32.gmra.mxu0 %v2066
    %v2207 = vpop.f32.mrf.mxu0
    %v2208 = vadd.f32 %v2131, %v2207
    %2209 = vmatmul.f32.gmra.mxu0 %v2067
    %v2210 = vpop.f32.mrf.mxu0
    %v2211 = vadd.f32 %v2131, %v2210
    %2212 = vmatmul.f32.gmra.mxu0 %v2068
    %v2213 = vpop.f32.mrf.mxu0
    %v2214 = vadd.f32 %v2131, %v2213
    %2215 = vmatmul.f32.gmra.mxu0 %v2069
    %v2216 = vpop.f32.mrf.mxu0
    %v2217 = vadd.f32 %v2131, %v2216
    %2218 = vmatmul.f32.gmra.mxu0 %v2070
    %v2219 = vpop.f32.mrf.mxu0
    %v2220 = vadd.f32 %v2131, %v2219
    %2221 = vmatmul.f32.gmra.mxu0 %v2071
    %v2222 = vpop.f32.mrf.mxu0
    %v2223 = vadd.f32 %v2131, %v2222
    %2224 = vmatmul.f32.gmra.mxu0 %v2072
    %v2225 = vpop.f32.mrf.mxu0
    %v2226 = vadd.f32 %v2131, %v2225
    %2227 = vmatmul.f32.gmra.mxu0 %v2073
    %v2228 = vpop.f32.mrf.mxu0
    %v2229 = vadd.f32 %v2131, %v2228
    %2230 = vmatmul.f32.gmra.mxu0 %v2074
    %v2231 = vpop.f32.mrf.mxu0
    %v2232 = vadd.f32 %v2131, %v2231
    %2233 = vmatmul.f32.gmra.mxu0 %v2075
    %v2234 = vpop.f32.mrf.mxu0
    %v2235 = vadd.f32 %v2131, %v2234
    %2236 = vmatmul.f32.gmra.mxu0 %v2076
    %v2237 = vpop.f32.mrf.mxu0
    %v2238 = vadd.f32 %v2131, %v2237
    %2239 = vmatmul.f32.gmra.mxu0 %v2077
    %v2240 = vpop.f32.mrf.mxu0
    %v2241 = vadd.f32 %v2131, %v2240
    %2242 = vmatmul.f32.gmra.mxu0 %v2078
    %v2243 = vpop.f32.mrf.mxu0
    %v2244 = vadd.f32 %v2131, %v2243
    %2245 = vmatmul.f32.gmra.mxu0 %v2079
    %v2246 = vpop.f32.mrf.mxu0
    %v2247 = vadd.f32 %v2131, %v2246
    %2248 = vmatmul.f32.gmra.mxu0 %v2080
    %v2249 = vpop.f32.mrf.mxu0
    %v2250 = vadd.f32 %v2131, %v2249
    %2251 = vmatmul.f32.gmra.mxu0 %v2081
    %v2252 = vpop.f32.mrf.mxu0
    %v2253 = vadd.f32 %v2131, %v2252
    %2254 = vmatmul.f32.gmra.mxu0 %v2082
    %v2255 = vpop.f32.mrf.mxu0
    %v2256 = vadd.f32 %v2131, %v2255
    %2257 = vmatmul.f32.gmra.mxu0 %v2083
    %v2258 = vpop.f32.mrf.mxu0
    %v2259 = vadd.f32 %v2131, %v2258
    %2260 = vmatmul.f32.gmra.mxu0 %v2084
    %v2261 = vpop.f32.mrf.mxu0
    %v2262 = vadd.f32 %v2131, %v2261
    %2263 = vmatmul.f32.gmra.mxu0 %v2085
    %v2264 = vpop.f32.mrf.mxu0
    %v2265 = vadd.f32 %v2131, %v2264
    %2266 = vmatmul.f32.gmra.mxu0 %v2086
    %v2267 = vpop.f32.mrf.mxu0
    %v2268 = vadd.f32 %v2131, %v2267
    %2269 = vmatmul.f32.gmra.mxu0 %v2087
    %v2270 = vpop.f32.mrf.mxu0
    %v2271 = vadd.f32 %v2131, %v2270
    %2272 = vmatmul.f32.gmra.mxu0 %v2088
    %v2273 = vpop.f32.mrf.mxu0
    %v2274 = vadd.f32 %v2131, %v2273
    %2275 = vmatmul.f32.gmra.mxu0 %v2089
    %v2276 = vpop.f32.mrf.mxu0
    %v2277 = vadd.f32 %v2131, %v2276
    %2278 = vmatmul.f32.gmra.mxu0 %v2090
    %v2279 = vpop.f32.mrf.mxu0
    %v2280 = vadd.f32 %v2131, %v2279
    %2281 = vmatmul.f32.gmra.mxu0 %v2091
    %v2282 = vpop.f32.mrf.mxu0
    %v2283 = vadd.f32 %v2131, %v2282
    %2284 = vmatmul.f32.gmra.mxu0 %v2092
    %v2285 = vpop.f32.mrf.mxu0
    %v2286 = vadd.f32 %v2131, %v2285
    %2287 = vmatmul.f32.gmra.mxu0 %v2093
    %v2288 = vpop.f32.mrf.mxu0
    %v2289 = vadd.f32 %v2131, %v2288
    %2290 = vmatmul.f32.gmra.mxu0 %v2094
    %v2291 = vpop.f32.mrf.mxu0
    %v2292 = vadd.f32 %v2131, %v2291
    %2293 = vmatmul.f32.gmra.mxu0 %v2095
    %v2294 = vpop.f32.mrf.mxu0
    %v2295 = vadd.f32 %v2131, %v2294
    %2296 = vmatmul.f32.gmra.mxu0 %v2096
    %v2297 = vpop.f32.mrf.mxu0
    %v2298 = vadd.f32 %v2131, %v2297
    %2299 = vmatmul.f32.gmra.mxu0 %v2097
    %v2300 = vpop.f32.mrf.mxu0
    %v2301 = vadd.f32 %v2131, %v2300
    %2302 = vmatmul.f32.gmra.mxu0 %v2098
    %v2303 = vpop.f32.mrf.mxu0
    %v2304 = vadd.f32 %v2131, %v2303
    %2305 = vmatmul.f32.gmra.mxu0 %v2099
    %v2306 = vpop.f32.mrf.mxu0
    %v2307 = vadd.f32 %v2131, %v2306
    %2308 = vmatmul.f32.gmra.mxu0 %v2100
    %v2309 = vpop.f32.mrf.mxu0
    %v2310 = vadd.f32 %v2131, %v2309
    %2311 = vmatmul.f32.gmra.mxu0 %v2101
    %v2312 = vpop.f32.mrf.mxu0
    %v2313 = vadd.f32 %v2131, %v2312
    %2314 = vmatmul.f32.gmra.mxu0 %v2102
    %v2315 = vpop.f32.mrf.mxu0
    %v2316 = vadd.f32 %v2131, %v2315
    %2317 = vmatmul.f32.gmra.mxu0 %v2103
    %v2318 = vpop.f32.mrf.mxu0
    %v2319 = vadd.f32 %v2131, %v2318
    %2320 = vmatmul.f32.gmra.mxu0 %v2104
    %v2321 = vpop.f32.mrf.mxu0
    %v2322 = vadd.f32 %v2131, %v2321
    %2323 = vmatmul.f32.gmra.mxu0 %v2105
    %v2324 = vpop.f32.mrf.mxu0
    %v2325 = vadd.f32 %v2131, %v2324
    %2326 = vmatmul.f32.gmra.mxu0 %v2106
    %v2327 = vpop.f32.mrf.mxu0
    %v2328 = vadd.f32 %v2131, %v2327
    %2329 = vmatmul.f32.gmra.mxu0 %v2107
    %v2330 = vpop.f32.mrf.mxu0
    %v2331 = vadd.f32 %v2131, %v2330
    %2332 = vmatmul.f32.gmra.mxu0 %v2108
    %v2333 = vpop.f32.mrf.mxu0
    %v2334 = vadd.f32 %v2131, %v2333
    %2335 = vmatmul.f32.gmra.mxu0 %v2109
    %v2336 = vpop.f32.mrf.mxu0
    %v2337 = vadd.f32 %v2131, %v2336
    %2338 = vmatmul.f32.gmra.mxu0 %v2110
    %v2339 = vpop.f32.mrf.mxu0
    %v2340 = vadd.f32 %v2131, %v2339
    %2341 = vdwg.mxu0
    %vm2342 = vcmp.gt.f32.partialorder %v2151, 0.0
    %vm2343 = vcmp.gt.f32.partialorder %v2154, 0.0
    %vm2344 = vcmp.gt.f32.partialorder %v2157, 0.0
    %vm2345 = vcmp.gt.f32.partialorder %v2160, 0.0
    %vm2346 = vcmp.gt.f32.partialorder %v2163, 0.0
    %vm2347 = vcmp.gt.f32.partialorder %v2166, 0.0
    %vm2348 = vcmp.gt.f32.partialorder %v2169, 0.0
    %vm2349 = vcmp.gt.f32.partialorder %v2172, 0.0
    %vm2350 = vcmp.gt.f32.partialorder %v2175, 0.0
    %vm2351 = vcmp.gt.f32.partialorder %v2178, 0.0
    %vm2352 = vcmp.gt.f32.partialorder %v2181, 0.0
    %vm2353 = vcmp.gt.f32.partialorder %v2184, 0.0
    %vm2354 = vcmp.gt.f32.partialorder %v2187, 0.0
    %vm2355 = vcmp.gt.f32.partialorder %v2190, 0.0
    %vm2356 = vcmp.gt.f32.partialorder %v2193, 0.0
    %vm2357 = vcmp.gt.f32.partialorder %v2196, 0.0
    %vm2358 = vcmp.gt.f32.partialorder %v2199, 0.0
    %vm2359 = vcmp.gt.f32.partialorder %v2202, 0.0
    %vm2360 = vcmp.gt.f32.partialorder %v2205, 0.0
    %vm2361 = vcmp.gt.f32.partialorder %v2208, 0.0
    %vm2362 = vcmp.gt.f32.partialorder %v2211, 0.0
    %vm2363 = vcmp.gt.f32.partialorder %v2214, 0.0
    %vm2364 = vcmp.gt.f32.partialorder %v2217, 0.0
    %vm2365 = vcmp.gt.f32.partialorder %v2220, 0.0
    %vm2366 = vcmp.gt.f32.partialorder %v2223, 0.0
    %vm2367 = vcmp.gt.f32.partialorder %v2226, 0.0
    %vm2368 = vcmp.gt.f32.partialorder %v2229, 0.0
    %vm2369 = vcmp.gt.f32.partialorder %v2232, 0.0
    %vm2370 = vcmp.gt.f32.partialorder %v2235, 0.0
    %vm2371 = vcmp.gt.f32.partialorder %v2238, 0.0
    %vm2372 = vcmp.gt.f32.partialorder %v2241, 0.0
    %vm2373 = vcmp.gt.f32.partialorder %v2244, 0.0
    %vm2374 = vcmp.gt.f32.partialorder %v2247, 0.0
    %vm2375 = vcmp.gt.f32.partialorder %v2250, 0.0
    %vm2376 = vcmp.gt.f32.partialorder %v2253, 0.0
    %vm2377 = vcmp.gt.f32.partialorder %v2256, 0.0
    %vm2378 = vcmp.gt.f32.partialorder %v2259, 0.0
    %vm2379 = vcmp.gt.f32.partialorder %v2262, 0.0
    %vm2380 = vcmp.gt.f32.partialorder %v2265, 0.0
    %vm2381 = vcmp.gt.f32.partialorder %v2268, 0.0
    %vm2382 = vcmp.gt.f32.partialorder %v2271, 0.0
    %vm2383 = vcmp.gt.f32.partialorder %v2274, 0.0
    %vm2384 = vcmp.gt.f32.partialorder %v2277, 0.0
    %vm2385 = vcmp.gt.f32.partialorder %v2280, 0.0
    %vm2386 = vcmp.gt.f32.partialorder %v2283, 0.0
    %vm2387 = vcmp.gt.f32.partialorder %v2286, 0.0
    %vm2388 = vcmp.gt.f32.partialorder %v2289, 0.0
    %vm2389 = vcmp.gt.f32.partialorder %v2292, 0.0
    %vm2390 = vcmp.gt.f32.partialorder %v2295, 0.0
    %vm2391 = vcmp.gt.f32.partialorder %v2298, 0.0
    %vm2392 = vcmp.gt.f32.partialorder %v2301, 0.0
    %vm2393 = vcmp.gt.f32.partialorder %v2304, 0.0
    %vm2394 = vcmp.gt.f32.partialorder %v2307, 0.0
    %vm2395 = vcmp.gt.f32.partialorder %v2310, 0.0
    %vm2396 = vcmp.gt.f32.partialorder %v2313, 0.0
    %vm2397 = vcmp.gt.f32.partialorder %v2316, 0.0
    %vm2398 = vcmp.gt.f32.partialorder %v2319, 0.0
    %vm2399 = vcmp.gt.f32.partialorder %v2322, 0.0
    %vm2400 = vcmp.gt.f32.partialorder %v2325, 0.0
    %vm2401 = vcmp.gt.f32.partialorder %v2328, 0.0
    %vm2402 = vcmp.gt.f32.partialorder %v2331, 0.0
    %vm2403 = vcmp.gt.f32.partialorder %v2334, 0.0
    %vm2404 = vcmp.gt.f32.partialorder %v2337, 0.0
    %vm2405 = vcmp.gt.f32.partialorder %v2340, 0.0
    %v2406 = vmul.f32 %v2151, 0.2
    %v2407 = vmul.f32 %v2154, 0.2
    %v2408 = vmul.f32 %v2157, 0.2
    %v2409 = vmul.f32 %v2160, 0.2
    %v2410 = vmul.f32 %v2163, 0.2
    %v2411 = vmul.f32 %v2166, 0.2
    %v2412 = vmul.f32 %v2169, 0.2
    %v2413 = vmul.f32 %v2172, 0.2
    %v2414 = vmul.f32 %v2175, 0.2
    %v2415 = vmul.f32 %v2178, 0.2
    %v2416 = vmul.f32 %v2181, 0.2
    %v2417 = vmul.f32 %v2184, 0.2
    %v2418 = vmul.f32 %v2187, 0.2
    %v2419 = vmul.f32 %v2190, 0.2
    %v2420 = vmul.f32 %v2193, 0.2
    %v2421 = vmul.f32 %v2196, 0.2
    %v2422 = vmul.f32 %v2199, 0.2
    %v2423 = vmul.f32 %v2202, 0.2
    %v2424 = vmul.f32 %v2205, 0.2
    %v2425 = vmul.f32 %v2208, 0.2
    %v2426 = vmul.f32 %v2211, 0.2
    %v2427 = vmul.f32 %v2214, 0.2
    %v2428 = vmul.f32 %v2217, 0.2
    %v2429 = vmul.f32 %v2220, 0.2
    %v2430 = vmul.f32 %v2223, 0.2
    %v2431 = vmul.f32 %v2226, 0.2
    %v2432 = vmul.f32 %v2229, 0.2
    %v2433 = vmul.f32 %v2232, 0.2
    %v2434 = vmul.f32 %v2235, 0.2
    %v2435 = vmul.f32 %v2238, 0.2
    %v2436 = vmul.f32 %v2241, 0.2
    %v2437 = vmul.f32 %v2244, 0.2
    %v2438 = vmul.f32 %v2247, 0.2
    %v2439 = vmul.f32 %v2250, 0.2
    %v2440 = vmul.f32 %v2253, 0.2
    %v2441 = vmul.f32 %v2256, 0.2
    %v2442 = vmul.f32 %v2259, 0.2
    %v2443 = vmul.f32 %v2262, 0.2
    %v2444 = vmul.f32 %v2265, 0.2
    %v2445 = vmul.f32 %v2268, 0.2
    %v2446 = vmul.f32 %v2271, 0.2
    %v2447 = vmul.f32 %v2274, 0.2
    %v2448 = vmul.f32 %v2277, 0.2
    %v2449 = vmul.f32 %v2280, 0.2
    %v2450 = vmul.f32 %v2283, 0.2
    %v2451 = vmul.f32 %v2286, 0.2
    %v2452 = vmul.f32 %v2289, 0.2
    %v2453 = vmul.f32 %v2292, 0.2
    %v2454 = vmul.f32 %v2295, 0.2
    %v2455 = vmul.f32 %v2298, 0.2
    %v2456 = vmul.f32 %v2301, 0.2
    %v2457 = vmul.f32 %v2304, 0.2
    %v2458 = vmul.f32 %v2307, 0.2
    %v2459 = vmul.f32 %v2310, 0.2
    %v2460 = vmul.f32 %v2313, 0.2
    %v2461 = vmul.f32 %v2316, 0.2
    %v2462 = vmul.f32 %v2319, 0.2
    %v2463 = vmul.f32 %v2322, 0.2
    %v2464 = vmul.f32 %v2325, 0.2
    %v2465 = vmul.f32 %v2328, 0.2
    %v2466 = vmul.f32 %v2331, 0.2
    %v2467 = vmul.f32 %v2334, 0.2
    %v2468 = vmul.f32 %v2337, 0.2
    %v2469 = vmul.f32 %v2340, 0.2
    %v2470 = vsel %vm2342, %v2151, %v2406
    %v2471 = vsel %vm2343, %v2154, %v2407
    %v2472 = vsel %vm2344, %v2157, %v2408
    %v2473 = vsel %vm2345, %v2160, %v2409
    %v2474 = vsel %vm2346, %v2163, %v2410
    %v2475 = vsel %vm2347, %v2166, %v2411
    %v2476 = vsel %vm2348, %v2169, %v2412
    %v2477 = vsel %vm2349, %v2172, %v2413
    %v2478 = vsel %vm2350, %v2175, %v2414
    %v2479 = vsel %vm2351, %v2178, %v2415
    %v2480 = vsel %vm2352, %v2181, %v2416
    %v2481 = vsel %vm2353, %v2184, %v2417
    %v2482 = vsel %vm2354, %v2187, %v2418
    %v2483 = vsel %vm2355, %v2190, %v2419
    %v2484 = vsel %vm2356, %v2193, %v2420
    %v2485 = vsel %vm2357, %v2196, %v2421
    %v2486 = vsel %vm2358, %v2199, %v2422
    %v2487 = vsel %vm2359, %v2202, %v2423
    %v2488 = vsel %vm2360, %v2205, %v2424
    %v2489 = vsel %vm2361, %v2208, %v2425
    %v2490 = vsel %vm2362, %v2211, %v2426
    %v2491 = vsel %vm2363, %v2214, %v2427
    %v2492 = vsel %vm2364, %v2217, %v2428
    %v2493 = vsel %vm2365, %v2220, %v2429
    %v2494 = vsel %vm2366, %v2223, %v2430
    %v2495 = vsel %vm2367, %v2226, %v2431
    %v2496 = vsel %vm2368, %v2229, %v2432
    %v2497 = vsel %vm2369, %v2232, %v2433
    %v2498 = vsel %vm2370, %v2235, %v2434
    %v2499 = vsel %vm2371, %v2238, %v2435
    %v2500 = vsel %vm2372, %v2241, %v2436
    %v2501 = vsel %vm2373, %v2244, %v2437
    %v2502 = vsel %vm2374, %v2247, %v2438
    %v2503 = vsel %vm2375, %v2250, %v2439
    %v2504 = vsel %vm2376, %v2253, %v2440
    %v2505 = vsel %vm2377, %v2256, %v2441
    %v2506 = vsel %vm2378, %v2259, %v2442
    %v2507 = vsel %vm2379, %v2262, %v2443
    %v2508 = vsel %vm2380, %v2265, %v2444
    %v2509 = vsel %vm2381, %v2268, %v2445
    %v2510 = vsel %vm2382, %v2271, %v2446
    %v2511 = vsel %vm2383, %v2274, %v2447
    %v2512 = vsel %vm2384, %v2277, %v2448
    %v2513 = vsel %vm2385, %v2280, %v2449
    %v2514 = vsel %vm2386, %v2283, %v2450
    %v2515 = vsel %vm2387, %v2286, %v2451
    %v2516 = vsel %vm2388, %v2289, %v2452
    %v2517 = vsel %vm2389, %v2292, %v2453
    %v2518 = vsel %vm2390, %v2295, %v2454
    %v2519 = vsel %vm2391, %v2298, %v2455
    %v2520 = vsel %vm2392, %v2301, %v2456
    %v2521 = vsel %vm2393, %v2304, %v2457
    %v2522 = vsel %vm2394, %v2307, %v2458
    %v2523 = vsel %vm2395, %v2310, %v2459
    %v2524 = vsel %vm2396, %v2313, %v2460
    %v2525 = vsel %vm2397, %v2316, %v2461
    %v2526 = vsel %vm2398, %v2319, %v2462
    %v2527 = vsel %vm2399, %v2322, %v2463
    %v2528 = vsel %vm2400, %v2325, %v2464
    %v2529 = vsel %vm2401, %v2328, %v2465
    %v2530 = vsel %vm2402, %v2331, %v2466
    %v2531 = vsel %vm2403, %v2334, %v2467
    %v2532 = vsel %vm2404, %v2337, %v2468
    %v2533 = vsel %vm2405, %v2340, %v2469
    %s2534 = scalar_lea.vmem [#allocation5], 768
    %v2535 = vld [vmem:[%s2534] sm:$0xff]
    %v2536 = vld [vmem:[%s2534 + $0x8] sm:$0xff]
    %v2537 = vld [vmem:[%s2534 + $0x10] sm:$0xff]
    %v2538 = vld [vmem:[%s2534 + $0x18] sm:$0xff]
    %v2539 = vld [vmem:[%s2534 + $0x20] sm:$0xff]
    %v2540 = vld [vmem:[%s2534 + $0x28] sm:$0xff]
    %v2541 = vld [vmem:[%s2534 + $0x30] sm:$0xff]
    %v2542 = vld [vmem:[%s2534 + $0x38] sm:$0xff]
    %v2543 = vld [vmem:[%s2534 + $0x40] sm:$0xff]
    %v2544 = vld [vmem:[%s2534 + $0x48] sm:$0xff]
    %v2545 = vld [vmem:[%s2534 + $0x50] sm:$0xff]
    %v2546 = vld [vmem:[%s2534 + $0x58] sm:$0xff]
    %v2547 = vld [vmem:[%s2534 + $0x60] sm:$0xff]
    %v2548 = vld [vmem:[%s2534 + $0x68] sm:$0xff]
    %v2549 = vld [vmem:[%s2534 + $0x70] sm:$0xff]
    %v2550 = vld [vmem:[%s2534 + $0x78] sm:$0xff]
    %s2551 = scalar_lea.vmem [#allocation7], 6
    %v2552 = vld [vmem:[%s2551] sm:$0x1]
    %v2554 = vperm.slane %v2552, 0
    %2556 = vmatpush.msra.mxu0 %v2550
    %2557 = vmatpush.msra.mxu0 %v2549
    %2558 = vmatpush.msra.mxu0 %v2548
    %2559 = vmatpush.msra.mxu0 %v2547
    %2560 = vmatpush.msra.mxu0 %v2546
    %2561 = vmatpush.msra.mxu0 %v2545
    %2562 = vmatpush.msra.mxu0 %v2544
    %2563 = vmatpush.msra.mxu0 %v2543
    %2564 = vmatpush.msra.mxu0 %v2542
    %2565 = vmatpush.msra.mxu0 %v2541
    %2566 = vmatpush.msra.mxu0 %v2540
    %2567 = vmatpush.msra.mxu0 %v2539
    %2568 = vmatpush.msra.mxu0 %v2538
    %2569 = vmatpush.msra.mxu0 %v2537
    %2570 = vmatpush.msra.mxu0 %v2536
    %2571 = vmatpush.msra.mxu0 %v2535
    %2572 = vmatmul.f32.gmra.mxu0 %v2470
    %v2573 = vpop.f32.mrf.mxu0
    %v2574 = vadd.f32 %v2554, %v2573
    %2575 = vmatmul.f32.gmra.mxu0 %v2471
    %v2576 = vpop.f32.mrf.mxu0
    %v2577 = vadd.f32 %v2554, %v2576
    %2578 = vmatmul.f32.gmra.mxu0 %v2472
    %v2579 = vpop.f32.mrf.mxu0
    %v2580 = vadd.f32 %v2554, %v2579
    %2581 = vmatmul.f32.gmra.mxu0 %v2473
    %v2582 = vpop.f32.mrf.mxu0
    %v2583 = vadd.f32 %v2554, %v2582
    %2584 = vmatmul.f32.gmra.mxu0 %v2474
    %v2585 = vpop.f32.mrf.mxu0
    %v2586 = vadd.f32 %v2554, %v2585
    %2587 = vmatmul.f32.gmra.mxu0 %v2475
    %v2588 = vpop.f32.mrf.mxu0
    %v2589 = vadd.f32 %v2554, %v2588
    %2590 = vmatmul.f32.gmra.mxu0 %v2476
    %v2591 = vpop.f32.mrf.mxu0
    %v2592 = vadd.f32 %v2554, %v2591
    %2593 = vmatmul.f32.gmra.mxu0 %v2477
    %v2594 = vpop.f32.mrf.mxu0
    %v2595 = vadd.f32 %v2554, %v2594
    %2596 = vmatmul.f32.gmra.mxu0 %v2478
    %v2597 = vpop.f32.mrf.mxu0
    %v2598 = vadd.f32 %v2554, %v2597
    %2599 = vmatmul.f32.gmra.mxu0 %v2479
    %v2600 = vpop.f32.mrf.mxu0
    %v2601 = vadd.f32 %v2554, %v2600
    %2602 = vmatmul.f32.gmra.mxu0 %v2480
    %v2603 = vpop.f32.mrf.mxu0
    %v2604 = vadd.f32 %v2554, %v2603
    %2605 = vmatmul.f32.gmra.mxu0 %v2481
    %v2606 = vpop.f32.mrf.mxu0
    %v2607 = vadd.f32 %v2554, %v2606
    %2608 = vmatmul.f32.gmra.mxu0 %v2482
    %v2609 = vpop.f32.mrf.mxu0
    %v2610 = vadd.f32 %v2554, %v2609
    %2611 = vmatmul.f32.gmra.mxu0 %v2483
    %v2612 = vpop.f32.mrf.mxu0
    %v2613 = vadd.f32 %v2554, %v2612
    %2614 = vmatmul.f32.gmra.mxu0 %v2484
    %v2615 = vpop.f32.mrf.mxu0
    %v2616 = vadd.f32 %v2554, %v2615
    %2617 = vmatmul.f32.gmra.mxu0 %v2485
    %v2618 = vpop.f32.mrf.mxu0
    %v2619 = vadd.f32 %v2554, %v2618
    %2620 = vmatmul.f32.gmra.mxu0 %v2486
    %v2621 = vpop.f32.mrf.mxu0
    %v2622 = vadd.f32 %v2554, %v2621
    %2623 = vmatmul.f32.gmra.mxu0 %v2487
    %v2624 = vpop.f32.mrf.mxu0
    %v2625 = vadd.f32 %v2554, %v2624
    %2626 = vmatmul.f32.gmra.mxu0 %v2488
    %v2627 = vpop.f32.mrf.mxu0
    %v2628 = vadd.f32 %v2554, %v2627
    %2629 = vmatmul.f32.gmra.mxu0 %v2489
    %v2630 = vpop.f32.mrf.mxu0
    %v2631 = vadd.f32 %v2554, %v2630
    %2632 = vmatmul.f32.gmra.mxu0 %v2490
    %v2633 = vpop.f32.mrf.mxu0
    %v2634 = vadd.f32 %v2554, %v2633
    %2635 = vmatmul.f32.gmra.mxu0 %v2491
    %v2636 = vpop.f32.mrf.mxu0
    %v2637 = vadd.f32 %v2554, %v2636
    %2638 = vmatmul.f32.gmra.mxu0 %v2492
    %v2639 = vpop.f32.mrf.mxu0
    %v2640 = vadd.f32 %v2554, %v2639
    %2641 = vmatmul.f32.gmra.mxu0 %v2493
    %v2642 = vpop.f32.mrf.mxu0
    %v2643 = vadd.f32 %v2554, %v2642
    %2644 = vmatmul.f32.gmra.mxu0 %v2494
    %v2645 = vpop.f32.mrf.mxu0
    %v2646 = vadd.f32 %v2554, %v2645
    %2647 = vmatmul.f32.gmra.mxu0 %v2495
    %v2648 = vpop.f32.mrf.mxu0
    %v2649 = vadd.f32 %v2554, %v2648
    %2650 = vmatmul.f32.gmra.mxu0 %v2496
    %v2651 = vpop.f32.mrf.mxu0
    %v2652 = vadd.f32 %v2554, %v2651
    %2653 = vmatmul.f32.gmra.mxu0 %v2497
    %v2654 = vpop.f32.mrf.mxu0
    %v2655 = vadd.f32 %v2554, %v2654
    %2656 = vmatmul.f32.gmra.mxu0 %v2498
    %v2657 = vpop.f32.mrf.mxu0
    %v2658 = vadd.f32 %v2554, %v2657
    %2659 = vmatmul.f32.gmra.mxu0 %v2499
    %v2660 = vpop.f32.mrf.mxu0
    %v2661 = vadd.f32 %v2554, %v2660
    %2662 = vmatmul.f32.gmra.mxu0 %v2500
    %v2663 = vpop.f32.mrf.mxu0
    %v2664 = vadd.f32 %v2554, %v2663
    %2665 = vmatmul.f32.gmra.mxu0 %v2501
    %v2666 = vpop.f32.mrf.mxu0
    %v2667 = vadd.f32 %v2554, %v2666
    %2668 = vmatmul.f32.gmra.mxu0 %v2502
    %v2669 = vpop.f32.mrf.mxu0
    %v2670 = vadd.f32 %v2554, %v2669
    %2671 = vmatmul.f32.gmra.mxu0 %v2503
    %v2672 = vpop.f32.mrf.mxu0
    %v2673 = vadd.f32 %v2554, %v2672
    %2674 = vmatmul.f32.gmra.mxu0 %v2504
    %v2675 = vpop.f32.mrf.mxu0
    %v2676 = vadd.f32 %v2554, %v2675
    %2677 = vmatmul.f32.gmra.mxu0 %v2505
    %v2678 = vpop.f32.mrf.mxu0
    %v2679 = vadd.f32 %v2554, %v2678
    %2680 = vmatmul.f32.gmra.mxu0 %v2506
    %v2681 = vpop.f32.mrf.mxu0
    %v2682 = vadd.f32 %v2554, %v2681
    %2683 = vmatmul.f32.gmra.mxu0 %v2507
    %v2684 = vpop.f32.mrf.mxu0
    %v2685 = vadd.f32 %v2554, %v2684
    %2686 = vmatmul.f32.gmra.mxu0 %v2508
    %v2687 = vpop.f32.mrf.mxu0
    %v2688 = vadd.f32 %v2554, %v2687
    %2689 = vmatmul.f32.gmra.mxu0 %v2509
    %v2690 = vpop.f32.mrf.mxu0
    %v2691 = vadd.f32 %v2554, %v2690
    %2692 = vmatmul.f32.gmra.mxu0 %v2510
    %v2693 = vpop.f32.mrf.mxu0
    %v2694 = vadd.f32 %v2554, %v2693
    %2695 = vmatmul.f32.gmra.mxu0 %v2511
    %v2696 = vpop.f32.mrf.mxu0
    %v2697 = vadd.f32 %v2554, %v2696
    %2698 = vmatmul.f32.gmra.mxu0 %v2512
    %v2699 = vpop.f32.mrf.mxu0
    %v2700 = vadd.f32 %v2554, %v2699
    %2701 = vmatmul.f32.gmra.mxu0 %v2513
    %v2702 = vpop.f32.mrf.mxu0
    %v2703 = vadd.f32 %v2554, %v2702
    %2704 = vmatmul.f32.gmra.mxu0 %v2514
    %v2705 = vpop.f32.mrf.mxu0
    %v2706 = vadd.f32 %v2554, %v2705
    %2707 = vmatmul.f32.gmra.mxu0 %v2515
    %v2708 = vpop.f32.mrf.mxu0
    %v2709 = vadd.f32 %v2554, %v2708
    %2710 = vmatmul.f32.gmra.mxu0 %v2516
    %v2711 = vpop.f32.mrf.mxu0
    %v2712 = vadd.f32 %v2554, %v2711
    %2713 = vmatmul.f32.gmra.mxu0 %v2517
    %v2714 = vpop.f32.mrf.mxu0
    %v2715 = vadd.f32 %v2554, %v2714
    %2716 = vmatmul.f32.gmra.mxu0 %v2518
    %v2717 = vpop.f32.mrf.mxu0
    %v2718 = vadd.f32 %v2554, %v2717
    %2719 = vmatmul.f32.gmra.mxu0 %v2519
    %v2720 = vpop.f32.mrf.mxu0
    %v2721 = vadd.f32 %v2554, %v2720
    %2722 = vmatmul.f32.gmra.mxu0 %v2520
    %v2723 = vpop.f32.mrf.mxu0
    %v2724 = vadd.f32 %v2554, %v2723
    %2725 = vmatmul.f32.gmra.mxu0 %v2521
    %v2726 = vpop.f32.mrf.mxu0
    %v2727 = vadd.f32 %v2554, %v2726
    %2728 = vmatmul.f32.gmra.mxu0 %v2522
    %v2729 = vpop.f32.mrf.mxu0
    %v2730 = vadd.f32 %v2554, %v2729
    %2731 = vmatmul.f32.gmra.mxu0 %v2523
    %v2732 = vpop.f32.mrf.mxu0
    %v2733 = vadd.f32 %v2554, %v2732
    %2734 = vmatmul.f32.gmra.mxu0 %v2524
    %v2735 = vpop.f32.mrf.mxu0
    %v2736 = vadd.f32 %v2554, %v2735
    %2737 = vmatmul.f32.gmra.mxu0 %v2525
    %v2738 = vpop.f32.mrf.mxu0
    %v2739 = vadd.f32 %v2554, %v2738
    %2740 = vmatmul.f32.gmra.mxu0 %v2526
    %v2741 = vpop.f32.mrf.mxu0
    %v2742 = vadd.f32 %v2554, %v2741
    %2743 = vmatmul.f32.gmra.mxu0 %v2527
    %v2744 = vpop.f32.mrf.mxu0
    %v2745 = vadd.f32 %v2554, %v2744
    %2746 = vmatmul.f32.gmra.mxu0 %v2528
    %v2747 = vpop.f32.mrf.mxu0
    %v2748 = vadd.f32 %v2554, %v2747
    %2749 = vmatmul.f32.gmra.mxu0 %v2529
    %v2750 = vpop.f32.mrf.mxu0
    %v2751 = vadd.f32 %v2554, %v2750
    %2752 = vmatmul.f32.gmra.mxu0 %v2530
    %v2753 = vpop.f32.mrf.mxu0
    %v2754 = vadd.f32 %v2554, %v2753
    %2755 = vmatmul.f32.gmra.mxu0 %v2531
    %v2756 = vpop.f32.mrf.mxu0
    %v2757 = vadd.f32 %v2554, %v2756
    %2758 = vmatmul.f32.gmra.mxu0 %v2532
    %v2759 = vpop.f32.mrf.mxu0
    %v2760 = vadd.f32 %v2554, %v2759
    %2761 = vmatmul.f32.gmra.mxu0 %v2533
    %v2762 = vpop.f32.mrf.mxu0
    %v2763 = vadd.f32 %v2554, %v2762
    %2764 = vdwg.mxu0
    %v2765 = vtanh.pop %v2574
    %v2766 = vtanh.pop %v2577
    %v2767 = vtanh.pop %v2580
    %v2768 = vtanh.pop %v2583
    %v2769 = vtanh.pop %v2586
    %v2770 = vtanh.pop %v2589
    %v2771 = vtanh.pop %v2592
    %v2772 = vtanh.pop %v2595
    %v2773 = vtanh.pop %v2598
    %v2774 = vtanh.pop %v2601
    %v2775 = vtanh.pop %v2604
    %v2776 = vtanh.pop %v2607
    %v2777 = vtanh.pop %v2610
    %v2778 = vtanh.pop %v2613
    %v2779 = vtanh.pop %v2616
    %v2780 = vtanh.pop %v2619
    %v2781 = vtanh.pop %v2622
    %v2782 = vtanh.pop %v2625
    %v2783 = vtanh.pop %v2628
    %v2784 = vtanh.pop %v2631
    %v2785 = vtanh.pop %v2634
    %v2786 = vtanh.pop %v2637
    %v2787 = vtanh.pop %v2640
    %v2788 = vtanh.pop %v2643
    %v2789 = vtanh.pop %v2646
    %v2790 = vtanh.pop %v2649
    %v2791 = vtanh.pop %v2652
    %v2792 = vtanh.pop %v2655
    %v2793 = vtanh.pop %v2658
    %v2794 = vtanh.pop %v2661
    %v2795 = vtanh.pop %v2664
    %v2796 = vtanh.pop %v2667
    %v2797 = vtanh.pop %v2670
    %v2798 = vtanh.pop %v2673
    %v2799 = vtanh.pop %v2676
    %v2800 = vtanh.pop %v2679
    %v2801 = vtanh.pop %v2682
    %v2802 = vtanh.pop %v2685
    %v2803 = vtanh.pop %v2688
    %v2804 = vtanh.pop %v2691
    %v2805 = vtanh.pop %v2694
    %v2806 = vtanh.pop %v2697
    %v2807 = vtanh.pop %v2700
    %v2808 = vtanh.pop %v2703
    %v2809 = vtanh.pop %v2706
    %v2810 = vtanh.pop %v2709
    %v2811 = vtanh.pop %v2712
    %v2812 = vtanh.pop %v2715
    %v2813 = vtanh.pop %v2718
    %v2814 = vtanh.pop %v2721
    %v2815 = vtanh.pop %v2724
    %v2816 = vtanh.pop %v2727
    %v2817 = vtanh.pop %v2730
    %v2818 = vtanh.pop %v2733
    %v2819 = vtanh.pop %v2736
    %v2820 = vtanh.pop %v2739
    %v2821 = vtanh.pop %v2742
    %v2822 = vtanh.pop %v2745
    %v2823 = vtanh.pop %v2748
    %v2824 = vtanh.pop %v2751
    %v2825 = vtanh.pop %v2754
    %v2826 = vtanh.pop %v2757
    %v2827 = vtanh.pop %v2760
    %v2828 = vtanh.pop %v2763
    %s2829 = scalar_lea.vmem [#allocation5], 896
    %v2830 = vld [vmem:[%s2829] sm:$0xff]
    %v2831 = vld [vmem:[%s2829 + $0x8] sm:$0xff]
    %v2832 = vld [vmem:[%s2829 + $0x10] sm:$0xff]
    %v2833 = vld [vmem:[%s2829 + $0x18] sm:$0xff]
    %v2834 = vld [vmem:[%s2829 + $0x20] sm:$0xff]
    %v2835 = vld [vmem:[%s2829 + $0x28] sm:$0xff]
    %v2836 = vld [vmem:[%s2829 + $0x30] sm:$0xff]
    %v2837 = vld [vmem:[%s2829 + $0x38] sm:$0xff]
    %v2838 = vld [vmem:[%s2829 + $0x40] sm:$0xff]
    %v2839 = vld [vmem:[%s2829 + $0x48] sm:$0xff]
    %v2840 = vld [vmem:[%s2829 + $0x50] sm:$0xff]
    %v2841 = vld [vmem:[%s2829 + $0x58] sm:$0xff]
    %v2842 = vld [vmem:[%s2829 + $0x60] sm:$0xff]
    %v2843 = vld [vmem:[%s2829 + $0x68] sm:$0xff]
    %v2844 = vld [vmem:[%s2829 + $0x70] sm:$0xff]
    %v2845 = vld [vmem:[%s2829 + $0x78] sm:$0xff]
    %s2846 = scalar_lea.vmem [#allocation7], 7
    %v2847 = vld [vmem:[%s2846] sm:$0x1]
    %v2849 = vperm.slane %v2847, 0
    %2851 = vmatpush.msra.mxu0 %v2845
    %2852 = vmatpush.msra.mxu0 %v2844
    %2853 = vmatpush.msra.mxu0 %v2843
    %2854 = vmatpush.msra.mxu0 %v2842
    %2855 = vmatpush.msra.mxu0 %v2841
    %2856 = vmatpush.msra.mxu0 %v2840
    %2857 = vmatpush.msra.mxu0 %v2839
    %2858 = vmatpush.msra.mxu0 %v2838
    %2859 = vmatpush.msra.mxu0 %v2837
    %2860 = vmatpush.msra.mxu0 %v2836
    %2861 = vmatpush.msra.mxu0 %v2835
    %2862 = vmatpush.msra.mxu0 %v2834
    %2863 = vmatpush.msra.mxu0 %v2833
    %2864 = vmatpush.msra.mxu0 %v2832
    %2865 = vmatpush.msra.mxu0 %v2831
    %2866 = vmatpush.msra.mxu0 %v2830
    %2867 = vmatmul.f32.gmra.mxu0 %v2765
    %v2868 = vpop.f32.mrf.mxu0
    %v2869 = vadd.f32 %v2849, %v2868
    %2870 = vmatmul.f32.gmra.mxu0 %v2766
    %v2871 = vpop.f32.mrf.mxu0
    %v2872 = vadd.f32 %v2849, %v2871
    %2873 = vmatmul.f32.gmra.mxu0 %v2767
    %v2874 = vpop.f32.mrf.mxu0
    %v2875 = vadd.f32 %v2849, %v2874
    %2876 = vmatmul.f32.gmra.mxu0 %v2768
    %v2877 = vpop.f32.mrf.mxu0
    %v2878 = vadd.f32 %v2849, %v2877
    %2879 = vmatmul.f32.gmra.mxu0 %v2769
    %v2880 = vpop.f32.mrf.mxu0
    %v2881 = vadd.f32 %v2849, %v2880
    %2882 = vmatmul.f32.gmra.mxu0 %v2770
    %v2883 = vpop.f32.mrf.mxu0
    %v2884 = vadd.f32 %v2849, %v2883
    %2885 = vmatmul.f32.gmra.mxu0 %v2771
    %v2886 = vpop.f32.mrf.mxu0
    %v2887 = vadd.f32 %v2849, %v2886
    %2888 = vmatmul.f32.gmra.mxu0 %v2772
    %v2889 = vpop.f32.mrf.mxu0
    %v2890 = vadd.f32 %v2849, %v2889
    %2891 = vmatmul.f32.gmra.mxu0 %v2773
    %v2892 = vpop.f32.mrf.mxu0
    %v2893 = vadd.f32 %v2849, %v2892
    %2894 = vmatmul.f32.gmra.mxu0 %v2774
    %v2895 = vpop.f32.mrf.mxu0
    %v2896 = vadd.f32 %v2849, %v2895
    %2897 = vmatmul.f32.gmra.mxu0 %v2775
    %v2898 = vpop.f32.mrf.mxu0
    %v2899 = vadd.f32 %v2849, %v2898
    %2900 = vmatmul.f32.gmra.mxu0 %v2776
    %v2901 = vpop.f32.mrf.mxu0
    %v2902 = vadd.f32 %v2849, %v2901
    %2903 = vmatmul.f32.gmra.mxu0 %v2777
    %v2904 = vpop.f32.mrf.mxu0
    %v2905 = vadd.f32 %v2849, %v2904
    %2906 = vmatmul.f32.gmra.mxu0 %v2778
    %v2907 = vpop.f32.mrf.mxu0
    %v2908 = vadd.f32 %v2849, %v2907
    %2909 = vmatmul.f32.gmra.mxu0 %v2779
    %v2910 = vpop.f32.mrf.mxu0
    %v2911 = vadd.f32 %v2849, %v2910
    %2912 = vmatmul.f32.gmra.mxu0 %v2780
    %v2913 = vpop.f32.mrf.mxu0
    %v2914 = vadd.f32 %v2849, %v2913
    %2915 = vmatmul.f32.gmra.mxu0 %v2781
    %v2916 = vpop.f32.mrf.mxu0
    %v2917 = vadd.f32 %v2849, %v2916
    %2918 = vmatmul.f32.gmra.mxu0 %v2782
    %v2919 = vpop.f32.mrf.mxu0
    %v2920 = vadd.f32 %v2849, %v2919
    %2921 = vmatmul.f32.gmra.mxu0 %v2783
    %v2922 = vpop.f32.mrf.mxu0
    %v2923 = vadd.f32 %v2849, %v2922
    %2924 = vmatmul.f32.gmra.mxu0 %v2784
    %v2925 = vpop.f32.mrf.mxu0
    %v2926 = vadd.f32 %v2849, %v2925
    %2927 = vmatmul.f32.gmra.mxu0 %v2785
    %v2928 = vpop.f32.mrf.mxu0
    %v2929 = vadd.f32 %v2849, %v2928
    %2930 = vmatmul.f32.gmra.mxu0 %v2786
    %v2931 = vpop.f32.mrf.mxu0
    %v2932 = vadd.f32 %v2849, %v2931
    %2933 = vmatmul.f32.gmra.mxu0 %v2787
    %v2934 = vpop.f32.mrf.mxu0
    %v2935 = vadd.f32 %v2849, %v2934
    %2936 = vmatmul.f32.gmra.mxu0 %v2788
    %v2937 = vpop.f32.mrf.mxu0
    %v2938 = vadd.f32 %v2849, %v2937
    %2939 = vmatmul.f32.gmra.mxu0 %v2789
    %v2940 = vpop.f32.mrf.mxu0
    %v2941 = vadd.f32 %v2849, %v2940
    %2942 = vmatmul.f32.gmra.mxu0 %v2790
    %v2943 = vpop.f32.mrf.mxu0
    %v2944 = vadd.f32 %v2849, %v2943
    %2945 = vmatmul.f32.gmra.mxu0 %v2791
    %v2946 = vpop.f32.mrf.mxu0
    %v2947 = vadd.f32 %v2849, %v2946
    %2948 = vmatmul.f32.gmra.mxu0 %v2792
    %v2949 = vpop.f32.mrf.mxu0
    %v2950 = vadd.f32 %v2849, %v2949
    %2951 = vmatmul.f32.gmra.mxu0 %v2793
    %v2952 = vpop.f32.mrf.mxu0
    %v2953 = vadd.f32 %v2849, %v2952
    %2954 = vmatmul.f32.gmra.mxu0 %v2794
    %v2955 = vpop.f32.mrf.mxu0
    %v2956 = vadd.f32 %v2849, %v2955
    %2957 = vmatmul.f32.gmra.mxu0 %v2795
    %v2958 = vpop.f32.mrf.mxu0
    %v2959 = vadd.f32 %v2849, %v2958
    %2960 = vmatmul.f32.gmra.mxu0 %v2796
    %v2961 = vpop.f32.mrf.mxu0
    %v2962 = vadd.f32 %v2849, %v2961
    %2963 = vmatmul.f32.gmra.mxu0 %v2797
    %v2964 = vpop.f32.mrf.mxu0
    %v2965 = vadd.f32 %v2849, %v2964
    %2966 = vmatmul.f32.gmra.mxu0 %v2798
    %v2967 = vpop.f32.mrf.mxu0
    %v2968 = vadd.f32 %v2849, %v2967
    %2969 = vmatmul.f32.gmra.mxu0 %v2799
    %v2970 = vpop.f32.mrf.mxu0
    %v2971 = vadd.f32 %v2849, %v2970
    %2972 = vmatmul.f32.gmra.mxu0 %v2800
    %v2973 = vpop.f32.mrf.mxu0
    %v2974 = vadd.f32 %v2849, %v2973
    %2975 = vmatmul.f32.gmra.mxu0 %v2801
    %v2976 = vpop.f32.mrf.mxu0
    %v2977 = vadd.f32 %v2849, %v2976
    %2978 = vmatmul.f32.gmra.mxu0 %v2802
    %v2979 = vpop.f32.mrf.mxu0
    %v2980 = vadd.f32 %v2849, %v2979
    %2981 = vmatmul.f32.gmra.mxu0 %v2803
    %v2982 = vpop.f32.mrf.mxu0
    %v2983 = vadd.f32 %v2849, %v2982
    %2984 = vmatmul.f32.gmra.mxu0 %v2804
    %v2985 = vpop.f32.mrf.mxu0
    %v2986 = vadd.f32 %v2849, %v2985
    %2987 = vmatmul.f32.gmra.mxu0 %v2805
    %v2988 = vpop.f32.mrf.mxu0
    %v2989 = vadd.f32 %v2849, %v2988
    %2990 = vmatmul.f32.gmra.mxu0 %v2806
    %v2991 = vpop.f32.mrf.mxu0
    %v2992 = vadd.f32 %v2849, %v2991
    %2993 = vmatmul.f32.gmra.mxu0 %v2807
    %v2994 = vpop.f32.mrf.mxu0
    %v2995 = vadd.f32 %v2849, %v2994
    %2996 = vmatmul.f32.gmra.mxu0 %v2808
    %v2997 = vpop.f32.mrf.mxu0
    %v2998 = vadd.f32 %v2849, %v2997
    %2999 = vmatmul.f32.gmra.mxu0 %v2809
    %v3000 = vpop.f32.mrf.mxu0
    %v3001 = vadd.f32 %v2849, %v3000
    %3002 = vmatmul.f32.gmra.mxu0 %v2810
    %v3003 = vpop.f32.mrf.mxu0
    %v3004 = vadd.f32 %v2849, %v3003
    %3005 = vmatmul.f32.gmra.mxu0 %v2811
    %v3006 = vpop.f32.mrf.mxu0
    %v3007 = vadd.f32 %v2849, %v3006
    %3008 = vmatmul.f32.gmra.mxu0 %v2812
    %v3009 = vpop.f32.mrf.mxu0
    %v3010 = vadd.f32 %v2849, %v3009
    %3011 = vmatmul.f32.gmra.mxu0 %v2813
    %v3012 = vpop.f32.mrf.mxu0
    %v3013 = vadd.f32 %v2849, %v3012
    %3014 = vmatmul.f32.gmra.mxu0 %v2814
    %v3015 = vpop.f32.mrf.mxu0
    %v3016 = vadd.f32 %v2849, %v3015
    %3017 = vmatmul.f32.gmra.mxu0 %v2815
    %v3018 = vpop.f32.mrf.mxu0
    %v3019 = vadd.f32 %v2849, %v3018
    %3020 = vmatmul.f32.gmra.mxu0 %v2816
    %v3021 = vpop.f32.mrf.mxu0
    %v3022 = vadd.f32 %v2849, %v3021
    %3023 = vmatmul.f32.gmra.mxu0 %v2817
    %v3024 = vpop.f32.mrf.mxu0
    %v3025 = vadd.f32 %v2849, %v3024
    %3026 = vmatmul.f32.gmra.mxu0 %v2818
    %v3027 = vpop.f32.mrf.mxu0
    %v3028 = vadd.f32 %v2849, %v3027
    %3029 = vmatmul.f32.gmra.mxu0 %v2819
    %v3030 = vpop.f32.mrf.mxu0
    %v3031 = vadd.f32 %v2849, %v3030
    %3032 = vmatmul.f32.gmra.mxu0 %v2820
    %v3033 = vpop.f32.mrf.mxu0
    %v3034 = vadd.f32 %v2849, %v3033
    %3035 = vmatmul.f32.gmra.mxu0 %v2821
    %v3036 = vpop.f32.mrf.mxu0
    %v3037 = vadd.f32 %v2849, %v3036
    %3038 = vmatmul.f32.gmra.mxu0 %v2822
    %v3039 = vpop.f32.mrf.mxu0
    %v3040 = vadd.f32 %v2849, %v3039
    %3041 = vmatmul.f32.gmra.mxu0 %v2823
    %v3042 = vpop.f32.mrf.mxu0
    %v3043 = vadd.f32 %v2849, %v3042
    %3044 = vmatmul.f32.gmra.mxu0 %v2824
    %v3045 = vpop.f32.mrf.mxu0
    %v3046 = vadd.f32 %v2849, %v3045
    %3047 = vmatmul.f32.gmra.mxu0 %v2825
    %v3048 = vpop.f32.mrf.mxu0
    %v3049 = vadd.f32 %v2849, %v3048
    %3050 = vmatmul.f32.gmra.mxu0 %v2826
    %v3051 = vpop.f32.mrf.mxu0
    %v3052 = vadd.f32 %v2849, %v3051
    %3053 = vmatmul.f32.gmra.mxu0 %v2827
    %v3054 = vpop.f32.mrf.mxu0
    %v3055 = vadd.f32 %v2849, %v3054
    %3056 = vmatmul.f32.gmra.mxu0 %v2828
    %v3057 = vpop.f32.mrf.mxu0
    %v3058 = vadd.f32 %v2849, %v3057
    %3059 = vdwg.mxu0
    %3060 = vst [vmem:[#allocation8] sm:$0xff] %v2869
    %3061 = vst [vmem:[#allocation8 + $0x8] sm:$0xff] %v2872
    %3062 = vst [vmem:[#allocation8 + $0x10] sm:$0xff] %v2875
    %3063 = vst [vmem:[#allocation8 + $0x18] sm:$0xff] %v2878
    %3064 = vst [vmem:[#allocation8 + $0x20] sm:$0xff] %v2881
    %3065 = vst [vmem:[#allocation8 + $0x28] sm:$0xff] %v2884
    %3066 = vst [vmem:[#allocation8 + $0x30] sm:$0xff] %v2887
    %3067 = vst [vmem:[#allocation8 + $0x38] sm:$0xff] %v2890
    %3068 = vst [vmem:[#allocation8 + $0x40] sm:$0xff] %v2893
    %3069 = vst [vmem:[#allocation8 + $0x48] sm:$0xff] %v2896
    %3070 = vst [vmem:[#allocation8 + $0x50] sm:$0xff] %v2899
    %3071 = vst [vmem:[#allocation8 + $0x58] sm:$0xff] %v2902
    %3072 = vst [vmem:[#allocation8 + $0x60] sm:$0xff] %v2905
    %3073 = vst [vmem:[#allocation8 + $0x68] sm:$0xff] %v2908
    %3074 = vst [vmem:[#allocation8 + $0x70] sm:$0xff] %v2911
    %3075 = vst [vmem:[#allocation8 + $0x78] sm:$0xff] %v2914
    %3076 = vst [vmem:[#allocation8 + $0x80] sm:$0xff] %v2917
    %3077 = vst [vmem:[#allocation8 + $0x88] sm:$0xff] %v2920
    %3078 = vst [vmem:[#allocation8 + $0x90] sm:$0xff] %v2923
    %3079 = vst [vmem:[#allocation8 + $0x98] sm:$0xff] %v2926
    %3080 = vst [vmem:[#allocation8 + $0xa0] sm:$0xff] %v2929
    %3081 = vst [vmem:[#allocation8 + $0xa8] sm:$0xff] %v2932
    %3082 = vst [vmem:[#allocation8 + $0xb0] sm:$0xff] %v2935
    %3083 = vst [vmem:[#allocation8 + $0xb8] sm:$0xff] %v2938
    %3084 = vst [vmem:[#allocation8 + $0xc0] sm:$0xff] %v2941
    %3085 = vst [vmem:[#allocation8 + $0xc8] sm:$0xff] %v2944
    %3086 = vst [vmem:[#allocation8 + $0xd0] sm:$0xff] %v2947
    %3087 = vst [vmem:[#allocation8 + $0xd8] sm:$0xff] %v2950
    %3088 = vst [vmem:[#allocation8 + $0xe0] sm:$0xff] %v2953
    %3089 = vst [vmem:[#allocation8 + $0xe8] sm:$0xff] %v2956
    %3090 = vst [vmem:[#allocation8 + $0xf0] sm:$0xff] %v2959
    %3091 = vst [vmem:[#allocation8 + $0xf8] sm:$0xff] %v2962
    %3092 = vst [vmem:[#allocation8 + $0x100] sm:$0xff] %v2965
    %3093 = vst [vmem:[#allocation8 + $0x108] sm:$0xff] %v2968
    %3094 = vst [vmem:[#allocation8 + $0x110] sm:$0xff] %v2971
    %3095 = vst [vmem:[#allocation8 + $0x118] sm:$0xff] %v2974
    %3096 = vst [vmem:[#allocation8 + $0x120] sm:$0xff] %v2977
    %3097 = vst [vmem:[#allocation8 + $0x128] sm:$0xff] %v2980
    %3098 = vst [vmem:[#allocation8 + $0x130] sm:$0xff] %v2983
    %3099 = vst [vmem:[#allocation8 + $0x138] sm:$0xff] %v2986
    %3100 = vst [vmem:[#allocation8 + $0x140] sm:$0xff] %v2989
    %3101 = vst [vmem:[#allocation8 + $0x148] sm:$0xff] %v2992
    %3102 = vst [vmem:[#allocation8 + $0x150] sm:$0xff] %v2995
    %3103 = vst [vmem:[#allocation8 + $0x158] sm:$0xff] %v2998
    %3104 = vst [vmem:[#allocation8 + $0x160] sm:$0xff] %v3001
    %3105 = vst [vmem:[#allocation8 + $0x168] sm:$0xff] %v3004
    %3106 = vst [vmem:[#allocation8 + $0x170] sm:$0xff] %v3007
    %3107 = vst [vmem:[#allocation8 + $0x178] sm:$0xff] %v3010
    %3108 = vst [vmem:[#allocation8 + $0x180] sm:$0xff] %v3013
    %3109 = vst [vmem:[#allocation8 + $0x188] sm:$0xff] %v3016
    %3110 = vst [vmem:[#allocation8 + $0x190] sm:$0xff] %v3019
    %3111 = vst [vmem:[#allocation8 + $0x198] sm:$0xff] %v3022
    %3112 = vst [vmem:[#allocation8 + $0x1a0] sm:$0xff] %v3025
    %3113 = vst [vmem:[#allocation8 + $0x1a8] sm:$0xff] %v3028
    %3114 = vst [vmem:[#allocation8 + $0x1b0] sm:$0xff] %v3031
    %3115 = vst [vmem:[#allocation8 + $0x1b8] sm:$0xff] %v3034
    %3116 = vst [vmem:[#allocation8 + $0x1c0] sm:$0xff] %v3037
    %3117 = vst [vmem:[#allocation8 + $0x1c8] sm:$0xff] %v3040
    %3118 = vst [vmem:[#allocation8 + $0x1d0] sm:$0xff] %v3043
    %3119 = vst [vmem:[#allocation8 + $0x1d8] sm:$0xff] %v3046
    %3120 = vst [vmem:[#allocation8 + $0x1e0] sm:$0xff] %v3049
    %3121 = vst [vmem:[#allocation8 + $0x1e8] sm:$0xff] %v3052
    %3122 = vst [vmem:[#allocation8 + $0x1f0] sm:$0xff] %v3055
    %3123 = vst [vmem:[#allocation8 + $0x1f8] sm:$0xff] %v3058
    // Predicated region
    $region26: #{tpu_custom_call.1} parent=1 // pred_check
      _
    $region27: #{tpu_custom_call.1} parent=1 // pred_check_branch
      %3125 = sbr.rel (0) target = $region29
    $region28: #{tpu_custom_call.1} parent=1 // pred_region
      %3127 = vsyncadd [#allocation4], 0
      %s3128 = sshll.u32 [#allocation8], 4
      %s3129 = int_to_ptr.vmem [resolvable:$true] %s3128
      %s3130 = sshll.u32 %s3, 4
      %s3131 = int_to_ptr.hbm [resolvable:$true] %s3130
      %3136 = dma.vmem_to_hbm [thread:$0]  %s3129, 8192, %s3131, [#allocation4], 128, 128, 8
    $region29: #{tpu_custom_call.1} parent=1 // pred_fallthru
      _
    // Predicated region
    $region30: #{tpu_custom_call.1} parent=1 // pred_check
      _
    $region31: #{tpu_custom_call.1} parent=1 // pred_check_branch
      %3138 = sbr.rel (0) target = $region33
    $region32: #{tpu_custom_call.1} parent=1 // pred_region
      %3140 = dma.done [#allocation4], 8192
    $region33: #{tpu_custom_call.1} parent=1 // pred_fallthru
      _
    %3141 = vsyncpa [#allocation3], 1
    %3142 = vsyncpa [#allocation6], 1
    %3143 = vsyncpa [#allocation4], 1

</llo_original>
